<compile_context>
chip_gen: v7x
topology: tpu7x:2x2x1
jax: 0.10.0
libtpu: 0.0.40
codegen_flags: <defaults>
</compile_context>

<pallas_src>
import functools

import jax
import jax.numpy as jnp
from jax.experimental import pallas as pl
from jax.experimental.pallas import tpu as pltpu


_LANE = 128
_TM_CAP = 1024   # max output pixels (lanes) per grid step


def _choose_tm(M):
    """Tile of the flattened spatial axis: whole axis if small, else a divisor
    of M (multiples of 128 preferred) capped at _TM_CAP."""
    if M <= _TM_CAP:
        return M
    start = _TM_CAP - (_TM_CAP % _LANE)
    for tm in range(start, 0, -_LANE):
        if M % tm == 0:
            return tm
    for tm in range(_TM_CAP, 0, -1):
        if M % tm == 0:
            return tm
    return M


# -----------------------------------------------------------------------------
# Pallas kernel: fused conv (+ bias, + optional LeakyReLU) for one (image, M-tile).
#   refs = (a_0, [a_1,] wt_0, [wt_1,] b, out)
#     a_i : (1, K*K*C_i, TM) bf16   im2col slab, spatial on lanes
#     wt_i: (Co, K*K*C_i)    bf16   folded weights (VMEM resident)
#     b   : (Co, 1)          f32
#     out : (1, Co, TM)             lane-dense output tile
# -----------------------------------------------------------------------------
def _conv_kernel(*refs, n_inputs, alpha):
    a_refs = refs[:n_inputs]
    w_refs = refs[n_inputs:2 * n_inputs]
    b_ref = refs[2 * n_inputs]
    o_ref = refs[2 * n_inputs + 1]

    acc = None
    for i in range(n_inputs):
        d = jnp.dot(w_refs[i][...], a_refs[i][0],
                    preferred_element_type=jnp.float32)       # (Co, TM) f32
        acc = d if acc is None else acc + d
    acc = acc + b_ref[...]                                    # lane-broadcast bias
    if alpha is not None:                                     # LeakyReLU(alpha)
        acc = jnp.where(acc >= 0, acc, alpha * acc)
    o_ref[0] = acc.astype(o_ref.dtype)


def _im2col(x, K, padding):
    """x: (N, C, H, W) -> bf16 (N, K*K*C, Ho*Wo); row index = (kh*K + kw)*C + c."""
    N, C, H, W = x.shape
    Hp, Wp = H + 2 * padding, W + 2 * padding
    Ho, Wo = Hp - K + 1, Wp - K + 1
    xp = jnp.pad(x.astype(jnp.bfloat16),
                 ((0, 0), (0, 0), (padding, padding), (padding, padding)))
    wins = [xp[:, :, kh:kh + Ho, kw:kw + Wo]
            for kh in range(K) for kw in range(K)]            # K^2 x (N,C,Ho,Wo)
    a = jnp.stack(wins, axis=1)                               # (N, K*K, C, Ho, Wo)
    return a.reshape(N, K * K * C, Ho * Wo), Ho, Wo


def conv2d_pallas(inputs, w, b, *, padding, alpha, out_dtype=jnp.bfloat16):
    """Stride-1 KxK conv (+bias, +optional LeakyReLU) over the channel concat of
    `inputs` (list of (N, C_i, H, W) arrays with identical N,H,W).
    w: (K, K, sum(C_i), Co), b: (Co,).  Matches nn.Conv2d(stride=1, padding)
    followed by nn.LeakyReLU(alpha) when alpha is not None.
    Returns (N, Co, Ho, Wo) in out_dtype."""
    K = int(w.shape[0])
    Co = int(w.shape[-1])
    N = int(inputs[0].shape[0])
    cins = tuple(int(x.shape[1]) for x in inputs)
    assert int(w.shape[1]) == K and int(w.shape[2]) == sum(cins)

    # --- glue: per-input transposed im2col slabs (spatial on the lane axis).
    a_list = []
    Ho = Wo = None
    for x in inputs:
        a, Ho, Wo = _im2col(x, K, padding)
        a_list.append(a)
    M = Ho * Wo

    # --- glue: fold weights per input; contraction order (kh, kw, c).
    w_list, off = [], 0
    for C in cins:
        wi = w[:, :, off:off + C, :]                          # (K,K,C,Co)
        w_list.append(wi.transpose(3, 0, 1, 2)
                        .reshape(Co, K * K * C).astype(jnp.bfloat16))
        off += C
    b2 = jnp.asarray(b, jnp.float32).reshape(Co, 1)

    TM = _choose_tm(M)
    grid = (N, M // TM)

    in_specs = [pl.BlockSpec((1, K * K * C, TM), lambda n, m: (n, 0, m))
                for C in cins]
    in_specs += [pl.BlockSpec((Co, K * K * C), lambda n, m: (0, 0))  # resident
                 for C in cins]
    in_specs += [pl.BlockSpec((Co, 1), lambda n, m: (0, 0))]

    kernel = functools.partial(_conv_kernel, n_inputs=len(cins), alpha=alpha)

    out = pl.pallas_call(
        kernel,
        out_shape=jax.ShapeDtypeStruct((N, Co, M), out_dtype),
        grid_spec=pltpu.PrefetchScalarGridSpec(
            num_scalar_prefetch=0,
            grid=grid,
            in_specs=in_specs,
            out_specs=pl.BlockSpec((1, Co, TM), lambda n, m: (n, 0, m)),
        ),
        compiler_params=pltpu.CompilerParams(
            dimension_semantics=("parallel", "parallel")),
    )(*a_list, *w_list, b2)

    return out.reshape(N, Co, Ho, Wo)


def conv2d_s2_pallas(x, w, b, *, alpha):
    """4x4 / stride-2 / pad-1 conv + LeakyReLU (encoder blocks), rewritten as a
    2x2 stride-1 conv on the 2x2-phase space-to-depth rearrangement so it uses
    the same lane-dense stride-1 Pallas kernel."""
    N, C, H, W = x.shape
    assert int(w.shape[0]) == 4 and int(w.shape[1]) == 4
    assert H % 2 == 0 and W % 2 == 0
    Co = int(w.shape[-1])

    xp = jnp.pad(x, ((0, 0), (0, 0), (1, 1), (1, 1)))
    # phases P_{r,s}[i,j] = xp[2i+r, 2j+s]; channel order (r, s, ci)
    phases = [xp[:, :, r::2, s::2] for r in range(2) for s in range(2)]
    xs = jnp.concatenate(phases, axis=1)                      # (N, 4C, H/2+1, W/2+1)

    # w[2a+r, 2c+s, ci, co] -> w2[a, c, (r*2 + s)*C + ci, co]
    w2 = (w.reshape(2, 2, 2, 2, C, Co)
           .transpose(0, 2, 1, 3, 4, 5)
           .reshape(2, 2, 4 * C, Co))
    return conv2d_pallas([xs], w2, b, padding=0, alpha=alpha)


# -----------------------------------------------------------------------------
# Glue ops (pure data movement)
# -----------------------------------------------------------------------------
def upsample_nearest2x(x):
    # nn.Upsample(scale_factor=2, mode='nearest'), NCHW
    # TODO(synk): fuse into the next conv's im2col construction instead of
    #             materializing the 4x-repeated tensor in HBM.
    x = jnp.repeat(x, 2, axis=2)
    return jnp.repeat(x, 2, axis=3)


# -----------------------------------------------------------------------------
# Deterministic parameter init (shapes follow U_Network.__init__)
# -----------------------------------------------------------------------------
def _init_conv(key, k, ci, co):
    kw, kb = jax.random.split(key)
    fan_in = k * k * ci
    bound = 1.0 / jnp.sqrt(jnp.float32(fan_in))
    w = jax.random.uniform(kw, (k, k, ci, co), jnp.float32, -bound, bound)
    b = jax.random.uniform(kb, (co,), jnp.float32, -bound, bound)
    return w, b


def init_u_network(key, dim, enc_nf, dec_nf, full_size=True):
    assert dim == 2, "This Pallas implementation covers the 2D (Conv2d) case."
    vm2 = len(dec_nf) == 7
    keys = iter(jax.random.split(key, len(enc_nf) + 8))

    enc = []
    for i, nf in enumerate(enc_nf):
        prev_nf = 2 if i == 0 else enc_nf[i - 1]
        enc.append(_init_conv(next(keys), 4, prev_nf, nf))          # k=4, s=2, p=1

    dec_in = [enc_nf[-1], dec_nf[0] * 2, dec_nf[1] * 2,
              dec_nf[2] + enc_nf[0], dec_nf[3]]
    dec = [_init_conv(next(keys), 3, ci, co)
           for ci, co in zip(dec_in, dec_nf[:5])]
    if full_size:
        dec.append(_init_conv(next(keys), 3, dec_nf[4] + 2, dec_nf[5]))

    vm2_conv = _init_conv(next(keys), 3, dec_nf[5], dec_nf[6]) if vm2 else None

    # flow: weights ~ Normal(0, 1e-5), bias = 0
    flow_w = 1e-5 * jax.random.normal(next(keys), (3, 3, dec_nf[-1], dim), jnp.float32)
    flow_b = jnp.zeros((dim,), jnp.float32)

    return {
        "enc": enc,
        "dec": dec,
        "vm2_conv": vm2_conv,
        "flow": (flow_w, flow_b),
        "full_size": full_size,
    }


# -----------------------------------------------------------------------------
# Forward pass (bn=None -> no batch norm, exactly as the reference forward).
# Activations stay NCHW throughout; final flow is already (N, dim, H, W).
# -----------------------------------------------------------------------------
def u_network_forward(params, src, tgt):
    x = jnp.concatenate([src, tgt], axis=1).astype(jnp.bfloat16)    # (N, 2, H, W)
    x_enc = [x]
    for w, b in params["enc"]:
        x_enc.append(conv2d_s2_pallas(x_enc[-1], w, b, alpha=0.2))

    # decoder: the [upsampled y, skip] channel-concat is fused into the next
    # conv by passing both im2col slabs to the Pallas conv.
    y_parts = [x_enc[-1]]
    for i in range(3):
        w, b = params["dec"][i]
        y = conv2d_pallas(y_parts, w, b, padding=1, alpha=0.2)
        y = upsample_nearest2x(y)
        y_parts = [y, x_enc[-(i + 2)]]

    w, b = params["dec"][3]
    y = conv2d_pallas(y_parts, w, b, padding=1, alpha=0.2)
    w, b = params["dec"][4]
    y = conv2d_pallas([y], w, b, padding=1, alpha=0.2)

    if params["full_size"]:
        y = upsample_nearest2x(y)
        w, b = params["dec"][5]
        y = conv2d_pallas([y, x_enc[0]], w, b, padding=1, alpha=0.2)

    if params["vm2_conv"] is not None:
        w, b = params["vm2_conv"]
        y = conv2d_pallas([y], w, b, padding=1, alpha=0.2)

    fw, fb = params["flow"]
    flow = conv2d_pallas([y], fw, fb, padding=1, alpha=None,
                         out_dtype=jnp.float32)                     # no activation
    # bn is None in this configuration -> self.batch_norm is never applied.
    return flow                                                     # (N, dim, H, W)


# -----------------------------------------------------------------------------
# Pure-JAX f32 reference (for a tolerance check against the bf16 Pallas path)
# -----------------------------------------------------------------------------
def _conv_ref(x, w, b, stride, padding):
    y = jax.lax.conv_general_dilated(
        x, w, window_strides=(stride, stride),
        padding=((padding, padding), (padding, padding)),
        dimension_numbers=("NCHW", "HWIO", "NCHW"),
        preferred_element_type=jnp.float32)
    return y + b.reshape(1, -1, 1, 1)


def _lrelu(x, a=0.2):
    return jnp.where(x >= 0, x, a * x)


def u_network_forward_ref(params, src, tgt):
    x = jnp.concatenate([src, tgt], axis=1)
    x_enc = [x]
    for w, b in params["enc"]:
        x_enc.append(_lrelu(_conv_ref(x_enc[-1], w, b, 2, 1)))
    y = x_enc[-1]
    for i in range(3):
        w, b = params["dec"][i]
        y = upsample_nearest2x(_lrelu(_conv_ref(y, w, b, 1, 1)))
        y = jnp.concatenate([y, x_enc[-(i + 2)]], axis=1)
    w, b = params["dec"][3]
    y = _lrelu(_conv_ref(y, w, b, 1, 1))
    w, b = params["dec"][4]
    y = _lrelu(_conv_ref(y, w, b, 1, 1))
    if params["full_size"]:
        y = jnp.concatenate([upsample_nearest2x(y), x_enc[0]], axis=1)
        w, b = params["dec"][5]
        y = _lrelu(_conv_ref(y, w, b, 1, 1))
    if params["vm2_conv"] is not None:
        w, b = params["vm2_conv"]
        y = _lrelu(_conv_ref(y, w, b, 1, 1))
    fw, fb = params["flow"]
    return _conv_ref(y, fw, fb, 1, 1)


# -----------------------------------------------------------------------------
if __name__ == "__main__":
    key = jax.random.PRNGKey(0)
    k_src, k_tgt, k_par = jax.random.split(key, 3)

    dim = 2
    enc_nf = [8, 16, 16, 16]
    dec_nf = [16, 16, 16, 16, 8, 8, 8]        # len 7 -> vm2 path active
    N, H, W = 2, 16, 16

    src = jax.random.normal(k_src, (N, 1, H, W), jnp.float32)
    tgt = jax.random.normal(k_tgt, (N, 1, H, W), jnp.float32)

    params = init_u_network(k_par, dim, enc_nf, dec_nf, full_size=True)

    fwd = jax.jit(functools.partial(u_network_forward, params))
    flow = jax.block_until_ready(fwd(src, tgt))

    assert flow.shape == (N, dim, H, W), flow.shape
    assert bool(jnp.all(jnp.isfinite(flow)))

    # Sanity check against the f32 XLA reference (bf16 activation/weight
    # rounding in the Pallas path -> loose tolerance, scaled by output range).
    ref = jax.block_until_ready(
        jax.jit(functools.partial(u_network_forward_ref, params))(src, tgt))
    err = float(jnp.max(jnp.abs(flow - ref.astype(jnp.float32))))
    scale = float(jnp.max(jnp.abs(ref))) + 1e-8
    assert err <= 0.25 * scale + 1e-6, ("mismatch vs reference", err, scale)

    print("KERNEL_OK")
</pallas_src>

<mosaic_0001>
module attributes {stable_mosaic.version = 11 : i64} {
  func.func @_conv_kernel(%arg0: i32, %arg1: i32, %arg2: memref<1x32x64xbf16, #tpu.memory_space<vmem>>, %arg3: memref<8x32xbf16, #tpu.memory_space<vmem>>, %arg4: memref<8x1xf32, #tpu.memory_space<vmem>>, %arg5: memref<1x8x64xbf16, #tpu.memory_space<vmem>>) attributes {dimension_semantics = [#tpu.dimension_semantics<parallel>, #tpu.dimension_semantics<parallel>], iteration_bounds = array<i64: 2, 1>, scalar_prefetch = 0 : i64, scratch_operands = 0 : i64, tpu.core_type = #tpu.core_type<tc>, window_params = [{transform_indices = @transform_0, window_bounds = array<i64: 1, 32, 64>}, {pipeline_mode = #tpu.pipeline_mode<synchronous>, transform_indices = @transform_1, window_bounds = array<i64: 8, 32>}, {pipeline_mode = #tpu.pipeline_mode<synchronous>, transform_indices = @transform_2, window_bounds = array<i64: 8, 1>}, {transform_indices = @transform_3, window_bounds = array<i64: 1, 8, 64>}]} {
    %c0 = arith.constant 0 : index
    %c0_0 = arith.constant 0 : index
    %0 = vector.load %arg3[%c0, %c0_0] : memref<8x32xbf16, #tpu.memory_space<vmem>>, vector<8x32xbf16>
    %c0_1 = arith.constant 0 : index
    %c0_2 = arith.constant 0 : index
    %c0_3 = arith.constant 0 : index
    %1 = vector.load %arg2[%c0_1, %c0_2, %c0_3] : memref<1x32x64xbf16, #tpu.memory_space<vmem>>, vector<1x32x64xbf16>
    %2 = vector.shape_cast %1 : vector<1x32x64xbf16> to vector<32x64xbf16>
    %cst = arith.constant dense<0.000000e+00> : vector<8x64xf32>
    %3 = tpu.matmul %0, %2, %cst {dimension_numbers = #tpu.dot_dimension_numbers<[1], [0], [0], [1], [0, 0, 1, 1], [], []>} : vector<8x32xbf16>, vector<32x64xbf16>, vector<8x64xf32> -> vector<8x64xf32>
    %c0_4 = arith.constant 0 : index
    %c0_5 = arith.constant 0 : index
    %4 = vector.load %arg4[%c0_4, %c0_5] : memref<8x1xf32, #tpu.memory_space<vmem>>, vector<8x1xf32>
    %5 = vector.broadcast %4 : vector<8x1xf32> to vector<8x64xf32>
    %6 = arith.addf %3, %5 : vector<8x64xf32>
    %cst_6 = arith.constant 0.000000e+00 : f32
    %7 = vector.broadcast %cst_6 : f32 to vector<8x64xf32>
    %8 = arith.cmpf oge, %6, %7 : vector<8x64xf32>
    %cst_7 = arith.constant 2.000000e-01 : f32
    %9 = vector.broadcast %cst_7 : f32 to vector<8x64xf32>
    %10 = arith.mulf %9, %6 : vector<8x64xf32>
    %11 = arith.select %8, %6, %10 : vector<8x64xi1>, vector<8x64xf32>
    %12 = arith.truncf %11 : vector<8x64xf32> to vector<8x64xbf16>
    %c0_8 = arith.constant 0 : index
    %c0_9 = arith.constant 0 : index
    %c0_10 = arith.constant 0 : index
    %13 = vector.load %arg5[%c0_8, %c0_9, %c0_10] : memref<1x8x64xbf16, #tpu.memory_space<vmem>>, vector<1x8x64xbf16>
    %14 = vector.shape_cast %13 : vector<1x8x64xbf16> to vector<8x64xbf16>
    %15 = vector.shape_cast %12 : vector<8x64xbf16> to vector<1x8x64xbf16>
    tpu.vector_store %arg5[%c0_8, %c0_9, %c0_10], %15 {strides = array<i32>} : memref<1x8x64xbf16, #tpu.memory_space<vmem>>, vector<1x8x64xbf16>,
    return
  }
  func.func @transform_0(%arg0: i32, %arg1: i32) -> (i32, i32, i32) {
    %c0_i32 = arith.constant 0 : i32
    %c0_i32_0 = arith.constant 0 : i32
    return %arg0, %c0_i32, %arg1 : i32, i32, i32
  }
  func.func @transform_1(%arg0: i32, %arg1: i32) -> (i32, i32) {
    %c0_i32 = arith.constant 0 : i32
    %c0_i32_0 = arith.constant 0 : i32
    %c0_i32_1 = arith.constant 0 : i32
    return %c0_i32, %c0_i32_0 : i32, i32
  }
  func.func @transform_2(%arg0: i32, %arg1: i32) -> (i32, i32) {
    %c0_i32 = arith.constant 0 : i32
    %c0_i32_0 = arith.constant 0 : i32
    %c0_i32_1 = arith.constant 0 : i32
    return %c0_i32, %c0_i32_0 : i32, i32
  }
  func.func @transform_3(%arg0: i32, %arg1: i32) -> (i32, i32, i32) {
    %c0_i32 = arith.constant 0 : i32
    %c0_i32_0 = arith.constant 0 : i32
    return %arg0, %c0_i32, %arg1 : i32, i32, i32
  }
}

module attributes {stable_mosaic.version = 11 : i64} {
  func.func @_conv_kernel(%arg0: i32, %arg1: i32, %arg2: memref<1x128x16xbf16, #tpu.memory_space<vmem>>, %arg3: memref<16x128xbf16, #tpu.memory_space<vmem>>, %arg4: memref<16x1xf32, #tpu.memory_space<vmem>>, %arg5: memref<1x16x16xbf16, #tpu.memory_space<vmem>>) attributes {dimension_semantics = [#tpu.dimension_semantics<parallel>, #tpu.dimension_semantics<parallel>], iteration_bounds = array<i64: 2, 1>, scalar_prefetch = 0 : i64, scratch_operands = 0 : i64, tpu.core_type = #tpu.core_type<tc>, window_params = [{transform_indices = @transform_0, window_bounds = array<i64: 1, 128, 16>}, {pipeline_mode = #tpu.pipeline_mode<synchronous>, transform_indices = @transform_1, window_bounds = array<i64: 16, 128>}, {pipeline_mode = #tpu.pipeline_mode<synchronous>, transform_indices = @transform_2, window_bounds = array<i64: 16, 1>}, {transform_indices = @transform_3, window_bounds = array<i64: 1, 16, 16>}]} {
    %c0 = arith.constant 0 : index
    %c0_0 = arith.constant 0 : index
    %0 = vector.load %arg3[%c0, %c0_0] : memref<16x128xbf16, #tpu.memory_space<vmem>>, vector<16x128xbf16>
    %c0_1 = arith.constant 0 : index
    %c0_2 = arith.constant 0 : index
    %c0_3 = arith.constant 0 : index
    %1 = vector.load %arg2[%c0_1, %c0_2, %c0_3] : memref<1x128x16xbf16, #tpu.memory_space<vmem>>, vector<1x128x16xbf16>
    %2 = vector.shape_cast %1 : vector<1x128x16xbf16> to vector<128x16xbf16>
    %cst = arith.constant dense<0.000000e+00> : vector<16x16xf32>
    %3 = tpu.matmul %0, %2, %cst {dimension_numbers = #tpu.dot_dimension_numbers<[1], [0], [0], [1], [0, 0, 1, 1], [], []>} : vector<16x128xbf16>, vector<128x16xbf16>, vector<16x16xf32> -> vector<16x16xf32>
    %c0_4 = arith.constant 0 : index
    %c0_5 = arith.constant 0 : index
    %4 = vector.load %arg4[%c0_4, %c0_5] : memref<16x1xf32, #tpu.memory_space<vmem>>, vector<16x1xf32>
    %5 = vector.broadcast %4 : vector<16x1xf32> to vector<16x16xf32>
    %6 = arith.addf %3, %5 : vector<16x16xf32>
    %cst_6 = arith.constant 0.000000e+00 : f32
    %7 = vector.broadcast %cst_6 : f32 to vector<16x16xf32>
    %8 = arith.cmpf oge, %6, %7 : vector<16x16xf32>
    %cst_7 = arith.constant 2.000000e-01 : f32
    %9 = vector.broadcast %cst_7 : f32 to vector<16x16xf32>
    %10 = arith.mulf %9, %6 : vector<16x16xf32>
    %11 = arith.select %8, %6, %10 : vector<16x16xi1>, vector<16x16xf32>
    %12 = arith.truncf %11 : vector<16x16xf32> to vector<16x16xbf16>
    %c0_8 = arith.constant 0 : index
    %c0_9 = arith.constant 0 : index
    %c0_10 = arith.constant 0 : index
    %13 = vector.load %arg5[%c0_8, %c0_9, %c0_10] : memref<1x16x16xbf16, #tpu.memory_space<vmem>>, vector<1x16x16xbf16>
    %14 = vector.shape_cast %13 : vector<1x16x16xbf16> to vector<16x16xbf16>
    %15 = vector.shape_cast %12 : vector<16x16xbf16> to vector<1x16x16xbf16>
    tpu.vector_store %arg5[%c0_8, %c0_9, %c0_10], %15 {strides = array<i32>} : memref<1x16x16xbf16, #tpu.memory_space<vmem>>, vector<1x16x16xbf16>,
    return
  }
  func.func @transform_0(%arg0: i32, %arg1: i32) -> (i32, i32, i32) {
    %c0_i32 = arith.constant 0 : i32
    %c0_i32_0 = arith.constant 0 : i32
    return %arg0, %c0_i32, %arg1 : i32, i32, i32
  }
  func.func @transform_1(%arg0: i32, %arg1: i32) -> (i32, i32) {
    %c0_i32 = arith.constant 0 : i32
    %c0_i32_0 = arith.constant 0 : i32
    %c0_i32_1 = arith.constant 0 : i32
    return %c0_i32, %c0_i32_0 : i32, i32
  }
  func.func @transform_2(%arg0: i32, %arg1: i32) -> (i32, i32) {
    %c0_i32 = arith.constant 0 : i32
    %c0_i32_0 = arith.constant 0 : i32
    %c0_i32_1 = arith.constant 0 : i32
    return %c0_i32, %c0_i32_0 : i32, i32
  }
  func.func @transform_3(%arg0: i32, %arg1: i32) -> (i32, i32, i32) {
    %c0_i32 = arith.constant 0 : i32
    %c0_i32_0 = arith.constant 0 : i32
    return %arg0, %c0_i32, %arg1 : i32, i32, i32
  }
}

module attributes {stable_mosaic.version = 11 : i64} {
  func.func @_conv_kernel(%arg0: i32, %arg1: i32, %arg2: memref<1x256x4xbf16, #tpu.memory_space<vmem>>, %arg3: memref<16x256xbf16, #tpu.memory_space<vmem>>, %arg4: memref<16x1xf32, #tpu.memory_space<vmem>>, %arg5: memref<1x16x4xbf16, #tpu.memory_space<vmem>>) attributes {dimension_semantics = [#tpu.dimension_semantics<parallel>, #tpu.dimension_semantics<parallel>], iteration_bounds = array<i64: 2, 1>, scalar_prefetch = 0 : i64, scratch_operands = 0 : i64, tpu.core_type = #tpu.core_type<tc>, window_params = [{transform_indices = @transform_0, window_bounds = array<i64: 1, 256, 4>}, {pipeline_mode = #tpu.pipeline_mode<synchronous>, transform_indices = @transform_1, window_bounds = array<i64: 16, 256>}, {pipeline_mode = #tpu.pipeline_mode<synchronous>, transform_indices = @transform_2, window_bounds = array<i64: 16, 1>}, {transform_indices = @transform_3, window_bounds = array<i64: 1, 16, 4>}]} {
    %c0 = arith.constant 0 : index
    %c0_0 = arith.constant 0 : index
    %0 = vector.load %arg3[%c0, %c0_0] : memref<16x256xbf16, #tpu.memory_space<vmem>>, vector<16x256xbf16>
    %c0_1 = arith.constant 0 : index
    %c0_2 = arith.constant 0 : index
    %c0_3 = arith.constant 0 : index
    %1 = vector.load %arg2[%c0_1, %c0_2, %c0_3] : memref<1x256x4xbf16, #tpu.memory_space<vmem>>, vector<1x256x4xbf16>
    %2 = vector.shape_cast %1 : vector<1x256x4xbf16> to vector<256x4xbf16>
    %cst = arith.constant dense<0.000000e+00> : vector<16x4xf32>
    %3 = tpu.matmul %0, %2, %cst {dimension_numbers = #tpu.dot_dimension_numbers<[1], [0], [0], [1], [0, 0, 1, 1], [], []>} : vector<16x256xbf16>, vector<256x4xbf16>, vector<16x4xf32> -> vector<16x4xf32>
    %c0_4 = arith.constant 0 : index
    %c0_5 = arith.constant 0 : index
    %4 = vector.load %arg4[%c0_4, %c0_5] : memref<16x1xf32, #tpu.memory_space<vmem>>, vector<16x1xf32>
    %5 = vector.broadcast %4 : vector<16x1xf32> to vector<16x4xf32>
    %6 = arith.addf %3, %5 : vector<16x4xf32>
    %cst_6 = arith.constant 0.000000e+00 : f32
    %7 = vector.broadcast %cst_6 : f32 to vector<16x4xf32>
    %8 = arith.cmpf oge, %6, %7 : vector<16x4xf32>
    %cst_7 = arith.constant 2.000000e-01 : f32
    %9 = vector.broadcast %cst_7 : f32 to vector<16x4xf32>
    %10 = arith.mulf %9, %6 : vector<16x4xf32>
    %11 = arith.select %8, %6, %10 : vector<16x4xi1>, vector<16x4xf32>
    %12 = arith.truncf %11 : vector<16x4xf32> to vector<16x4xbf16>
    %c0_8 = arith.constant 0 : index
    %c0_9 = arith.constant 0 : index
    %c0_10 = arith.constant 0 : index
    %13 = vector.load %arg5[%c0_8, %c0_9, %c0_10] : memref<1x16x4xbf16, #tpu.memory_space<vmem>>, vector<1x16x4xbf16>
    %14 = vector.shape_cast %13 : vector<1x16x4xbf16> to vector<16x4xbf16>
    %15 = vector.shape_cast %12 : vector<16x4xbf16> to vector<1x16x4xbf16>
    tpu.vector_store %arg5[%c0_8, %c0_9, %c0_10], %15 {strides = array<i32>} : memref<1x16x4xbf16, #tpu.memory_space<vmem>>, vector<1x16x4xbf16>,
    return
  }
  func.func @transform_0(%arg0: i32, %arg1: i32) -> (i32, i32, i32) {
    %c0_i32 = arith.constant 0 : i32
    %c0_i32_0 = arith.constant 0 : i32
    return %arg0, %c0_i32, %arg1 : i32, i32, i32
  }
  func.func @transform_1(%arg0: i32, %arg1: i32) -> (i32, i32) {
    %c0_i32 = arith.constant 0 : i32
    %c0_i32_0 = arith.constant 0 : i32
    %c0_i32_1 = arith.constant 0 : i32
    return %c0_i32, %c0_i32_0 : i32, i32
  }
  func.func @transform_2(%arg0: i32, %arg1: i32) -> (i32, i32) {
    %c0_i32 = arith.constant 0 : i32
    %c0_i32_0 = arith.constant 0 : i32
    %c0_i32_1 = arith.constant 0 : i32
    return %c0_i32, %c0_i32_0 : i32, i32
  }
  func.func @transform_3(%arg0: i32, %arg1: i32) -> (i32, i32, i32) {
    %c0_i32 = arith.constant 0 : i32
    %c0_i32_0 = arith.constant 0 : i32
    return %arg0, %c0_i32, %arg1 : i32, i32, i32
  }
}

module attributes {stable_mosaic.version = 11 : i64} {
  func.func @_conv_kernel(%arg0: i32, %arg1: i32, %arg2: memref<1x256x1xbf16, #tpu.memory_space<vmem>>, %arg3: memref<16x256xbf16, #tpu.memory_space<vmem>>, %arg4: memref<16x1xf32, #tpu.memory_space<vmem>>, %arg5: memref<1x16x1xbf16, #tpu.memory_space<vmem>>) attributes {dimension_semantics = [#tpu.dimension_semantics<parallel>, #tpu.dimension_semantics<parallel>], iteration_bounds = array<i64: 2, 1>, scalar_prefetch = 0 : i64, scratch_operands = 0 : i64, tpu.core_type = #tpu.core_type<tc>, window_params = [{transform_indices = @transform_0, window_bounds = array<i64: 1, 256, 1>}, {pipeline_mode = #tpu.pipeline_mode<synchronous>, transform_indices = @transform_1, window_bounds = array<i64: 16, 256>}, {pipeline_mode = #tpu.pipeline_mode<synchronous>, transform_indices = @transform_2, window_bounds = array<i64: 16, 1>}, {transform_indices = @transform_3, window_bounds = array<i64: 1, 16, 1>}]} {
    %c0 = arith.constant 0 : index
    %c0_0 = arith.constant 0 : index
    %0 = vector.load %arg3[%c0, %c0_0] : memref<16x256xbf16, #tpu.memory_space<vmem>>, vector<16x256xbf16>
    %c0_1 = arith.constant 0 : index
    %c0_2 = arith.constant 0 : index
    %c0_3 = arith.constant 0 : index
    %1 = vector.load %arg2[%c0_1, %c0_2, %c0_3] : memref<1x256x1xbf16, #tpu.memory_space<vmem>>, vector<1x256x1xbf16>
    %2 = vector.shape_cast %1 : vector<1x256x1xbf16> to vector<256x1xbf16>
    %cst = arith.constant dense<0.000000e+00> : vector<16x1xf32>
    %3 = tpu.matmul %0, %2, %cst {dimension_numbers = #tpu.dot_dimension_numbers<[1], [0], [0], [1], [0, 0, 1, 1], [], []>} : vector<16x256xbf16>, vector<256x1xbf16>, vector<16x1xf32> -> vector<16x1xf32>
    %c0_4 = arith.constant 0 : index
    %c0_5 = arith.constant 0 : index
    %4 = vector.load %arg4[%c0_4, %c0_5] : memref<16x1xf32, #tpu.memory_space<vmem>>, vector<16x1xf32>
    %5 = arith.addf %3, %4 : vector<16x1xf32>
    %cst_6 = arith.constant 0.000000e+00 : f32
    %6 = vector.broadcast %cst_6 : f32 to vector<16x1xf32>
    %7 = arith.cmpf oge, %5, %6 : vector<16x1xf32>
    %cst_7 = arith.constant 2.000000e-01 : f32
    %8 = vector.broadcast %cst_7 : f32 to vector<16x1xf32>
    %9 = arith.mulf %8, %5 : vector<16x1xf32>
    %10 = arith.select %7, %5, %9 : vector<16x1xi1>, vector<16x1xf32>
    %11 = arith.truncf %10 : vector<16x1xf32> to vector<16x1xbf16>
    %c0_8 = arith.constant 0 : index
    %c0_9 = arith.constant 0 : index
    %c0_10 = arith.constant 0 : index
    %12 = vector.load %arg5[%c0_8, %c0_9, %c0_10] : memref<1x16x1xbf16, #tpu.memory_space<vmem>>, vector<1x16x1xbf16>
    %13 = vector.shape_cast %12 : vector<1x16x1xbf16> to vector<16x1xbf16>
    %14 = vector.shape_cast %11 : vector<16x1xbf16> to vector<1x16x1xbf16>
    tpu.vector_store %arg5[%c0_8, %c0_9, %c0_10], %14 {strides = array<i32>} : memref<1x16x1xbf16, #tpu.memory_space<vmem>>, vector<1x16x1xbf16>,
    return
  }
  func.func @transform_0(%arg0: i32, %arg1: i32) -> (i32, i32, i32) {
    %c0_i32 = arith.constant 0 : i32
    %c0_i32_0 = arith.constant 0 : i32
    return %arg0, %c0_i32, %arg1 : i32, i32, i32
  }
  func.func @transform_1(%arg0: i32, %arg1: i32) -> (i32, i32) {
    %c0_i32 = arith.constant 0 : i32
    %c0_i32_0 = arith.constant 0 : i32
    %c0_i32_1 = arith.constant 0 : i32
    return %c0_i32, %c0_i32_0 : i32, i32
  }
  func.func @transform_2(%arg0: i32, %arg1: i32) -> (i32, i32) {
    %c0_i32 = arith.constant 0 : i32
    %c0_i32_0 = arith.constant 0 : i32
    %c0_i32_1 = arith.constant 0 : i32
    return %c0_i32, %c0_i32_0 : i32, i32
  }
  func.func @transform_3(%arg0: i32, %arg1: i32) -> (i32, i32, i32) {
    %c0_i32 = arith.constant 0 : i32
    %c0_i32_0 = arith.constant 0 : i32
    return %arg0, %c0_i32, %arg1 : i32, i32, i32
  }
}

module attributes {stable_mosaic.version = 11 : i64} {
  func.func @_conv_kernel(%arg0: i32, %arg1: i32, %arg2: memref<1x144x1xbf16, #tpu.memory_space<vmem>>, %arg3: memref<16x144xbf16, #tpu.memory_space<vmem>>, %arg4: memref<16x1xf32, #tpu.memory_space<vmem>>, %arg5: memref<1x16x1xbf16, #tpu.memory_space<vmem>>) attributes {dimension_semantics = [#tpu.dimension_semantics<parallel>, #tpu.dimension_semantics<parallel>], iteration_bounds = array<i64: 2, 1>, scalar_prefetch = 0 : i64, scratch_operands = 0 : i64, tpu.core_type = #tpu.core_type<tc>, window_params = [{transform_indices = @transform_0, window_bounds = array<i64: 1, 144, 1>}, {pipeline_mode = #tpu.pipeline_mode<synchronous>, transform_indices = @transform_1, window_bounds = array<i64: 16, 144>}, {pipeline_mode = #tpu.pipeline_mode<synchronous>, transform_indices = @transform_2, window_bounds = array<i64: 16, 1>}, {transform_indices = @transform_3, window_bounds = array<i64: 1, 16, 1>}]} {
    %c0 = arith.constant 0 : index
    %c0_0 = arith.constant 0 : index
    %0 = vector.load %arg3[%c0, %c0_0] : memref<16x144xbf16, #tpu.memory_space<vmem>>, vector<16x144xbf16>
    %c0_1 = arith.constant 0 : index
    %c0_2 = arith.constant 0 : index
    %c0_3 = arith.constant 0 : index
    %1 = vector.load %arg2[%c0_1, %c0_2, %c0_3] : memref<1x144x1xbf16, #tpu.memory_space<vmem>>, vector<1x144x1xbf16>
    %2 = vector.shape_cast %1 : vector<1x144x1xbf16> to vector<144x1xbf16>
    %cst = arith.constant dense<0.000000e+00> : vector<16x1xf32>
    %3 = tpu.matmul %0, %2, %cst {dimension_numbers = #tpu.dot_dimension_numbers<[1], [0], [0], [1], [0, 0, 1, 1], [], []>} : vector<16x144xbf16>, vector<144x1xbf16>, vector<16x1xf32> -> vector<16x1xf32>
    %c0_4 = arith.constant 0 : index
    %c0_5 = arith.constant 0 : index
    %4 = vector.load %arg4[%c0_4, %c0_5] : memref<16x1xf32, #tpu.memory_space<vmem>>, vector<16x1xf32>
    %5 = arith.addf %3, %4 : vector<16x1xf32>
    %cst_6 = arith.constant 0.000000e+00 : f32
    %6 = vector.broadcast %cst_6 : f32 to vector<16x1xf32>
    %7 = arith.cmpf oge, %5, %6 : vector<16x1xf32>
    %cst_7 = arith.constant 2.000000e-01 : f32
    %8 = vector.broadcast %cst_7 : f32 to vector<16x1xf32>
    %9 = arith.mulf %8, %5 : vector<16x1xf32>
    %10 = arith.select %7, %5, %9 : vector<16x1xi1>, vector<16x1xf32>
    %11 = arith.truncf %10 : vector<16x1xf32> to vector<16x1xbf16>
    %c0_8 = arith.constant 0 : index
    %c0_9 = arith.constant 0 : index
    %c0_10 = arith.constant 0 : index
    %12 = vector.load %arg5[%c0_8, %c0_9, %c0_10] : memref<1x16x1xbf16, #tpu.memory_space<vmem>>, vector<1x16x1xbf16>
    %13 = vector.shape_cast %12 : vector<1x16x1xbf16> to vector<16x1xbf16>
    %14 = vector.shape_cast %11 : vector<16x1xbf16> to vector<1x16x1xbf16>
    tpu.vector_store %arg5[%c0_8, %c0_9, %c0_10], %14 {strides = array<i32>} : memref<1x16x1xbf16, #tpu.memory_space<vmem>>, vector<1x16x1xbf16>,
    return
  }
  func.func @transform_0(%arg0: i32, %arg1: i32) -> (i32, i32, i32) {
    %c0_i32 = arith.constant 0 : i32
    %c0_i32_0 = arith.constant 0 : i32
    return %arg0, %c0_i32, %arg1 : i32, i32, i32
  }
  func.func @transform_1(%arg0: i32, %arg1: i32) -> (i32, i32) {
    %c0_i32 = arith.constant 0 : i32
    %c0_i32_0 = arith.constant 0 : i32
    %c0_i32_1 = arith.constant 0 : i32
    return %c0_i32, %c0_i32_0 : i32, i32
  }
  func.func @transform_2(%arg0: i32, %arg1: i32) -> (i32, i32) {
    %c0_i32 = arith.constant 0 : i32
    %c0_i32_0 = arith.constant 0 : i32
    %c0_i32_1 = arith.constant 0 : i32
    return %c0_i32, %c0_i32_0 : i32, i32
  }
  func.func @transform_3(%arg0: i32, %arg1: i32) -> (i32, i32, i32) {
    %c0_i32 = arith.constant 0 : i32
    %c0_i32_0 = arith.constant 0 : i32
    return %arg0, %c0_i32, %arg1 : i32, i32, i32
  }
}

module attributes {stable_mosaic.version = 11 : i64} {
  func.func @_conv_kernel(%arg0: i32, %arg1: i32, %arg2: memref<1x144x4xbf16, #tpu.memory_space<vmem>>, %arg3: memref<1x144x4xbf16, #tpu.memory_space<vmem>>, %arg4: memref<16x144xbf16, #tpu.memory_space<vmem>>, %arg5: memref<16x144xbf16, #tpu.memory_space<vmem>>, %arg6: memref<16x1xf32, #tpu.memory_space<vmem>>, %arg7: memref<1x16x4xbf16, #tpu.memory_space<vmem>>) attributes {dimension_semantics = [#tpu.dimension_semantics<parallel>, #tpu.dimension_semantics<parallel>], iteration_bounds = array<i64: 2, 1>, scalar_prefetch = 0 : i64, scratch_operands = 0 : i64, tpu.core_type = #tpu.core_type<tc>, window_params = [{transform_indices = @transform_0, window_bounds = array<i64: 1, 144, 4>}, {transform_indices = @transform_1, window_bounds = array<i64: 1, 144, 4>}, {pipeline_mode = #tpu.pipeline_mode<synchronous>, transform_indices = @transform_2, window_bounds = array<i64: 16, 144>}, {pipeline_mode = #tpu.pipeline_mode<synchronous>, transform_indices = @transform_3, window_bounds = array<i64: 16, 144>}, {pipeline_mode = #tpu.pipeline_mode<synchronous>, transform_indices = @transform_4, window_bounds = array<i64: 16, 1>}, {transform_indices = @transform_5, window_bounds = array<i64: 1, 16, 4>}]} {
    %c0 = arith.constant 0 : index
    %c0_0 = arith.constant 0 : index
    %0 = vector.load %arg4[%c0, %c0_0] : memref<16x144xbf16, #tpu.memory_space<vmem>>, vector<16x144xbf16>
    %c0_1 = arith.constant 0 : index
    %c0_2 = arith.constant 0 : index
    %c0_3 = arith.constant 0 : index
    %1 = vector.load %arg2[%c0_1, %c0_2, %c0_3] : memref<1x144x4xbf16, #tpu.memory_space<vmem>>, vector<1x144x4xbf16>
    %2 = vector.shape_cast %1 : vector<1x144x4xbf16> to vector<144x4xbf16>
    %cst = arith.constant dense<0.000000e+00> : vector<16x4xf32>
    %3 = tpu.matmul %0, %2, %cst {dimension_numbers = #tpu.dot_dimension_numbers<[1], [0], [0], [1], [0, 0, 1, 1], [], []>} : vector<16x144xbf16>, vector<144x4xbf16>, vector<16x4xf32> -> vector<16x4xf32>
    %c0_4 = arith.constant 0 : index
    %c0_5 = arith.constant 0 : index
    %4 = vector.load %arg5[%c0_4, %c0_5] : memref<16x144xbf16, #tpu.memory_space<vmem>>, vector<16x144xbf16>
    %c0_6 = arith.constant 0 : index
    %c0_7 = arith.constant 0 : index
    %c0_8 = arith.constant 0 : index
    %5 = vector.load %arg3[%c0_6, %c0_7, %c0_8] : memref<1x144x4xbf16, #tpu.memory_space<vmem>>, vector<1x144x4xbf16>
    %6 = vector.shape_cast %5 : vector<1x144x4xbf16> to vector<144x4xbf16>
    %cst_9 = arith.constant dense<0.000000e+00> : vector<16x4xf32>
    %7 = tpu.matmul %4, %6, %cst_9 {dimension_numbers = #tpu.dot_dimension_numbers<[1], [0], [0], [1], [0, 0, 1, 1], [], []>} : vector<16x144xbf16>, vector<144x4xbf16>, vector<16x4xf32> -> vector<16x4xf32>
    %8 = arith.addf %3, %7 : vector<16x4xf32>
    %c0_10 = arith.constant 0 : index
    %c0_11 = arith.constant 0 : index
    %9 = vector.load %arg6[%c0_10, %c0_11] : memref<16x1xf32, #tpu.memory_space<vmem>>, vector<16x1xf32>
    %10 = vector.broadcast %9 : vector<16x1xf32> to vector<16x4xf32>
    %11 = arith.addf %8, %10 : vector<16x4xf32>
    %cst_12 = arith.constant 0.000000e+00 : f32
    %12 = vector.broadcast %cst_12 : f32 to vector<16x4xf32>
    %13 = arith.cmpf oge, %11, %12 : vector<16x4xf32>
    %cst_13 = arith.constant 2.000000e-01 : f32
    %14 = vector.broadcast %cst_13 : f32 to vector<16x4xf32>
    %15 = arith.mulf %14, %11 : vector<16x4xf32>
    %16 = arith.select %13, %11, %15 : vector<16x4xi1>, vector<16x4xf32>
    %17 = arith.truncf %16 : vector<16x4xf32> to vector<16x4xbf16>
    %c0_14 = arith.constant 0 : index
    %c0_15 = arith.constant 0 : index
    %c0_16 = arith.constant 0 : index
    %18 = vector.load %arg7[%c0_14, %c0_15, %c0_16] : memref<1x16x4xbf16, #tpu.memory_space<vmem>>, vector<1x16x4xbf16>
    %19 = vector.shape_cast %18 : vector<1x16x4xbf16> to vector<16x4xbf16>
    %20 = vector.shape_cast %17 : vector<16x4xbf16> to vector<1x16x4xbf16>
    tpu.vector_store %arg7[%c0_14, %c0_15, %c0_16], %20 {strides = array<i32>} : memref<1x16x4xbf16, #tpu.memory_space<vmem>>, vector<1x16x4xbf16>,
    return
  }
  func.func @transform_0(%arg0: i32, %arg1: i32) -> (i32, i32, i32) {
    %c0_i32 = arith.constant 0 : i32
    %c0_i32_0 = arith.constant 0 : i32
    return %arg0, %c0_i32, %arg1 : i32, i32, i32
  }
  func.func @transform_1(%arg0: i32, %arg1: i32) -> (i32, i32, i32) {
    %c0_i32 = arith.constant 0 : i32
    %c0_i32_0 = arith.constant 0 : i32
    return %arg0, %c0_i32, %arg1 : i32, i32, i32
  }
  func.func @transform_2(%arg0: i32, %arg1: i32) -> (i32, i32) {
    %c0_i32 = arith.constant 0 : i32
    %c0_i32_0 = arith.constant 0 : i32
    %c0_i32_1 = arith.constant 0 : i32
    return %c0_i32, %c0_i32_0 : i32, i32
  }
  func.func @transform_3(%arg0: i32, %arg1: i32) -> (i32, i32) {
    %c0_i32 = arith.constant 0 : i32
    %c0_i32_0 = arith.constant 0 : i32
    %c0_i32_1 = arith.constant 0 : i32
    return %c0_i32, %c0_i32_0 : i32, i32
  }
  func.func @transform_4(%arg0: i32, %arg1: i32) -> (i32, i32) {
    %c0_i32 = arith.constant 0 : i32
    %c0_i32_0 = arith.constant 0 : i32
    %c0_i32_1 = arith.constant 0 : i32
    return %c0_i32, %c0_i32_0 : i32, i32
  }
  func.func @transform_5(%arg0: i32, %arg1: i32) -> (i32, i32, i32) {
    %c0_i32 = arith.constant 0 : i32
    %c0_i32_0 = arith.constant 0 : i32
    return %arg0, %c0_i32, %arg1 : i32, i32, i32
  }
}

module attributes {stable_mosaic.version = 11 : i64} {
  func.func @_conv_kernel(%arg0: i32, %arg1: i32, %arg2: memref<1x144x16xbf16, #tpu.memory_space<vmem>>, %arg3: memref<1x144x16xbf16, #tpu.memory_space<vmem>>, %arg4: memref<16x144xbf16, #tpu.memory_space<vmem>>, %arg5: memref<16x144xbf16, #tpu.memory_space<vmem>>, %arg6: memref<16x1xf32, #tpu.memory_space<vmem>>, %arg7: memref<1x16x16xbf16, #tpu.memory_space<vmem>>) attributes {dimension_semantics = [#tpu.dimension_semantics<parallel>, #tpu.dimension_semantics<parallel>], iteration_bounds = array<i64: 2, 1>, scalar_prefetch = 0 : i64, scratch_operands = 0 : i64, tpu.core_type = #tpu.core_type<tc>, window_params = [{transform_indices = @transform_0, window_bounds = array<i64: 1, 144, 16>}, {transform_indices = @transform_1, window_bounds = array<i64: 1, 144, 16>}, {pipeline_mode = #tpu.pipeline_mode<synchronous>, transform_indices = @transform_2, window_bounds = array<i64: 16, 144>}, {pipeline_mode = #tpu.pipeline_mode<synchronous>, transform_indices = @transform_3, window_bounds = array<i64: 16, 144>}, {pipeline_mode = #tpu.pipeline_mode<synchronous>, transform_indices = @transform_4, window_bounds = array<i64: 16, 1>}, {transform_indices = @transform_5, window_bounds = array<i64: 1, 16, 16>}]} {
    %c0 = arith.constant 0 : index
    %c0_0 = arith.constant 0 : index
    %0 = vector.load %arg4[%c0, %c0_0] : memref<16x144xbf16, #tpu.memory_space<vmem>>, vector<16x144xbf16>
    %c0_1 = arith.constant 0 : index
    %c0_2 = arith.constant 0 : index
    %c0_3 = arith.constant 0 : index
    %1 = vector.load %arg2[%c0_1, %c0_2, %c0_3] : memref<1x144x16xbf16, #tpu.memory_space<vmem>>, vector<1x144x16xbf16>
    %2 = vector.shape_cast %1 : vector<1x144x16xbf16> to vector<144x16xbf16>
    %cst = arith.constant dense<0.000000e+00> : vector<16x16xf32>
    %3 = tpu.matmul %0, %2, %cst {dimension_numbers = #tpu.dot_dimension_numbers<[1], [0], [0], [1], [0, 0, 1, 1], [], []>} : vector<16x144xbf16>, vector<144x16xbf16>, vector<16x16xf32> -> vector<16x16xf32>
    %c0_4 = arith.constant 0 : index
    %c0_5 = arith.constant 0 : index
    %4 = vector.load %arg5[%c0_4, %c0_5] : memref<16x144xbf16, #tpu.memory_space<vmem>>, vector<16x144xbf16>
    %c0_6 = arith.constant 0 : index
    %c0_7 = arith.constant 0 : index
    %c0_8 = arith.constant 0 : index
    %5 = vector.load %arg3[%c0_6, %c0_7, %c0_8] : memref<1x144x16xbf16, #tpu.memory_space<vmem>>, vector<1x144x16xbf16>
    %6 = vector.shape_cast %5 : vector<1x144x16xbf16> to vector<144x16xbf16>
    %cst_9 = arith.constant dense<0.000000e+00> : vector<16x16xf32>
    %7 = tpu.matmul %4, %6, %cst_9 {dimension_numbers = #tpu.dot_dimension_numbers<[1], [0], [0], [1], [0, 0, 1, 1], [], []>} : vector<16x144xbf16>, vector<144x16xbf16>, vector<16x16xf32> -> vector<16x16xf32>
    %8 = arith.addf %3, %7 : vector<16x16xf32>
    %c0_10 = arith.constant 0 : index
    %c0_11 = arith.constant 0 : index
    %9 = vector.load %arg6[%c0_10, %c0_11] : memref<16x1xf32, #tpu.memory_space<vmem>>, vector<16x1xf32>
    %10 = vector.broadcast %9 : vector<16x1xf32> to vector<16x16xf32>
    %11 = arith.addf %8, %10 : vector<16x16xf32>
    %cst_12 = arith.constant 0.000000e+00 : f32
    %12 = vector.broadcast %cst_12 : f32 to vector<16x16xf32>
    %13 = arith.cmpf oge, %11, %12 : vector<16x16xf32>
    %cst_13 = arith.constant 2.000000e-01 : f32
    %14 = vector.broadcast %cst_13 : f32 to vector<16x16xf32>
    %15 = arith.mulf %14, %11 : vector<16x16xf32>
    %16 = arith.select %13, %11, %15 : vector<16x16xi1>, vector<16x16xf32>
    %17 = arith.truncf %16 : vector<16x16xf32> to vector<16x16xbf16>
    %c0_14 = arith.constant 0 : index
    %c0_15 = arith.constant 0 : index
    %c0_16 = arith.constant 0 : index
    %18 = vector.load %arg7[%c0_14, %c0_15, %c0_16] : memref<1x16x16xbf16, #tpu.memory_space<vmem>>, vector<1x16x16xbf16>
    %19 = vector.shape_cast %18 : vector<1x16x16xbf16> to vector<16x16xbf16>
    %20 = vector.shape_cast %17 : vector<16x16xbf16> to vector<1x16x16xbf16>
    tpu.vector_store %arg7[%c0_14, %c0_15, %c0_16], %20 {strides = array<i32>} : memref<1x16x16xbf16, #tpu.memory_space<vmem>>, vector<1x16x16xbf16>,
    return
  }
  func.func @transform_0(%arg0: i32, %arg1: i32) -> (i32, i32, i32) {
    %c0_i32 = arith.constant 0 : i32
    %c0_i32_0 = arith.constant 0 : i32
    return %arg0, %c0_i32, %arg1 : i32, i32, i32
  }
  func.func @transform_1(%arg0: i32, %arg1: i32) -> (i32, i32, i32) {
    %c0_i32 = arith.constant 0 : i32
    %c0_i32_0 = arith.constant 0 : i32
    return %arg0, %c0_i32, %arg1 : i32, i32, i32
  }
  func.func @transform_2(%arg0: i32, %arg1: i32) -> (i32, i32) {
    %c0_i32 = arith.constant 0 : i32
    %c0_i32_0 = arith.constant 0 : i32
    %c0_i32_1 = arith.constant 0 : i32
    return %c0_i32, %c0_i32_0 : i32, i32
  }
  func.func @transform_3(%arg0: i32, %arg1: i32) -> (i32, i32) {
    %c0_i32 = arith.constant 0 : i32
    %c0_i32_0 = arith.constant 0 : i32
    %c0_i32_1 = arith.constant 0 : i32
    return %c0_i32, %c0_i32_0 : i32, i32
  }
  func.func @transform_4(%arg0: i32, %arg1: i32) -> (i32, i32) {
    %c0_i32 = arith.constant 0 : i32
    %c0_i32_0 = arith.constant 0 : i32
    %c0_i32_1 = arith.constant 0 : i32
    return %c0_i32, %c0_i32_0 : i32, i32
  }
  func.func @transform_5(%arg0: i32, %arg1: i32) -> (i32, i32, i32) {
    %c0_i32 = arith.constant 0 : i32
    %c0_i32_0 = arith.constant 0 : i32
    return %arg0, %c0_i32, %arg1 : i32, i32, i32
  }
}

module attributes {stable_mosaic.version = 11 : i64} {
  func.func @_conv_kernel(%arg0: i32, %arg1: i32, %arg2: memref<1x144x64xbf16, #tpu.memory_space<vmem>>, %arg3: memref<1x72x64xbf16, #tpu.memory_space<vmem>>, %arg4: memref<16x144xbf16, #tpu.memory_space<vmem>>, %arg5: memref<16x72xbf16, #tpu.memory_space<vmem>>, %arg6: memref<16x1xf32, #tpu.memory_space<vmem>>, %arg7: memref<1x16x64xbf16, #tpu.memory_space<vmem>>) attributes {dimension_semantics = [#tpu.dimension_semantics<parallel>, #tpu.dimension_semantics<parallel>], iteration_bounds = array<i64: 2, 1>, scalar_prefetch = 0 : i64, scratch_operands = 0 : i64, tpu.core_type = #tpu.core_type<tc>, window_params = [{transform_indices = @transform_0, window_bounds = array<i64: 1, 144, 64>}, {transform_indices = @transform_1, window_bounds = array<i64: 1, 72, 64>}, {pipeline_mode = #tpu.pipeline_mode<synchronous>, transform_indices = @transform_2, window_bounds = array<i64: 16, 144>}, {pipeline_mode = #tpu.pipeline_mode<synchronous>, transform_indices = @transform_3, window_bounds = array<i64: 16, 72>}, {pipeline_mode = #tpu.pipeline_mode<synchronous>, transform_indices = @transform_4, window_bounds = array<i64: 16, 1>}, {transform_indices = @transform_5, window_bounds = array<i64: 1, 16, 64>}]} {
    %c0 = arith.constant 0 : index
    %c0_0 = arith.constant 0 : index
    %0 = vector.load %arg4[%c0, %c0_0] : memref<16x144xbf16, #tpu.memory_space<vmem>>, vector<16x144xbf16>
    %c0_1 = arith.constant 0 : index
    %c0_2 = arith.constant 0 : index
    %c0_3 = arith.constant 0 : index
    %1 = vector.load %arg2[%c0_1, %c0_2, %c0_3] : memref<1x144x64xbf16, #tpu.memory_space<vmem>>, vector<1x144x64xbf16>
    %2 = vector.shape_cast %1 : vector<1x144x64xbf16> to vector<144x64xbf16>
    %cst = arith.constant dense<0.000000e+00> : vector<16x64xf32>
    %3 = tpu.matmul %0, %2, %cst {dimension_numbers = #tpu.dot_dimension_numbers<[1], [0], [0], [1], [0, 0, 1, 1], [], []>} : vector<16x144xbf16>, vector<144x64xbf16>, vector<16x64xf32> -> vector<16x64xf32>
    %c0_4 = arith.constant 0 : index
    %c0_5 = arith.constant 0 : index
    %4 = vector.load %arg5[%c0_4, %c0_5] : memref<16x72xbf16, #tpu.memory_space<vmem>>, vector<16x72xbf16>
    %c0_6 = arith.constant 0 : index
    %c0_7 = arith.constant 0 : index
    %c0_8 = arith.constant 0 : index
    %5 = vector.load %arg3[%c0_6, %c0_7, %c0_8] : memref<1x72x64xbf16, #tpu.memory_space<vmem>>, vector<1x72x64xbf16>
    %6 = vector.shape_cast %5 : vector<1x72x64xbf16> to vector<72x64xbf16>
    %cst_9 = arith.constant dense<0.000000e+00> : vector<16x64xf32>
    %7 = tpu.matmul %4, %6, %cst_9 {dimension_numbers = #tpu.dot_dimension_numbers<[1], [0], [0], [1], [0, 0, 1, 1], [], []>} : vector<16x72xbf16>, vector<72x64xbf16>, vector<16x64xf32> -> vector<16x64xf32>
    %8 = arith.addf %3, %7 : vector<16x64xf32>
    %c0_10 = arith.constant 0 : index
    %c0_11 = arith.constant 0 : index
    %9 = vector.load %arg6[%c0_10, %c0_11] : memref<16x1xf32, #tpu.memory_space<vmem>>, vector<16x1xf32>
    %10 = vector.broadcast %9 : vector<16x1xf32> to vector<16x64xf32>
    %11 = arith.addf %8, %10 : vector<16x64xf32>
    %cst_12 = arith.constant 0.000000e+00 : f32
    %12 = vector.broadcast %cst_12 : f32 to vector<16x64xf32>
    %13 = arith.cmpf oge, %11, %12 : vector<16x64xf32>
    %cst_13 = arith.constant 2.000000e-01 : f32
    %14 = vector.broadcast %cst_13 : f32 to vector<16x64xf32>
    %15 = arith.mulf %14, %11 : vector<16x64xf32>
    %16 = arith.select %13, %11, %15 : vector<16x64xi1>, vector<16x64xf32>
    %17 = arith.truncf %16 : vector<16x64xf32> to vector<16x64xbf16>
    %c0_14 = arith.constant 0 : index
    %c0_15 = arith.constant 0 : index
    %c0_16 = arith.constant 0 : index
    %18 = vector.load %arg7[%c0_14, %c0_15, %c0_16] : memref<1x16x64xbf16, #tpu.memory_space<vmem>>, vector<1x16x64xbf16>
    %19 = vector.shape_cast %18 : vector<1x16x64xbf16> to vector<16x64xbf16>
    %20 = vector.shape_cast %17 : vector<16x64xbf16> to vector<1x16x64xbf16>
    tpu.vector_store %arg7[%c0_14, %c0_15, %c0_16], %20 {strides = array<i32>} : memref<1x16x64xbf16, #tpu.memory_space<vmem>>, vector<1x16x64xbf16>,
    return
  }
  func.func @transform_0(%arg0: i32, %arg1: i32) -> (i32, i32, i32) {
    %c0_i32 = arith.constant 0 : i32
    %c0_i32_0 = arith.constant 0 : i32
    return %arg0, %c0_i32, %arg1 : i32, i32, i32
  }
  func.func @transform_1(%arg0: i32, %arg1: i32) -> (i32, i32, i32) {
    %c0_i32 = arith.constant 0 : i32
    %c0_i32_0 = arith.constant 0 : i32
    return %arg0, %c0_i32, %arg1 : i32, i32, i32
  }
  func.func @transform_2(%arg0: i32, %arg1: i32) -> (i32, i32) {
    %c0_i32 = arith.constant 0 : i32
    %c0_i32_0 = arith.constant 0 : i32
    %c0_i32_1 = arith.constant 0 : i32
    return %c0_i32, %c0_i32_0 : i32, i32
  }
  func.func @transform_3(%arg0: i32, %arg1: i32) -> (i32, i32) {
    %c0_i32 = arith.constant 0 : i32
    %c0_i32_0 = arith.constant 0 : i32
    %c0_i32_1 = arith.constant 0 : i32
    return %c0_i32, %c0_i32_0 : i32, i32
  }
  func.func @transform_4(%arg0: i32, %arg1: i32) -> (i32, i32) {
    %c0_i32 = arith.constant 0 : i32
    %c0_i32_0 = arith.constant 0 : i32
    %c0_i32_1 = arith.constant 0 : i32
    return %c0_i32, %c0_i32_0 : i32, i32
  }
  func.func @transform_5(%arg0: i32, %arg1: i32) -> (i32, i32, i32) {
    %c0_i32 = arith.constant 0 : i32
    %c0_i32_0 = arith.constant 0 : i32
    return %arg0, %c0_i32, %arg1 : i32, i32, i32
  }
}

module attributes {stable_mosaic.version = 11 : i64} {
  func.func @_conv_kernel(%arg0: i32, %arg1: i32, %arg2: memref<1x144x64xbf16, #tpu.memory_space<vmem>>, %arg3: memref<8x144xbf16, #tpu.memory_space<vmem>>, %arg4: memref<8x1xf32, #tpu.memory_space<vmem>>, %arg5: memref<1x8x64xbf16, #tpu.memory_space<vmem>>) attributes {dimension_semantics = [#tpu.dimension_semantics<parallel>, #tpu.dimension_semantics<parallel>], iteration_bounds = array<i64: 2, 1>, scalar_prefetch = 0 : i64, scratch_operands = 0 : i64, tpu.core_type = #tpu.core_type<tc>, window_params = [{transform_indices = @transform_0, window_bounds = array<i64: 1, 144, 64>}, {pipeline_mode = #tpu.pipeline_mode<synchronous>, transform_indices = @transform_1, window_bounds = array<i64: 8, 144>}, {pipeline_mode = #tpu.pipeline_mode<synchronous>, transform_indices = @transform_2, window_bounds = array<i64: 8, 1>}, {transform_indices = @transform_3, window_bounds = array<i64: 1, 8, 64>}]} {
    %c0 = arith.constant 0 : index
    %c0_0 = arith.constant 0 : index
    %0 = vector.load %arg3[%c0, %c0_0] : memref<8x144xbf16, #tpu.memory_space<vmem>>, vector<8x144xbf16>
    %c0_1 = arith.constant 0 : index
    %c0_2 = arith.constant 0 : index
    %c0_3 = arith.constant 0 : index
    %1 = vector.load %arg2[%c0_1, %c0_2, %c0_3] : memref<1x144x64xbf16, #tpu.memory_space<vmem>>, vector<1x144x64xbf16>
    %2 = vector.shape_cast %1 : vector<1x144x64xbf16> to vector<144x64xbf16>
    %cst = arith.constant dense<0.000000e+00> : vector<8x64xf32>
    %3 = tpu.matmul %0, %2, %cst {dimension_numbers = #tpu.dot_dimension_numbers<[1], [0], [0], [1], [0, 0, 1, 1], [], []>} : vector<8x144xbf16>, vector<144x64xbf16>, vector<8x64xf32> -> vector<8x64xf32>
    %c0_4 = arith.constant 0 : index
    %c0_5 = arith.constant 0 : index
    %4 = vector.load %arg4[%c0_4, %c0_5] : memref<8x1xf32, #tpu.memory_space<vmem>>, vector<8x1xf32>
    %5 = vector.broadcast %4 : vector<8x1xf32> to vector<8x64xf32>
    %6 = arith.addf %3, %5 : vector<8x64xf32>
    %cst_6 = arith.constant 0.000000e+00 : f32
    %7 = vector.broadcast %cst_6 : f32 to vector<8x64xf32>
    %8 = arith.cmpf oge, %6, %7 : vector<8x64xf32>
    %cst_7 = arith.constant 2.000000e-01 : f32
    %9 = vector.broadcast %cst_7 : f32 to vector<8x64xf32>
    %10 = arith.mulf %9, %6 : vector<8x64xf32>
    %11 = arith.select %8, %6, %10 : vector<8x64xi1>, vector<8x64xf32>
    %12 = arith.truncf %11 : vector<8x64xf32> to vector<8x64xbf16>
    %c0_8 = arith.constant 0 : index
    %c0_9 = arith.constant 0 : index
    %c0_10 = arith.constant 0 : index
    %13 = vector.load %arg5[%c0_8, %c0_9, %c0_10] : memref<1x8x64xbf16, #tpu.memory_space<vmem>>, vector<1x8x64xbf16>
    %14 = vector.shape_cast %13 : vector<1x8x64xbf16> to vector<8x64xbf16>
    %15 = vector.shape_cast %12 : vector<8x64xbf16> to vector<1x8x64xbf16>
    tpu.vector_store %arg5[%c0_8, %c0_9, %c0_10], %15 {strides = array<i32>} : memref<1x8x64xbf16, #tpu.memory_space<vmem>>, vector<1x8x64xbf16>,
    return
  }
  func.func @transform_0(%arg0: i32, %arg1: i32) -> (i32, i32, i32) {
    %c0_i32 = arith.constant 0 : i32
    %c0_i32_0 = arith.constant 0 : i32
    return %arg0, %c0_i32, %arg1 : i32, i32, i32
  }
  func.func @transform_1(%arg0: i32, %arg1: i32) -> (i32, i32) {
    %c0_i32 = arith.constant 0 : i32
    %c0_i32_0 = arith.constant 0 : i32
    %c0_i32_1 = arith.constant 0 : i32
    return %c0_i32, %c0_i32_0 : i32, i32
  }
  func.func @transform_2(%arg0: i32, %arg1: i32) -> (i32, i32) {
    %c0_i32 = arith.constant 0 : i32
    %c0_i32_0 = arith.constant 0 : i32
    %c0_i32_1 = arith.constant 0 : i32
    return %c0_i32, %c0_i32_0 : i32, i32
  }
  func.func @transform_3(%arg0: i32, %arg1: i32) -> (i32, i32, i32) {
    %c0_i32 = arith.constant 0 : i32
    %c0_i32_0 = arith.constant 0 : i32
    return %arg0, %c0_i32, %arg1 : i32, i32, i32
  }
}

module attributes {stable_mosaic.version = 11 : i64} {
  func.func @_conv_kernel(%arg0: i32, %arg1: i32, %arg2: memref<1x72x256xbf16, #tpu.memory_space<vmem>>, %arg3: memref<1x18x256xbf16, #tpu.memory_space<vmem>>, %arg4: memref<8x72xbf16, #tpu.memory_space<vmem>>, %arg5: memref<8x18xbf16, #tpu.memory_space<vmem>>, %arg6: memref<8x1xf32, #tpu.memory_space<vmem>>, %arg7: memref<1x8x256xbf16, #tpu.memory_space<vmem>>) attributes {dimension_semantics = [#tpu.dimension_semantics<parallel>, #tpu.dimension_semantics<parallel>], iteration_bounds = array<i64: 2, 1>, scalar_prefetch = 0 : i64, scratch_operands = 0 : i64, tpu.core_type = #tpu.core_type<tc>, window_params = [{transform_indices = @transform_0, window_bounds = array<i64: 1, 72, 256>}, {transform_indices = @transform_1, window_bounds = array<i64: 1, 18, 256>}, {pipeline_mode = #tpu.pipeline_mode<synchronous>, transform_indices = @transform_2, window_bounds = array<i64: 8, 72>}, {pipeline_mode = #tpu.pipeline_mode<synchronous>, transform_indices = @transform_3, window_bounds = array<i64: 8, 18>}, {pipeline_mode = #tpu.pipeline_mode<synchronous>, transform_indices = @transform_4, window_bounds = array<i64: 8, 1>}, {transform_indices = @transform_5, window_bounds = array<i64: 1, 8, 256>}]} {
    %c0 = arith.constant 0 : index
    %c0_0 = arith.constant 0 : index
    %0 = vector.load %arg4[%c0, %c0_0] : memref<8x72xbf16, #tpu.memory_space<vmem>>, vector<8x72xbf16>
    %c0_1 = arith.constant 0 : index
    %c0_2 = arith.constant 0 : index
    %c0_3 = arith.constant 0 : index
    %1 = vector.load %arg2[%c0_1, %c0_2, %c0_3] : memref<1x72x256xbf16, #tpu.memory_space<vmem>>, vector<1x72x256xbf16>
    %2 = vector.shape_cast %1 : vector<1x72x256xbf16> to vector<72x256xbf16>
    %cst = arith.constant dense<0.000000e+00> : vector<8x256xf32>
    %3 = tpu.matmul %0, %2, %cst {dimension_numbers = #tpu.dot_dimension_numbers<[1], [0], [0], [1], [0, 0, 1, 1], [], []>} : vector<8x72xbf16>, vector<72x256xbf16>, vector<8x256xf32> -> vector<8x256xf32>
    %c0_4 = arith.constant 0 : index
    %c0_5 = arith.constant 0 : index
    %4 = vector.load %arg5[%c0_4, %c0_5] : memref<8x18xbf16, #tpu.memory_space<vmem>>, vector<8x18xbf16>
    %c0_6 = arith.constant 0 : index
    %c0_7 = arith.constant 0 : index
    %c0_8 = arith.constant 0 : index
    %5 = vector.load %arg3[%c0_6, %c0_7, %c0_8] : memref<1x18x256xbf16, #tpu.memory_space<vmem>>, vector<1x18x256xbf16>
    %6 = vector.shape_cast %5 : vector<1x18x256xbf16> to vector<18x256xbf16>
    %cst_9 = arith.constant dense<0.000000e+00> : vector<8x256xf32>
    %7 = tpu.matmul %4, %6, %cst_9 {dimension_numbers = #tpu.dot_dimension_numbers<[1], [0], [0], [1], [0, 0, 1, 1], [], []>} : vector<8x18xbf16>, vector<18x256xbf16>, vector<8x256xf32> -> vector<8x256xf32>
    %8 = arith.addf %3, %7 : vector<8x256xf32>
    %c0_10 = arith.constant 0 : index
    %c0_11 = arith.constant 0 : index
    %9 = vector.load %arg6[%c0_10, %c0_11] : memref<8x1xf32, #tpu.memory_space<vmem>>, vector<8x1xf32>
    %10 = vector.broadcast %9 : vector<8x1xf32> to vector<8x256xf32>
    %11 = arith.addf %8, %10 : vector<8x256xf32>
    %cst_12 = arith.constant 0.000000e+00 : f32
    %12 = vector.broadcast %cst_12 : f32 to vector<8x256xf32>
    %13 = arith.cmpf oge, %11, %12 : vector<8x256xf32>
    %cst_13 = arith.constant 2.000000e-01 : f32
    %14 = vector.broadcast %cst_13 : f32 to vector<8x256xf32>
    %15 = arith.mulf %14, %11 : vector<8x256xf32>
    %16 = arith.select %13, %11, %15 : vector<8x256xi1>, vector<8x256xf32>
    %17 = arith.truncf %16 : vector<8x256xf32> to vector<8x256xbf16>
    %c0_14 = arith.constant 0 : index
    %c0_15 = arith.constant 0 : index
    %c0_16 = arith.constant 0 : index
    %18 = vector.load %arg7[%c0_14, %c0_15, %c0_16] : memref<1x8x256xbf16, #tpu.memory_space<vmem>>, vector<1x8x256xbf16>
    %19 = vector.shape_cast %18 : vector<1x8x256xbf16> to vector<8x256xbf16>
    %20 = vector.shape_cast %17 : vector<8x256xbf16> to vector<1x8x256xbf16>
    tpu.vector_store %arg7[%c0_14, %c0_15, %c0_16], %20 {strides = array<i32>} : memref<1x8x256xbf16, #tpu.memory_space<vmem>>, vector<1x8x256xbf16>,
    return
  }
  func.func @transform_0(%arg0: i32, %arg1: i32) -> (i32, i32, i32) {
    %c0_i32 = arith.constant 0 : i32
    %c0_i32_0 = arith.constant 0 : i32
    return %arg0, %c0_i32, %arg1 : i32, i32, i32
  }
  func.func @transform_1(%arg0: i32, %arg1: i32) -> (i32, i32, i32) {
    %c0_i32 = arith.constant 0 : i32
    %c0_i32_0 = arith.constant 0 : i32
    return %arg0, %c0_i32, %arg1 : i32, i32, i32
  }
  func.func @transform_2(%arg0: i32, %arg1: i32) -> (i32, i32) {
    %c0_i32 = arith.constant 0 : i32
    %c0_i32_0 = arith.constant 0 : i32
    %c0_i32_1 = arith.constant 0 : i32
    return %c0_i32, %c0_i32_0 : i32, i32
  }
  func.func @transform_3(%arg0: i32, %arg1: i32) -> (i32, i32) {
    %c0_i32 = arith.constant 0 : i32
    %c0_i32_0 = arith.constant 0 : i32
    %c0_i32_1 = arith.constant 0 : i32
    return %c0_i32, %c0_i32_0 : i32, i32
  }
  func.func @transform_4(%arg0: i32, %arg1: i32) -> (i32, i32) {
    %c0_i32 = arith.constant 0 : i32
    %c0_i32_0 = arith.constant 0 : i32
    %c0_i32_1 = arith.constant 0 : i32
    return %c0_i32, %c0_i32_0 : i32, i32
  }
  func.func @transform_5(%arg0: i32, %arg1: i32) -> (i32, i32, i32) {
    %c0_i32 = arith.constant 0 : i32
    %c0_i32_0 = arith.constant 0 : i32
    return %arg0, %c0_i32, %arg1 : i32, i32, i32
  }
}

module attributes {stable_mosaic.version = 11 : i64} {
  func.func @_conv_kernel(%arg0: i32, %arg1: i32, %arg2: memref<1x72x256xbf16, #tpu.memory_space<vmem>>, %arg3: memref<8x72xbf16, #tpu.memory_space<vmem>>, %arg4: memref<8x1xf32, #tpu.memory_space<vmem>>, %arg5: memref<1x8x256xbf16, #tpu.memory_space<vmem>>) attributes {dimension_semantics = [#tpu.dimension_semantics<parallel>, #tpu.dimension_semantics<parallel>], iteration_bounds = array<i64: 2, 1>, scalar_prefetch = 0 : i64, scratch_operands = 0 : i64, tpu.core_type = #tpu.core_type<tc>, window_params = [{transform_indices = @transform_0, window_bounds = array<i64: 1, 72, 256>}, {pipeline_mode = #tpu.pipeline_mode<synchronous>, transform_indices = @transform_1, window_bounds = array<i64: 8, 72>}, {pipeline_mode = #tpu.pipeline_mode<synchronous>, transform_indices = @transform_2, window_bounds = array<i64: 8, 1>}, {transform_indices = @transform_3, window_bounds = array<i64: 1, 8, 256>}]} {
    %c0 = arith.constant 0 : index
    %c0_0 = arith.constant 0 : index
    %0 = vector.load %arg3[%c0, %c0_0] : memref<8x72xbf16, #tpu.memory_space<vmem>>, vector<8x72xbf16>
    %c0_1 = arith.constant 0 : index
    %c0_2 = arith.constant 0 : index
    %c0_3 = arith.constant 0 : index
    %1 = vector.load %arg2[%c0_1, %c0_2, %c0_3] : memref<1x72x256xbf16, #tpu.memory_space<vmem>>, vector<1x72x256xbf16>
    %2 = vector.shape_cast %1 : vector<1x72x256xbf16> to vector<72x256xbf16>
    %cst = arith.constant dense<0.000000e+00> : vector<8x256xf32>
    %3 = tpu.matmul %0, %2, %cst {dimension_numbers = #tpu.dot_dimension_numbers<[1], [0], [0], [1], [0, 0, 1, 1], [], []>} : vector<8x72xbf16>, vector<72x256xbf16>, vector<8x256xf32> -> vector<8x256xf32>
    %c0_4 = arith.constant 0 : index
    %c0_5 = arith.constant 0 : index
    %4 = vector.load %arg4[%c0_4, %c0_5] : memref<8x1xf32, #tpu.memory_space<vmem>>, vector<8x1xf32>
    %5 = vector.broadcast %4 : vector<8x1xf32> to vector<8x256xf32>
    %6 = arith.addf %3, %5 : vector<8x256xf32>
    %cst_6 = arith.constant 0.000000e+00 : f32
    %7 = vector.broadcast %cst_6 : f32 to vector<8x256xf32>
    %8 = arith.cmpf oge, %6, %7 : vector<8x256xf32>
    %cst_7 = arith.constant 2.000000e-01 : f32
    %9 = vector.broadcast %cst_7 : f32 to vector<8x256xf32>
    %10 = arith.mulf %9, %6 : vector<8x256xf32>
    %11 = arith.select %8, %6, %10 : vector<8x256xi1>, vector<8x256xf32>
    %12 = arith.truncf %11 : vector<8x256xf32> to vector<8x256xbf16>
    %c0_8 = arith.constant 0 : index
    %c0_9 = arith.constant 0 : index
    %c0_10 = arith.constant 0 : index
    %13 = vector.load %arg5[%c0_8, %c0_9, %c0_10] : memref<1x8x256xbf16, #tpu.memory_space<vmem>>, vector<1x8x256xbf16>
    %14 = vector.shape_cast %13 : vector<1x8x256xbf16> to vector<8x256xbf16>
    %15 = vector.shape_cast %12 : vector<8x256xbf16> to vector<1x8x256xbf16>
    tpu.vector_store %arg5[%c0_8, %c0_9, %c0_10], %15 {strides = array<i32>} : memref<1x8x256xbf16, #tpu.memory_space<vmem>>, vector<1x8x256xbf16>,
    return
  }
  func.func @transform_0(%arg0: i32, %arg1: i32) -> (i32, i32, i32) {
    %c0_i32 = arith.constant 0 : i32
    %c0_i32_0 = arith.constant 0 : i32
    return %arg0, %c0_i32, %arg1 : i32, i32, i32
  }
  func.func @transform_1(%arg0: i32, %arg1: i32) -> (i32, i32) {
    %c0_i32 = arith.constant 0 : i32
    %c0_i32_0 = arith.constant 0 : i32
    %c0_i32_1 = arith.constant 0 : i32
    return %c0_i32, %c0_i32_0 : i32, i32
  }
  func.func @transform_2(%arg0: i32, %arg1: i32) -> (i32, i32) {
    %c0_i32 = arith.constant 0 : i32
    %c0_i32_0 = arith.constant 0 : i32
    %c0_i32_1 = arith.constant 0 : i32
    return %c0_i32, %c0_i32_0 : i32, i32
  }
  func.func @transform_3(%arg0: i32, %arg1: i32) -> (i32, i32, i32) {
    %c0_i32 = arith.constant 0 : i32
    %c0_i32_0 = arith.constant 0 : i32
    return %arg0, %c0_i32, %arg1 : i32, i32, i32
  }
}

module attributes {stable_mosaic.version = 11 : i64} {
  func.func @_conv_kernel(%arg0: i32, %arg1: i32, %arg2: memref<1x72x256xbf16, #tpu.memory_space<vmem>>, %arg3: memref<2x72xbf16, #tpu.memory_space<vmem>>, %arg4: memref<2x1xf32, #tpu.memory_space<vmem>>, %arg5: memref<1x2x256xf32, #tpu.memory_space<vmem>>) attributes {dimension_semantics = [#tpu.dimension_semantics<parallel>, #tpu.dimension_semantics<parallel>], iteration_bounds = array<i64: 2, 1>, scalar_prefetch = 0 : i64, scratch_operands = 0 : i64, tpu.core_type = #tpu.core_type<tc>, window_params = [{transform_indices = @transform_0, window_bounds = array<i64: 1, 72, 256>}, {pipeline_mode = #tpu.pipeline_mode<synchronous>, transform_indices = @transform_1, window_bounds = array<i64: 2, 72>}, {pipeline_mode = #tpu.pipeline_mode<synchronous>, transform_indices = @transform_2, window_bounds = array<i64: 2, 1>}, {transform_indices = @transform_3, window_bounds = array<i64: 1, 2, 256>}]} {
    %c0 = arith.constant 0 : index
    %c0_0 = arith.constant 0 : index
    %0 = vector.load %arg3[%c0, %c0_0] : memref<2x72xbf16, #tpu.memory_space<vmem>>, vector<2x72xbf16>
    %c0_1 = arith.constant 0 : index
    %c0_2 = arith.constant 0 : index
    %c0_3 = arith.constant 0 : index
    %1 = vector.load %arg2[%c0_1, %c0_2, %c0_3] : memref<1x72x256xbf16, #tpu.memory_space<vmem>>, vector<1x72x256xbf16>
    %2 = vector.shape_cast %1 : vector<1x72x256xbf16> to vector<72x256xbf16>
    %cst = arith.constant dense<0.000000e+00> : vector<2x256xf32>
    %3 = tpu.matmul %0, %2, %cst {dimension_numbers = #tpu.dot_dimension_numbers<[1], [0], [0], [1], [0, 0, 1, 1], [], []>} : vector<2x72xbf16>, vector<72x256xbf16>, vector<2x256xf32> -> vector<2x256xf32>
    %c0_4 = arith.constant 0 : index
    %c0_5 = arith.constant 0 : index
    %4 = vector.load %arg4[%c0_4, %c0_5] : memref<2x1xf32, #tpu.memory_space<vmem>>, vector<2x1xf32>
    %5 = vector.broadcast %4 : vector<2x1xf32> to vector<2x256xf32>
    %6 = arith.addf %3, %5 : vector<2x256xf32>
    %c0_6 = arith.constant 0 : index
    %c0_7 = arith.constant 0 : index
    %c0_8 = arith.constant 0 : index
    %7 = vector.load %arg5[%c0_6, %c0_7, %c0_8] : memref<1x2x256xf32, #tpu.memory_space<vmem>>, vector<1x2x256xf32>
    %8 = vector.shape_cast %7 : vector<1x2x256xf32> to vector<2x256xf32>
    %9 = vector.shape_cast %6 : vector<2x256xf32> to vector<1x2x256xf32>
    tpu.vector_store %arg5[%c0_6, %c0_7, %c0_8], %9 {strides = array<i32>} : memref<1x2x256xf32, #tpu.memory_space<vmem>>, vector<1x2x256xf32>,
    return
  }
  func.func @transform_0(%arg0: i32, %arg1: i32) -> (i32, i32, i32) {
    %c0_i32 = arith.constant 0 : i32
    %c0_i32_0 = arith.constant 0 : i32
    return %arg0, %c0_i32, %arg1 : i32, i32, i32
  }
  func.func @transform_1(%arg0: i32, %arg1: i32) -> (i32, i32) {
    %c0_i32 = arith.constant 0 : i32
    %c0_i32_0 = arith.constant 0 : i32
    %c0_i32_1 = arith.constant 0 : i32
    return %c0_i32, %c0_i32_0 : i32, i32
  }
  func.func @transform_2(%arg0: i32, %arg1: i32) -> (i32, i32) {
    %c0_i32 = arith.constant 0 : i32
    %c0_i32_0 = arith.constant 0 : i32
    %c0_i32_1 = arith.constant 0 : i32
    return %c0_i32, %c0_i32_0 : i32, i32
  }
  func.func @transform_3(%arg0: i32, %arg1: i32) -> (i32, i32, i32) {
    %c0_i32 = arith.constant 0 : i32
    %c0_i32_0 = arith.constant 0 : i32
    return %arg0, %c0_i32, %arg1 : i32, i32, i32
  }
}

</mosaic_0001>

<llo_original>
// kernel: u_network_forward.12
$region0: #{u_network_forward.12}
  #allocation0 [shape = 'u32[]', space=smem, size = 0x4, offset = 0x4, fixed_abs, tag = 'smem constant byte address 0x4 - core index']
  #allocation1 [shape = 'u32[144,128]{1,0:T(1,128)}', space=vmem, size = 0x12000, scoped, tag = 'internal scratch']
  %s0 = inlined_call_operand.vmem [shape: bf16[2,32,64], index: 0, kind: input, shape index: {}]
  %s1 = inlined_call_operand.vmem [shape: bf16[8,32], index: 1, kind: input, shape index: {}]
  %s2 = inlined_call_operand.vmem [shape: f32[8,1], index: 2, kind: input, shape index: {}]
  %s3 = inlined_call_operand.vmem [shape: bf16[2,8,64], index: 3, kind: output, shape index: {}]
  %s4 = sld [smem:[#allocation0]]
  $region45: #{u_network_forward.12} parent=0
    _
  %s6 = ssub.s32 1, %s4
  %s7 = scalar_select 0, %s6, %s4
  loop: start=0, step=1, limit=4
  $region2: #{u_network_forward.12} parent=0 // loop_pre_header
    _
  $region3: #{u_network_forward.12} parent=0 // loop_header
    %s9 = sphi 0, %s13
    %p10 = scmp.ge.s32.totalorder %s9, 4
    %s16 = sphi 0, %s28
    %s17 = sphi 0, %s24
    %s18 = sphi 0, %s16
    %s19 = sphi 0, %s17
    %s20 = sphi 0, %s18
    %s21 = sphi 0, %s19
    %s33 = sphi 0, %s35
    %s36 = sphi 0, %s33
    %s37 = sphi 0, %s36
    %s53 = sphi 0, %s37
    %s57 = sphi 0, %s57
    %s59 = sphi 0, %s57
    %s60 = sphi 0, %s59
    %s74 = sphi 0, %s60
    %s78 = sphi 0, %s78
    %s80 = sphi 0, %s78
    %s81 = sphi 0, %s80
    %s95 = sphi 0, %s81
    %s103 = sphi 0, %s105
    %s106 = sphi 0, %s103
    %s107 = sphi 0, %s106
    %s123 = sphi 0, %s107
  $region4: #{u_network_forward.12} parent=0 // loop_header_branch
    %12 = sbr.rel (%p10) target = $region8
  $region5: #{u_network_forward.12} parent=0 // loop_body
    %s14 = ssub.s32 %s9, 1
    %s15 = ssub.s32 %s9, 2
    %s22 = sadd.s32 1, %s17
    %p23 = scmp.ge.s32.totalorder %s22, 1
    %s24 = scalar_select %p23, 0, %s22
    %s25 = sadd.s32 1, %s16
    %s26 = scalar_select %p23, %s25, %s16
    %p27 = scmp.ge.s32.totalorder %s26, 2
    %s28 = scalar_select %p27, 0, %s26
    %s29 = ssub.s32 %s16, %s28
    %s30 = ssub.s32 %s17, %s24
    %s31 = sor.u32 %s29, %s30
    %p32 = scmp.eq.s32.totalorder %s31, 0
    %s34 = sadd.s32 %s33, 1
    %s35 = scalar_select %p32, %s33, %s34
    %p38 = pneg %p32
    %p39 = scmp.eq.s32.totalorder %s9, 1
    %p40 = por %p38, %p39
    %p41 = scmp.ne.s32.totalorder %s33, %s36
    %p42 = scmp.eq.s32.totalorder %s9, 0
    %p43 = por %p41, %p42
    %p44 = scmp.ne.s32.totalorder %s33, %s36
    %p45 = scmp.eq.s32.totalorder %s14, 1
    %p46 = por %p44, %p45
    %p47 = scmp.ne.s32.totalorder %s36, %s37
    %p48 = scmp.eq.s32.totalorder %s14, 0
    %p49 = por %p47, %p48
    %p50 = scmp.ne.s32.totalorder %s36, %s37
    %p51 = scmp.eq.s32.totalorder %s15, 1
    %p52 = por %p50, %p51
    %p54 = scmp.ne.s32.totalorder %s37, %s53
    %p55 = scmp.eq.s32.totalorder %s15, 0
    %p56 = por %p54, %p55
    %s58 = sadd.s32 %s57, 1
    %p61 = scmp.eq.s32.totalorder %s9, 1
    %p62 = scmp.ne.s32.totalorder %s57, %s59
    %p63 = scmp.eq.s32.totalorder %s9, 0
    %p64 = por %p62, %p63
    %p65 = scmp.ne.s32.totalorder %s57, %s59
    %p66 = scmp.eq.s32.totalorder %s14, 1
    %p67 = por %p65, %p66
    %p68 = scmp.ne.s32.totalorder %s59, %s60
    %p69 = scmp.eq.s32.totalorder %s14, 0
    %p70 = por %p68, %p69
    %p71 = scmp.ne.s32.totalorder %s59, %s60
    %p72 = scmp.eq.s32.totalorder %s15, 1
    %p73 = por %p71, %p72
    %p75 = scmp.ne.s32.totalorder %s60, %s74
    %p76 = scmp.eq.s32.totalorder %s15, 0
    %p77 = por %p75, %p76
    %s79 = sadd.s32 %s78, 1
    %p82 = scmp.eq.s32.totalorder %s9, 1
    %p83 = scmp.ne.s32.totalorder %s78, %s80
    %p84 = scmp.eq.s32.totalorder %s9, 0
    %p85 = por %p83, %p84
    %p86 = scmp.ne.s32.totalorder %s78, %s80
    %p87 = scmp.eq.s32.totalorder %s14, 1
    %p88 = por %p86, %p87
    %p89 = scmp.ne.s32.totalorder %s80, %s81
    %p90 = scmp.eq.s32.totalorder %s14, 0
    %p91 = por %p89, %p90
    %p92 = scmp.ne.s32.totalorder %s80, %s81
    %p93 = scmp.eq.s32.totalorder %s15, 1
    %p94 = por %p92, %p93
    %p96 = scmp.ne.s32.totalorder %s81, %s95
    %p97 = scmp.eq.s32.totalorder %s15, 0
    %p98 = por %p96, %p97
    %s99 = ssub.s32 %s16, %s28
    %s100 = ssub.s32 %s17, %s24
    %s101 = sor.u32 %s99, %s100
    %p102 = scmp.eq.s32.totalorder %s101, 0
    %s104 = sadd.s32 %s103, 1
    %s105 = scalar_select %p102, %s103, %s104
    %p108 = pneg %p102
    %p109 = scmp.eq.s32.totalorder %s9, 1
    %p110 = por %p108, %p109
    %p111 = scmp.ne.s32.totalorder %s103, %s106
    %p112 = scmp.eq.s32.totalorder %s9, 0
    %p113 = por %p111, %p112
    %p114 = scmp.ne.s32.totalorder %s103, %s106
    %p115 = scmp.eq.s32.totalorder %s14, 1
    %p116 = por %p114, %p115
    %p117 = scmp.ne.s32.totalorder %s106, %s107
    %p118 = scmp.eq.s32.totalorder %s14, 0
    %p119 = por %p117, %p118
    %p120 = scmp.ne.s32.totalorder %s106, %s107
    %p121 = scmp.eq.s32.totalorder %s15, 1
    %p122 = por %p120, %p121
    %p124 = scmp.ne.s32.totalorder %s107, %s123
    %p125 = scmp.eq.s32.totalorder %s15, 0
    %p126 = por %p124, %p125
    %p127 = scmp.le.s32.totalorder 1, %s9
    %p128 = scmp.lt.s32.totalorder %s9, 3
    %p129 = pnand %p127, %p128
    %p130 = pneg %p129
    // Predicated region
    $region9: #{u_network_forward.12} parent=5 // pred_check
      _
    $region10: #{u_network_forward.12} parent=5 // pred_check_branch
      %132 = sbr.rel (%p129) target = $region12
    $region11: #{u_network_forward.12} parent=5 // pred_region
      %s133 = ssub.s32 %s9, 1
      // Predicated region
      $region13: #{u_network_forward.12} parent=11 // pred_check
        %p134 = pneg %p70
      $region14: #{u_network_forward.12} parent=11 // pred_check_branch
        %136 = sbr.rel (%p134) target = $region16
      $region15: #{u_network_forward.12} parent=11 // pred_region
        _
      $region16: #{u_network_forward.12} parent=11 // pred_fallthru
        _
      // Predicated region
      $region17: #{u_network_forward.12} parent=11 // pred_check
        %p137 = pneg %p91
      $region18: #{u_network_forward.12} parent=11 // pred_check_branch
        %139 = sbr.rel (%p137) target = $region20
      $region19: #{u_network_forward.12} parent=11 // pred_region
        _
      $region20: #{u_network_forward.12} parent=11 // pred_fallthru
        _
    $region12: #{u_network_forward.12} parent=5 // pred_fallthru
      _
    %p140 = scmp.lt.s32.totalorder %s9, 2
    // Predicated region
    $region21: #{u_network_forward.12} parent=5 // pred_check
      %p141 = pneg %p140
    $region22: #{u_network_forward.12} parent=5 // pred_check_branch
      %143 = sbr.rel (%p141) target = $region24
    $region23: #{u_network_forward.12} parent=5 // pred_region
      // Predicated region
      $region25: #{u_network_forward.12} parent=23 // pred_check
        %p144 = pneg %p43
      $region26: #{u_network_forward.12} parent=23 // pred_check_branch
        %146 = sbr.rel (%p144) target = $region28
      $region27: #{u_network_forward.12} parent=23 // pred_region
        %p147 = scmp.lt.s32.totalorder %s16, 1
        %s148 = scalar_select %p147, %s16, 1
        %p149 = scmp.lt.s32.totalorder %s17, 0
        %s150 = scalar_select %p149, %s17, 0
        %s151 = smul.addr %s148, 4
        %s152 = sadd.s32 %s150, %s151
        %s153 = smul.addr %s152, 4
        %s154 = scalar_lea.vmem %s0, %s153
      $region28: #{u_network_forward.12} parent=23 // pred_fallthru
        _
    $region24: #{u_network_forward.12} parent=5 // pred_fallthru
      _
    %p155 = scmp.le.s32.totalorder 1, %s9
    %p156 = scmp.lt.s32.totalorder %s9, 3
    %p157 = pnand %p155, %p156
    %p158 = pneg %p157
    // Predicated region
    $region29: #{u_network_forward.12} parent=5 // pred_check
      _
    $region30: #{u_network_forward.12} parent=5 // pred_check_branch
      %160 = sbr.rel (%p157) target = $region32
    $region31: #{u_network_forward.12} parent=5 // pred_region
      %s161 = ssub.s32 %s9, 1
      %p162 = scmp.lt.s32.totalorder %s18, 1
      %s163 = scalar_select %p162, %s18, 1
      %p164 = scmp.lt.s32.totalorder %s19, 0
      %s165 = scalar_select %p164, %s19, 0
      %s166 = smul.addr %s163, 4
      %s167 = sadd.s32 %s165, %s166
      %s168 = smul.addr %s167, 4
      %s169 = scalar_lea.vmem %s0, %s168
      %p170 = pneg %p49
      %p171 = pneg %p46
      %p172 = pneg %p70
      %p173 = pneg %p67
      %p174 = pneg %p91
      %p175 = pneg %p88
      %p176 = pneg %p119
      %p177 = pneg %p116
      %p178 = scmp.lt.s32.totalorder %s18, 1
      %s179 = scalar_select %p178, %s18, 1
      %p180 = scmp.lt.s32.totalorder %s19, 0
      %s181 = scalar_select %p180, %s19, 0
      %s182 = sadd.s32 %s181, %s179
      %s183 = smul.addr %s182, 4
      %s184 = scalar_lea.vmem %s3, %s183
      %p185 = scmp.lt.s32.totalorder %s18, 1
      %s186 = scalar_select %p185, %s18, 1
      %p187 = scmp.lt.s32.totalorder %s19, 0
      %s188 = scalar_select %p187, %s19, 0
      %s189 = smul.addr %s186, 4
      %s190 = sadd.s32 %s188, %s189
      %s191 = smul.addr %s190, 4
      %s192 = scalar_lea.vmem %s0, %s191
      %p193 = scmp.lt.s32.totalorder %s18, 1
      %s194 = scalar_select %p193, %s18, 1
      %p195 = scmp.lt.s32.totalorder %s19, 0
      %s196 = scalar_select %p195, %s19, 0
      %s197 = sadd.s32 %s196, %s194
      %s198 = smul.addr %s197, 4
      %s199 = scalar_lea.vmem %s3, %s198
      %v201 = vld [vmem:[%s1] sm:$0xf]
      %v202 = vld [vmem:[%s192] sm:$0xf]
      %v203 = vld [vmem:[%s192 + $0x4] sm:$0xf]
      %v204 = vld [vmem:[%s192 + $0x8] sm:$0xf]
      %v205 = vld [vmem:[%s192 + $0xc] sm:$0xf]
      %v206 = vld [vmem:[%s2] sm:$0xff]
      %208 = vset.pattern.permute.xlu0 0
      %209 = vperm.xlu0 %208, %v206
      %v210 = vpop.permute.xlu0 %209
      %v216 = vunpack.c.l.b16 %v202
      %v217 = vunpack.c.l.b16 %v203
      %v218 = vunpack.c.l.b16 %v204
      %v219 = vunpack.c.l.b16 %v205
      %v220 = vpack.c.b16 %v217, %v216
      %v221 = vpack.c.b16 %v219, %v218
      %vm224 = vcmask 261120
      %v226 = vsel %vm224, %v201, 0
      %228 = vmatprep.subr.bf16.mxu0 0
      %229 = vmatpush1.bf16.msra.mxu0 %v220
      %230 = vmatprep.subr.bf16.mxu0 0
      %231 = vmatpush1.bf16.msra.mxu0 %v221
      %232 = vmatprep.subr.bf16.mxu0 0
      %233 = vmatpush1.bf16.msra.mxu0 0
      %234 = vmatprep.subr.bf16.mxu0 0
      %235 = vmatpush1.bf16.msra.mxu0 0
      %236 = vmatprep.subr.bf16.mxu0 0
      %237 = vmatpush1.bf16.msra.mxu0 0
      %238 = vmatprep.subr.bf16.mxu0 0
      %239 = vmatpush1.bf16.msra.mxu0 0
      %240 = vmatprep.subr.bf16.mxu0 0
      %241 = vmatpush1.bf16.msra.mxu0 0
      %242 = vmatprep.subr.bf16.mxu0 0
      %243 = vmatpush1.bf16.msra.mxu0 0
      %244 = vmatprep.subr.bf16.mxu0 0
      %245 = vmatpush1.bf16.msra.mxu0 0
      %246 = vmatprep.subr.bf16.mxu0 0
      %247 = vmatpush1.bf16.msra.mxu0 0
      %248 = vmatprep.subr.bf16.mxu0 0
      %249 = vmatpush1.bf16.msra.mxu0 0
      %250 = vmatprep.subr.bf16.mxu0 0
      %251 = vmatpush1.bf16.msra.mxu0 0
      %252 = vmatprep.subr.bf16.mxu0 0
      %253 = vmatpush1.bf16.msra.mxu0 0
      %254 = vmatprep.subr.bf16.mxu0 0
      %255 = vmatpush1.bf16.msra.mxu0 0
      %256 = vmatprep.subr.bf16.mxu0 0
      %257 = vmatpush1.bf16.msra.mxu0 0
      %258 = vmatprep.subr.bf16.mxu0 0
      %259 = vmatpush1.bf16.msra.mxu0 0
      %260 = vmatprep.mubr.bf16.mxu0 0
      %261 = vmatmul.mubr.bf16.gmra.mrb[0].mxu0 %v226
      %v262 = vpop.f32.mrb[0].mxu0
      %v263 = vadd.f32 %v210, %v262
      %v264 = vpop.f32.mrb[0].mxu0
      %v265 = vpop.f32.mrb[0].mxu0
      %v266 = vpop.f32.mrb[0].mxu0
      %267 = vdwg.mxu0
      %vm268 = vcmp.ge.f32.partialorder %v263, 0.0
      %v269 = vmul.f32 %v263, 0.2
      %v270 = vsel %vm268, %v263, %v269
      %v271 = vpack.c.bf16 %v270, %v270
      %vm272 = vcmask 519168
      %273 = vst.msk [vmem:[%s199] sm:$0xf] %vm272, %v271
      %p274 = scmp.lt.s32.totalorder %s18, 1
      %s275 = scalar_select %p274, %s18, 1
      %p276 = scmp.lt.s32.totalorder %s19, 0
      %s277 = scalar_select %p276, %s19, 0
      %s278 = sadd.s32 %s277, %s275
      %s279 = smul.addr %s278, 4
      %s280 = scalar_lea.vmem %s3, %s279
      // Predicated region
      $region33: #{u_network_forward.12} parent=31 // pred_check
        %p281 = pneg %p116
      $region34: #{u_network_forward.12} parent=31 // pred_check_branch
        %283 = sbr.rel (%p281) target = $region36
      $region35: #{u_network_forward.12} parent=31 // pred_region
        _
      $region36: #{u_network_forward.12} parent=31 // pred_fallthru
        _
    $region32: #{u_network_forward.12} parent=5 // pred_fallthru
      _
    %p284 = scmp.le.s32.totalorder 2, %s9
    // Predicated region
    $region37: #{u_network_forward.12} parent=5 // pred_check
      %p285 = pneg %p284
    $region38: #{u_network_forward.12} parent=5 // pred_check_branch
      %287 = sbr.rel (%p285) target = $region40
    $region39: #{u_network_forward.12} parent=5 // pred_region
      %s288 = ssub.s32 %s9, 2
      // Predicated region
      $region41: #{u_network_forward.12} parent=39 // pred_check
        %p289 = pneg %p122
      $region42: #{u_network_forward.12} parent=39 // pred_check_branch
        %291 = sbr.rel (%p289) target = $region44
      $region43: #{u_network_forward.12} parent=39 // pred_region
        %p292 = scmp.lt.s32.totalorder %s20, 1
        %s293 = scalar_select %p292, %s20, 1
        %p294 = scmp.lt.s32.totalorder %s21, 0
        %s295 = scalar_select %p294, %s21, 0
        %s296 = sadd.s32 %s295, %s293
        %s297 = smul.addr %s296, 4
        %s298 = scalar_lea.vmem %s3, %s297
      $region44: #{u_network_forward.12} parent=39 // pred_fallthru
        _
    $region40: #{u_network_forward.12} parent=5 // pred_fallthru
      _
  $region6: #{u_network_forward.12} parent=0 // loop_footer
    %s13 = sadd.s32 1, %s9
  $region7: #{u_network_forward.12} parent=0 // loop_footer_branch
    %8 = sbr.rel target = $region3
  $region8: #{u_network_forward.12} parent=0 // loop_exit
    _

// kernel: u_network_forward.13
$region0: #{u_network_forward.13}
  #allocation0 [shape = 'u32[]', space=smem, size = 0x4, offset = 0x4, fixed_abs, tag = 'smem constant byte address 0x4 - core index']
  #allocation1 [shape = 'u32[144,128]{1,0:T(1,128)}', space=vmem, size = 0x12000, scoped, tag = 'internal scratch']
  %s0 = inlined_call_operand.vmem [shape: bf16[2,128,16], index: 0, kind: input, shape index: {}]
  %s1 = inlined_call_operand.vmem [shape: bf16[16,128], index: 1, kind: input, shape index: {}]
  %s2 = inlined_call_operand.vmem [shape: f32[16,1], index: 2, kind: input, shape index: {}]
  %s3 = inlined_call_operand.vmem [shape: bf16[2,16,16], index: 3, kind: output, shape index: {}]
  %s4 = sld [smem:[#allocation0]]
  $region45: #{u_network_forward.13} parent=0
    _
  %s6 = ssub.s32 1, %s4
  %s7 = scalar_select 0, %s6, %s4
  loop: start=0, step=1, limit=4
  $region2: #{u_network_forward.13} parent=0 // loop_pre_header
    _
  $region3: #{u_network_forward.13} parent=0 // loop_header
    %s9 = sphi 0, %s13
    %p10 = scmp.ge.s32.totalorder %s9, 4
    %s16 = sphi 0, %s28
    %s17 = sphi 0, %s24
    %s18 = sphi 0, %s16
    %s19 = sphi 0, %s17
    %s20 = sphi 0, %s18
    %s21 = sphi 0, %s19
    %s33 = sphi 0, %s35
    %s36 = sphi 0, %s33
    %s37 = sphi 0, %s36
    %s53 = sphi 0, %s37
    %s57 = sphi 0, %s57
    %s59 = sphi 0, %s57
    %s60 = sphi 0, %s59
    %s74 = sphi 0, %s60
    %s78 = sphi 0, %s78
    %s80 = sphi 0, %s78
    %s81 = sphi 0, %s80
    %s95 = sphi 0, %s81
    %s103 = sphi 0, %s105
    %s106 = sphi 0, %s103
    %s107 = sphi 0, %s106
    %s123 = sphi 0, %s107
  $region4: #{u_network_forward.13} parent=0 // loop_header_branch
    %12 = sbr.rel (%p10) target = $region8
  $region5: #{u_network_forward.13} parent=0 // loop_body
    %s14 = ssub.s32 %s9, 1
    %s15 = ssub.s32 %s9, 2
    %s22 = sadd.s32 1, %s17
    %p23 = scmp.ge.s32.totalorder %s22, 1
    %s24 = scalar_select %p23, 0, %s22
    %s25 = sadd.s32 1, %s16
    %s26 = scalar_select %p23, %s25, %s16
    %p27 = scmp.ge.s32.totalorder %s26, 2
    %s28 = scalar_select %p27, 0, %s26
    %s29 = ssub.s32 %s16, %s28
    %s30 = ssub.s32 %s17, %s24
    %s31 = sor.u32 %s29, %s30
    %p32 = scmp.eq.s32.totalorder %s31, 0
    %s34 = sadd.s32 %s33, 1
    %s35 = scalar_select %p32, %s33, %s34
    %p38 = pneg %p32
    %p39 = scmp.eq.s32.totalorder %s9, 1
    %p40 = por %p38, %p39
    %p41 = scmp.ne.s32.totalorder %s33, %s36
    %p42 = scmp.eq.s32.totalorder %s9, 0
    %p43 = por %p41, %p42
    %p44 = scmp.ne.s32.totalorder %s33, %s36
    %p45 = scmp.eq.s32.totalorder %s14, 1
    %p46 = por %p44, %p45
    %p47 = scmp.ne.s32.totalorder %s36, %s37
    %p48 = scmp.eq.s32.totalorder %s14, 0
    %p49 = por %p47, %p48
    %p50 = scmp.ne.s32.totalorder %s36, %s37
    %p51 = scmp.eq.s32.totalorder %s15, 1
    %p52 = por %p50, %p51
    %p54 = scmp.ne.s32.totalorder %s37, %s53
    %p55 = scmp.eq.s32.totalorder %s15, 0
    %p56 = por %p54, %p55
    %s58 = sadd.s32 %s57, 1
    %p61 = scmp.eq.s32.totalorder %s9, 1
    %p62 = scmp.ne.s32.totalorder %s57, %s59
    %p63 = scmp.eq.s32.totalorder %s9, 0
    %p64 = por %p62, %p63
    %p65 = scmp.ne.s32.totalorder %s57, %s59
    %p66 = scmp.eq.s32.totalorder %s14, 1
    %p67 = por %p65, %p66
    %p68 = scmp.ne.s32.totalorder %s59, %s60
    %p69 = scmp.eq.s32.totalorder %s14, 0
    %p70 = por %p68, %p69
    %p71 = scmp.ne.s32.totalorder %s59, %s60
    %p72 = scmp.eq.s32.totalorder %s15, 1
    %p73 = por %p71, %p72
    %p75 = scmp.ne.s32.totalorder %s60, %s74
    %p76 = scmp.eq.s32.totalorder %s15, 0
    %p77 = por %p75, %p76
    %s79 = sadd.s32 %s78, 1
    %p82 = scmp.eq.s32.totalorder %s9, 1
    %p83 = scmp.ne.s32.totalorder %s78, %s80
    %p84 = scmp.eq.s32.totalorder %s9, 0
    %p85 = por %p83, %p84
    %p86 = scmp.ne.s32.totalorder %s78, %s80
    %p87 = scmp.eq.s32.totalorder %s14, 1
    %p88 = por %p86, %p87
    %p89 = scmp.ne.s32.totalorder %s80, %s81
    %p90 = scmp.eq.s32.totalorder %s14, 0
    %p91 = por %p89, %p90
    %p92 = scmp.ne.s32.totalorder %s80, %s81
    %p93 = scmp.eq.s32.totalorder %s15, 1
    %p94 = por %p92, %p93
    %p96 = scmp.ne.s32.totalorder %s81, %s95
    %p97 = scmp.eq.s32.totalorder %s15, 0
    %p98 = por %p96, %p97
    %s99 = ssub.s32 %s16, %s28
    %s100 = ssub.s32 %s17, %s24
    %s101 = sor.u32 %s99, %s100
    %p102 = scmp.eq.s32.totalorder %s101, 0
    %s104 = sadd.s32 %s103, 1
    %s105 = scalar_select %p102, %s103, %s104
    %p108 = pneg %p102
    %p109 = scmp.eq.s32.totalorder %s9, 1
    %p110 = por %p108, %p109
    %p111 = scmp.ne.s32.totalorder %s103, %s106
    %p112 = scmp.eq.s32.totalorder %s9, 0
    %p113 = por %p111, %p112
    %p114 = scmp.ne.s32.totalorder %s103, %s106
    %p115 = scmp.eq.s32.totalorder %s14, 1
    %p116 = por %p114, %p115
    %p117 = scmp.ne.s32.totalorder %s106, %s107
    %p118 = scmp.eq.s32.totalorder %s14, 0
    %p119 = por %p117, %p118
    %p120 = scmp.ne.s32.totalorder %s106, %s107
    %p121 = scmp.eq.s32.totalorder %s15, 1
    %p122 = por %p120, %p121
    %p124 = scmp.ne.s32.totalorder %s107, %s123
    %p125 = scmp.eq.s32.totalorder %s15, 0
    %p126 = por %p124, %p125
    %p127 = scmp.le.s32.totalorder 1, %s9
    %p128 = scmp.lt.s32.totalorder %s9, 3
    %p129 = pnand %p127, %p128
    %p130 = pneg %p129
    // Predicated region
    $region9: #{u_network_forward.13} parent=5 // pred_check
      _
    $region10: #{u_network_forward.13} parent=5 // pred_check_branch
      %132 = sbr.rel (%p129) target = $region12
    $region11: #{u_network_forward.13} parent=5 // pred_region
      %s133 = ssub.s32 %s9, 1
      // Predicated region
      $region13: #{u_network_forward.13} parent=11 // pred_check
        %p134 = pneg %p70
      $region14: #{u_network_forward.13} parent=11 // pred_check_branch
        %136 = sbr.rel (%p134) target = $region16
      $region15: #{u_network_forward.13} parent=11 // pred_region
        _
      $region16: #{u_network_forward.13} parent=11 // pred_fallthru
        _
      // Predicated region
      $region17: #{u_network_forward.13} parent=11 // pred_check
        %p137 = pneg %p91
      $region18: #{u_network_forward.13} parent=11 // pred_check_branch
        %139 = sbr.rel (%p137) target = $region20
      $region19: #{u_network_forward.13} parent=11 // pred_region
        _
      $region20: #{u_network_forward.13} parent=11 // pred_fallthru
        _
    $region12: #{u_network_forward.13} parent=5 // pred_fallthru
      _
    %p140 = scmp.lt.s32.totalorder %s9, 2
    // Predicated region
    $region21: #{u_network_forward.13} parent=5 // pred_check
      %p141 = pneg %p140
    $region22: #{u_network_forward.13} parent=5 // pred_check_branch
      %143 = sbr.rel (%p141) target = $region24
    $region23: #{u_network_forward.13} parent=5 // pred_region
      // Predicated region
      $region25: #{u_network_forward.13} parent=23 // pred_check
        %p144 = pneg %p43
      $region26: #{u_network_forward.13} parent=23 // pred_check_branch
        %146 = sbr.rel (%p144) target = $region28
      $region27: #{u_network_forward.13} parent=23 // pred_region
        %p147 = scmp.lt.s32.totalorder %s16, 1
        %s148 = scalar_select %p147, %s16, 1
        %p149 = scmp.lt.s32.totalorder %s17, 0
        %s150 = scalar_select %p149, %s17, 0
        %s151 = smul.addr %s148, 16
        %s152 = sadd.s32 %s150, %s151
        %s153 = smul.addr %s152, 4
        %s154 = scalar_lea.vmem %s0, %s153
      $region28: #{u_network_forward.13} parent=23 // pred_fallthru
        _
    $region24: #{u_network_forward.13} parent=5 // pred_fallthru
      _
    %p155 = scmp.le.s32.totalorder 1, %s9
    %p156 = scmp.lt.s32.totalorder %s9, 3
    %p157 = pnand %p155, %p156
    %p158 = pneg %p157
    // Predicated region
    $region29: #{u_network_forward.13} parent=5 // pred_check
      _
    $region30: #{u_network_forward.13} parent=5 // pred_check_branch
      %160 = sbr.rel (%p157) target = $region32
    $region31: #{u_network_forward.13} parent=5 // pred_region
      %s161 = ssub.s32 %s9, 1
      %p162 = scmp.lt.s32.totalorder %s18, 1
      %s163 = scalar_select %p162, %s18, 1
      %p164 = scmp.lt.s32.totalorder %s19, 0
      %s165 = scalar_select %p164, %s19, 0
      %s166 = smul.addr %s163, 16
      %s167 = sadd.s32 %s165, %s166
      %s168 = smul.addr %s167, 4
      %s169 = scalar_lea.vmem %s0, %s168
      %p170 = pneg %p49
      %p171 = pneg %p46
      %p172 = pneg %p70
      %p173 = pneg %p67
      %p174 = pneg %p91
      %p175 = pneg %p88
      %p176 = pneg %p119
      %p177 = pneg %p116
      %p178 = scmp.lt.s32.totalorder %s18, 1
      %s179 = scalar_select %p178, %s18, 1
      %p180 = scmp.lt.s32.totalorder %s19, 0
      %s181 = scalar_select %p180, %s19, 0
      %s182 = smul.addr %s179, 2
      %s183 = sadd.s32 %s181, %s182
      %s184 = smul.addr %s183, 4
      %s185 = scalar_lea.vmem %s3, %s184
      %p186 = scmp.lt.s32.totalorder %s18, 1
      %s187 = scalar_select %p186, %s18, 1
      %p188 = scmp.lt.s32.totalorder %s19, 0
      %s189 = scalar_select %p188, %s19, 0
      %s190 = smul.addr %s187, 16
      %s191 = sadd.s32 %s189, %s190
      %s192 = smul.addr %s191, 4
      %s193 = scalar_lea.vmem %s0, %s192
      %p194 = scmp.lt.s32.totalorder %s18, 1
      %s195 = scalar_select %p194, %s18, 1
      %p196 = scmp.lt.s32.totalorder %s19, 0
      %s197 = scalar_select %p196, %s19, 0
      %s198 = smul.addr %s195, 2
      %s199 = sadd.s32 %s197, %s198
      %s200 = smul.addr %s199, 4
      %s201 = scalar_lea.vmem %s3, %s200
      %v203 = vld [vmem:[%s1] sm:$0xf]
      %v204 = vld [vmem:[%s1 + $0x4] sm:$0xf]
      %v205 = vld [vmem:[%s193] sm:$0xf]
      %v206 = vld [vmem:[%s193 + $0x4] sm:$0xf]
      %v207 = vld [vmem:[%s193 + $0x8] sm:$0xf]
      %v208 = vld [vmem:[%s193 + $0xc] sm:$0xf]
      %v209 = vld [vmem:[%s193 + $0x10] sm:$0xf]
      %v210 = vld [vmem:[%s193 + $0x14] sm:$0xf]
      %v211 = vld [vmem:[%s193 + $0x18] sm:$0xf]
      %v212 = vld [vmem:[%s193 + $0x1c] sm:$0xf]
      %v213 = vld [vmem:[%s193 + $0x20] sm:$0xf]
      %v214 = vld [vmem:[%s193 + $0x24] sm:$0xf]
      %v215 = vld [vmem:[%s193 + $0x28] sm:$0xf]
      %v216 = vld [vmem:[%s193 + $0x2c] sm:$0xf]
      %v217 = vld [vmem:[%s193 + $0x30] sm:$0xf]
      %v218 = vld [vmem:[%s193 + $0x34] sm:$0xf]
      %v219 = vld [vmem:[%s193 + $0x38] sm:$0xf]
      %v220 = vld [vmem:[%s193 + $0x3c] sm:$0xf]
      %v221 = vld [vmem:[%s2] sm:$0xff]
      %v222 = vld [vmem:[%s2 + $0x8] sm:$0xff]
      %224 = vset.pattern.permute.xlu0 0
      %225 = vperm.xlu0 %224, %v221
      %v226 = vpop.permute.xlu0 %225
      %229 = vset.pattern.permute.xlu0 0
      %230 = vperm.xlu0 %229, %v222
      %v231 = vpop.permute.xlu0 %230
      %v235 = vunpack.c.l.b16 %v203
      %v236 = vunpack.c.l.b16 %v204
      %v237 = vpack.c.b16 %v236, %v235
      %v255 = vunpack.c.l.b16 %v205
      %v256 = vunpack.c.l.b16 %v206
      %v257 = vunpack.c.l.b16 %v207
      %v258 = vunpack.c.l.b16 %v208
      %v259 = vunpack.c.l.b16 %v209
      %v260 = vunpack.c.l.b16 %v210
      %v261 = vunpack.c.l.b16 %v211
      %v262 = vunpack.c.l.b16 %v212
      %v263 = vunpack.c.l.b16 %v213
      %v264 = vunpack.c.l.b16 %v214
      %v265 = vunpack.c.l.b16 %v215
      %v266 = vunpack.c.l.b16 %v216
      %v267 = vunpack.c.l.b16 %v217
      %v268 = vunpack.c.l.b16 %v218
      %v269 = vunpack.c.l.b16 %v219
      %v270 = vunpack.c.l.b16 %v220
      %v271 = vpack.c.b16 %v256, %v255
      %v272 = vpack.c.b16 %v258, %v257
      %v273 = vpack.c.b16 %v260, %v259
      %v274 = vpack.c.b16 %v262, %v261
      %v275 = vpack.c.b16 %v264, %v263
      %v276 = vpack.c.b16 %v266, %v265
      %v277 = vpack.c.b16 %v268, %v267
      %v278 = vpack.c.b16 %v270, %v269
      %287 = vmatprep.subr.bf16.mxu0 0
      %288 = vmatpush1.bf16.msra.mxu0 %v271
      %289 = vmatprep.subr.bf16.mxu0 0
      %290 = vmatpush1.bf16.msra.mxu0 %v272
      %291 = vmatprep.subr.bf16.mxu0 0
      %292 = vmatpush1.bf16.msra.mxu0 %v273
      %293 = vmatprep.subr.bf16.mxu0 0
      %294 = vmatpush1.bf16.msra.mxu0 %v274
      %295 = vmatprep.subr.bf16.mxu0 0
      %296 = vmatpush1.bf16.msra.mxu0 %v275
      %297 = vmatprep.subr.bf16.mxu0 0
      %298 = vmatpush1.bf16.msra.mxu0 %v276
      %299 = vmatprep.subr.bf16.mxu0 0
      %300 = vmatpush1.bf16.msra.mxu0 %v277
      %301 = vmatprep.subr.bf16.mxu0 0
      %302 = vmatpush1.bf16.msra.mxu0 %v278
      %303 = vmatprep.subr.bf16.mxu0 0
      %304 = vmatpush1.bf16.msra.mxu0 0
      %305 = vmatprep.subr.bf16.mxu0 0
      %306 = vmatpush1.bf16.msra.mxu0 0
      %307 = vmatprep.subr.bf16.mxu0 0
      %308 = vmatpush1.bf16.msra.mxu0 0
      %309 = vmatprep.subr.bf16.mxu0 0
      %310 = vmatpush1.bf16.msra.mxu0 0
      %311 = vmatprep.subr.bf16.mxu0 0
      %312 = vmatpush1.bf16.msra.mxu0 0
      %313 = vmatprep.subr.bf16.mxu0 0
      %314 = vmatpush1.bf16.msra.mxu0 0
      %315 = vmatprep.subr.bf16.mxu0 0
      %316 = vmatpush1.bf16.msra.mxu0 0
      %317 = vmatprep.subr.bf16.mxu0 0
      %318 = vmatpush1.bf16.msra.mxu0 0
      %319 = vmatprep.mubr.bf16.mxu0 0
      %320 = vmatmul.mubr.bf16.gmra.mrb[0].mxu0 %v237
      %v321 = vpop.f32.mrb[0].mxu0
      %v322 = vadd.f32 %v226, %v321
      %v323 = vpop.f32.mrb[0].mxu0
      %v324 = vpop.f32.mrb[0].mxu0
      %v325 = vadd.f32 %v231, %v324
      %v326 = vpop.f32.mrb[0].mxu0
      %327 = vdwg.mxu0
      %vm328 = vcmp.ge.f32.partialorder %v322, 0.0
      %vm329 = vcmp.ge.f32.partialorder %v325, 0.0
      %v330 = vmul.f32 %v322, 0.2
      %v331 = vmul.f32 %v325, 0.2
      %v332 = vsel %vm328, %v322, %v330
      %v333 = vsel %vm329, %v325, %v331
      %v334 = vpack.c.bf16 %v333, %v332
      %v336 = vunpack.c.l.b16 %v334
      %v337 = vunpack.c.h.b16 %v334
      %v338 = vpack.c.b16 %v336, %v336
      %v339 = vpack.c.b16 %v337, %v337
      %vm342 = vcmask 125952
      %343 = vst.msk [vmem:[%s201] sm:$0xf] %vm342, %v338
      %344 = vst.msk [vmem:[%s201 + $0x4] sm:$0xf] %vm342, %v339
      %p345 = scmp.lt.s32.totalorder %s18, 1
      %s346 = scalar_select %p345, %s18, 1
      %p347 = scmp.lt.s32.totalorder %s19, 0
      %s348 = scalar_select %p347, %s19, 0
      %s349 = smul.addr %s346, 2
      %s350 = sadd.s32 %s348, %s349
      %s351 = smul.addr %s350, 4
      %s352 = scalar_lea.vmem %s3, %s351
      // Predicated region
      $region33: #{u_network_forward.13} parent=31 // pred_check
        %p353 = pneg %p116
      $region34: #{u_network_forward.13} parent=31 // pred_check_branch
        %355 = sbr.rel (%p353) target = $region36
      $region35: #{u_network_forward.13} parent=31 // pred_region
        _
      $region36: #{u_network_forward.13} parent=31 // pred_fallthru
        _
    $region32: #{u_network_forward.13} parent=5 // pred_fallthru
      _
    %p356 = scmp.le.s32.totalorder 2, %s9
    // Predicated region
    $region37: #{u_network_forward.13} parent=5 // pred_check
      %p357 = pneg %p356
    $region38: #{u_network_forward.13} parent=5 // pred_check_branch
      %359 = sbr.rel (%p357) target = $region40
    $region39: #{u_network_forward.13} parent=5 // pred_region
      %s360 = ssub.s32 %s9, 2
      // Predicated region
      $region41: #{u_network_forward.13} parent=39 // pred_check
        %p361 = pneg %p122
      $region42: #{u_network_forward.13} parent=39 // pred_check_branch
        %363 = sbr.rel (%p361) target = $region44
      $region43: #{u_network_forward.13} parent=39 // pred_region
        %p364 = scmp.lt.s32.totalorder %s20, 1
        %s365 = scalar_select %p364, %s20, 1
        %p366 = scmp.lt.s32.totalorder %s21, 0
        %s367 = scalar_select %p366, %s21, 0
        %s368 = smul.addr %s365, 2
        %s369 = sadd.s32 %s367, %s368
        %s370 = smul.addr %s369, 4
        %s371 = scalar_lea.vmem %s3, %s370
      $region44: #{u_network_forward.13} parent=39 // pred_fallthru
        _
    $region40: #{u_network_forward.13} parent=5 // pred_fallthru
      _
  $region6: #{u_network_forward.13} parent=0 // loop_footer
    %s13 = sadd.s32 1, %s9
  $region7: #{u_network_forward.13} parent=0 // loop_footer_branch
    %8 = sbr.rel target = $region3
  $region8: #{u_network_forward.13} parent=0 // loop_exit
    _

// kernel: u_network_forward.14
$region0: #{u_network_forward.14}
  #allocation0 [shape = 'u32[]', space=smem, size = 0x4, offset = 0x4, fixed_abs, tag = 'smem constant byte address 0x4 - core index']
  #allocation1 [shape = 'u32[144,128]{1,0:T(1,128)}', space=vmem, size = 0x12000, scoped, tag = 'internal scratch']
  %s0 = inlined_call_operand.vmem [shape: bf16[2,256,4], index: 0, kind: input, shape index: {}]
  %s1 = inlined_call_operand.vmem [shape: bf16[16,256], index: 1, kind: input, shape index: {}]
  %s2 = inlined_call_operand.vmem [shape: f32[16,1], index: 2, kind: input, shape index: {}]
  %s3 = inlined_call_operand.vmem [shape: bf16[2,16,4], index: 3, kind: output, shape index: {}]
  %s4 = sld [smem:[#allocation0]]
  $region45: #{u_network_forward.14} parent=0
    _
  %s6 = ssub.s32 1, %s4
  %s7 = scalar_select 0, %s6, %s4
  loop: start=0, step=1, limit=4
  $region2: #{u_network_forward.14} parent=0 // loop_pre_header
    _
  $region3: #{u_network_forward.14} parent=0 // loop_header
    %s9 = sphi 0, %s13
    %p10 = scmp.ge.s32.totalorder %s9, 4
    %s16 = sphi 0, %s28
    %s17 = sphi 0, %s24
    %s18 = sphi 0, %s16
    %s19 = sphi 0, %s17
    %s20 = sphi 0, %s18
    %s21 = sphi 0, %s19
    %s33 = sphi 0, %s35
    %s36 = sphi 0, %s33
    %s37 = sphi 0, %s36
    %s53 = sphi 0, %s37
    %s57 = sphi 0, %s57
    %s59 = sphi 0, %s57
    %s60 = sphi 0, %s59
    %s74 = sphi 0, %s60
    %s78 = sphi 0, %s78
    %s80 = sphi 0, %s78
    %s81 = sphi 0, %s80
    %s95 = sphi 0, %s81
    %s103 = sphi 0, %s105
    %s106 = sphi 0, %s103
    %s107 = sphi 0, %s106
    %s123 = sphi 0, %s107
  $region4: #{u_network_forward.14} parent=0 // loop_header_branch
    %12 = sbr.rel (%p10) target = $region8
  $region5: #{u_network_forward.14} parent=0 // loop_body
    %s14 = ssub.s32 %s9, 1
    %s15 = ssub.s32 %s9, 2
    %s22 = sadd.s32 1, %s17
    %p23 = scmp.ge.s32.totalorder %s22, 1
    %s24 = scalar_select %p23, 0, %s22
    %s25 = sadd.s32 1, %s16
    %s26 = scalar_select %p23, %s25, %s16
    %p27 = scmp.ge.s32.totalorder %s26, 2
    %s28 = scalar_select %p27, 0, %s26
    %s29 = ssub.s32 %s16, %s28
    %s30 = ssub.s32 %s17, %s24
    %s31 = sor.u32 %s29, %s30
    %p32 = scmp.eq.s32.totalorder %s31, 0
    %s34 = sadd.s32 %s33, 1
    %s35 = scalar_select %p32, %s33, %s34
    %p38 = pneg %p32
    %p39 = scmp.eq.s32.totalorder %s9, 1
    %p40 = por %p38, %p39
    %p41 = scmp.ne.s32.totalorder %s33, %s36
    %p42 = scmp.eq.s32.totalorder %s9, 0
    %p43 = por %p41, %p42
    %p44 = scmp.ne.s32.totalorder %s33, %s36
    %p45 = scmp.eq.s32.totalorder %s14, 1
    %p46 = por %p44, %p45
    %p47 = scmp.ne.s32.totalorder %s36, %s37
    %p48 = scmp.eq.s32.totalorder %s14, 0
    %p49 = por %p47, %p48
    %p50 = scmp.ne.s32.totalorder %s36, %s37
    %p51 = scmp.eq.s32.totalorder %s15, 1
    %p52 = por %p50, %p51
    %p54 = scmp.ne.s32.totalorder %s37, %s53
    %p55 = scmp.eq.s32.totalorder %s15, 0
    %p56 = por %p54, %p55
    %s58 = sadd.s32 %s57, 1
    %p61 = scmp.eq.s32.totalorder %s9, 1
    %p62 = scmp.ne.s32.totalorder %s57, %s59
    %p63 = scmp.eq.s32.totalorder %s9, 0
    %p64 = por %p62, %p63
    %p65 = scmp.ne.s32.totalorder %s57, %s59
    %p66 = scmp.eq.s32.totalorder %s14, 1
    %p67 = por %p65, %p66
    %p68 = scmp.ne.s32.totalorder %s59, %s60
    %p69 = scmp.eq.s32.totalorder %s14, 0
    %p70 = por %p68, %p69
    %p71 = scmp.ne.s32.totalorder %s59, %s60
    %p72 = scmp.eq.s32.totalorder %s15, 1
    %p73 = por %p71, %p72
    %p75 = scmp.ne.s32.totalorder %s60, %s74
    %p76 = scmp.eq.s32.totalorder %s15, 0
    %p77 = por %p75, %p76
    %s79 = sadd.s32 %s78, 1
    %p82 = scmp.eq.s32.totalorder %s9, 1
    %p83 = scmp.ne.s32.totalorder %s78, %s80
    %p84 = scmp.eq.s32.totalorder %s9, 0
    %p85 = por %p83, %p84
    %p86 = scmp.ne.s32.totalorder %s78, %s80
    %p87 = scmp.eq.s32.totalorder %s14, 1
    %p88 = por %p86, %p87
    %p89 = scmp.ne.s32.totalorder %s80, %s81
    %p90 = scmp.eq.s32.totalorder %s14, 0
    %p91 = por %p89, %p90
    %p92 = scmp.ne.s32.totalorder %s80, %s81
    %p93 = scmp.eq.s32.totalorder %s15, 1
    %p94 = por %p92, %p93
    %p96 = scmp.ne.s32.totalorder %s81, %s95
    %p97 = scmp.eq.s32.totalorder %s15, 0
    %p98 = por %p96, %p97
    %s99 = ssub.s32 %s16, %s28
    %s100 = ssub.s32 %s17, %s24
    %s101 = sor.u32 %s99, %s100
    %p102 = scmp.eq.s32.totalorder %s101, 0
    %s104 = sadd.s32 %s103, 1
    %s105 = scalar_select %p102, %s103, %s104
    %p108 = pneg %p102
    %p109 = scmp.eq.s32.totalorder %s9, 1
    %p110 = por %p108, %p109
    %p111 = scmp.ne.s32.totalorder %s103, %s106
    %p112 = scmp.eq.s32.totalorder %s9, 0
    %p113 = por %p111, %p112
    %p114 = scmp.ne.s32.totalorder %s103, %s106
    %p115 = scmp.eq.s32.totalorder %s14, 1
    %p116 = por %p114, %p115
    %p117 = scmp.ne.s32.totalorder %s106, %s107
    %p118 = scmp.eq.s32.totalorder %s14, 0
    %p119 = por %p117, %p118
    %p120 = scmp.ne.s32.totalorder %s106, %s107
    %p121 = scmp.eq.s32.totalorder %s15, 1
    %p122 = por %p120, %p121
    %p124 = scmp.ne.s32.totalorder %s107, %s123
    %p125 = scmp.eq.s32.totalorder %s15, 0
    %p126 = por %p124, %p125
    %p127 = scmp.le.s32.totalorder 1, %s9
    %p128 = scmp.lt.s32.totalorder %s9, 3
    %p129 = pnand %p127, %p128
    %p130 = pneg %p129
    // Predicated region
    $region9: #{u_network_forward.14} parent=5 // pred_check
      _
    $region10: #{u_network_forward.14} parent=5 // pred_check_branch
      %132 = sbr.rel (%p129) target = $region12
    $region11: #{u_network_forward.14} parent=5 // pred_region
      %s133 = ssub.s32 %s9, 1
      // Predicated region
      $region13: #{u_network_forward.14} parent=11 // pred_check
        %p134 = pneg %p70
      $region14: #{u_network_forward.14} parent=11 // pred_check_branch
        %136 = sbr.rel (%p134) target = $region16
      $region15: #{u_network_forward.14} parent=11 // pred_region
        _
      $region16: #{u_network_forward.14} parent=11 // pred_fallthru
        _
      // Predicated region
      $region17: #{u_network_forward.14} parent=11 // pred_check
        %p137 = pneg %p91
      $region18: #{u_network_forward.14} parent=11 // pred_check_branch
        %139 = sbr.rel (%p137) target = $region20
      $region19: #{u_network_forward.14} parent=11 // pred_region
        _
      $region20: #{u_network_forward.14} parent=11 // pred_fallthru
        _
    $region12: #{u_network_forward.14} parent=5 // pred_fallthru
      _
    %p140 = scmp.lt.s32.totalorder %s9, 2
    // Predicated region
    $region21: #{u_network_forward.14} parent=5 // pred_check
      %p141 = pneg %p140
    $region22: #{u_network_forward.14} parent=5 // pred_check_branch
      %143 = sbr.rel (%p141) target = $region24
    $region23: #{u_network_forward.14} parent=5 // pred_region
      // Predicated region
      $region25: #{u_network_forward.14} parent=23 // pred_check
        %p144 = pneg %p43
      $region26: #{u_network_forward.14} parent=23 // pred_check_branch
        %146 = sbr.rel (%p144) target = $region28
      $region27: #{u_network_forward.14} parent=23 // pred_region
        %p147 = scmp.lt.s32.totalorder %s16, 1
        %s148 = scalar_select %p147, %s16, 1
        %p149 = scmp.lt.s32.totalorder %s17, 0
        %s150 = scalar_select %p149, %s17, 0
        %s151 = smul.addr %s148, 32
        %s152 = sadd.s32 %s150, %s151
        %s153 = smul.addr %s152, 4
        %s154 = scalar_lea.vmem %s0, %s153
      $region28: #{u_network_forward.14} parent=23 // pred_fallthru
        _
    $region24: #{u_network_forward.14} parent=5 // pred_fallthru
      _
    %p155 = scmp.le.s32.totalorder 1, %s9
    %p156 = scmp.lt.s32.totalorder %s9, 3
    %p157 = pnand %p155, %p156
    %p158 = pneg %p157
    // Predicated region
    $region29: #{u_network_forward.14} parent=5 // pred_check
      _
    $region30: #{u_network_forward.14} parent=5 // pred_check_branch
      %160 = sbr.rel (%p157) target = $region32
    $region31: #{u_network_forward.14} parent=5 // pred_region
      %s161 = ssub.s32 %s9, 1
      %p162 = scmp.lt.s32.totalorder %s18, 1
      %s163 = scalar_select %p162, %s18, 1
      %p164 = scmp.lt.s32.totalorder %s19, 0
      %s165 = scalar_select %p164, %s19, 0
      %s166 = smul.addr %s163, 32
      %s167 = sadd.s32 %s165, %s166
      %s168 = smul.addr %s167, 4
      %s169 = scalar_lea.vmem %s0, %s168
      %p170 = pneg %p49
      %p171 = pneg %p46
      %p172 = pneg %p70
      %p173 = pneg %p67
      %p174 = pneg %p91
      %p175 = pneg %p88
      %p176 = pneg %p119
      %p177 = pneg %p116
      %p178 = scmp.lt.s32.totalorder %s18, 1
      %s179 = scalar_select %p178, %s18, 1
      %p180 = scmp.lt.s32.totalorder %s19, 0
      %s181 = scalar_select %p180, %s19, 0
      %s182 = smul.addr %s179, 2
      %s183 = sadd.s32 %s181, %s182
      %s184 = smul.addr %s183, 4
      %s185 = scalar_lea.vmem %s3, %s184
      %p186 = scmp.lt.s32.totalorder %s18, 1
      %s187 = scalar_select %p186, %s18, 1
      %p188 = scmp.lt.s32.totalorder %s19, 0
      %s189 = scalar_select %p188, %s19, 0
      %s190 = smul.addr %s187, 32
      %s191 = sadd.s32 %s189, %s190
      %s192 = smul.addr %s191, 4
      %s193 = scalar_lea.vmem %s0, %s192
      %p194 = scmp.lt.s32.totalorder %s18, 1
      %s195 = scalar_select %p194, %s18, 1
      %p196 = scmp.lt.s32.totalorder %s19, 0
      %s197 = scalar_select %p196, %s19, 0
      %s198 = smul.addr %s195, 2
      %s199 = sadd.s32 %s197, %s198
      %s200 = smul.addr %s199, 4
      %s201 = scalar_lea.vmem %s3, %s200
      %v203 = vld [vmem:[%s1] sm:$0xff]
      %v204 = vld [vmem:[%s1 + $0x8] sm:$0xff]
      %v205 = vld [vmem:[%s193] sm:$0xf]
      %v206 = vld [vmem:[%s193 + $0x4] sm:$0xf]
      %v207 = vld [vmem:[%s193 + $0x8] sm:$0xf]
      %v208 = vld [vmem:[%s193 + $0xc] sm:$0xf]
      %v209 = vld [vmem:[%s193 + $0x10] sm:$0xf]
      %v210 = vld [vmem:[%s193 + $0x14] sm:$0xf]
      %v211 = vld [vmem:[%s193 + $0x18] sm:$0xf]
      %v212 = vld [vmem:[%s193 + $0x1c] sm:$0xf]
      %v213 = vld [vmem:[%s193 + $0x20] sm:$0xf]
      %v214 = vld [vmem:[%s193 + $0x24] sm:$0xf]
      %v215 = vld [vmem:[%s193 + $0x28] sm:$0xf]
      %v216 = vld [vmem:[%s193 + $0x2c] sm:$0xf]
      %v217 = vld [vmem:[%s193 + $0x30] sm:$0xf]
      %v218 = vld [vmem:[%s193 + $0x34] sm:$0xf]
      %v219 = vld [vmem:[%s193 + $0x38] sm:$0xf]
      %v220 = vld [vmem:[%s193 + $0x3c] sm:$0xf]
      %v221 = vld [vmem:[%s193 + $0x40] sm:$0xf]
      %v222 = vld [vmem:[%s193 + $0x44] sm:$0xf]
      %v223 = vld [vmem:[%s193 + $0x48] sm:$0xf]
      %v224 = vld [vmem:[%s193 + $0x4c] sm:$0xf]
      %v225 = vld [vmem:[%s193 + $0x50] sm:$0xf]
      %v226 = vld [vmem:[%s193 + $0x54] sm:$0xf]
      %v227 = vld [vmem:[%s193 + $0x58] sm:$0xf]
      %v228 = vld [vmem:[%s193 + $0x5c] sm:$0xf]
      %v229 = vld [vmem:[%s193 + $0x60] sm:$0xf]
      %v230 = vld [vmem:[%s193 + $0x64] sm:$0xf]
      %v231 = vld [vmem:[%s193 + $0x68] sm:$0xf]
      %v232 = vld [vmem:[%s193 + $0x6c] sm:$0xf]
      %v233 = vld [vmem:[%s193 + $0x70] sm:$0xf]
      %v234 = vld [vmem:[%s193 + $0x74] sm:$0xf]
      %v235 = vld [vmem:[%s193 + $0x78] sm:$0xf]
      %v236 = vld [vmem:[%s193 + $0x7c] sm:$0xf]
      %v237 = vld [vmem:[%s2] sm:$0xff]
      %v238 = vld [vmem:[%s2 + $0x8] sm:$0xff]
      %240 = vset.pattern.permute.xlu0 0
      %241 = vperm.xlu0 %240, %v237
      %v242 = vpop.permute.xlu0 %241
      %245 = vset.pattern.permute.xlu0 0
      %246 = vperm.xlu0 %245, %v238
      %v247 = vpop.permute.xlu0 %246
      %v251 = vunpack.c.l.b16 %v203
      %v252 = vunpack.c.h.b16 %v203
      %v253 = vunpack.c.l.b16 %v204
      %v254 = vunpack.c.h.b16 %v204
      %v255 = vpack.c.b16 %v253, %v251
      %v256 = vpack.c.b16 %v254, %v252
      %v291 = vunpack.c.l.b16 %v205
      %v292 = vunpack.c.l.b16 %v206
      %v293 = vunpack.c.l.b16 %v207
      %v294 = vunpack.c.l.b16 %v208
      %v295 = vunpack.c.l.b16 %v209
      %v296 = vunpack.c.l.b16 %v210
      %v297 = vunpack.c.l.b16 %v211
      %v298 = vunpack.c.l.b16 %v212
      %v299 = vunpack.c.l.b16 %v213
      %v300 = vunpack.c.l.b16 %v214
      %v301 = vunpack.c.l.b16 %v215
      %v302 = vunpack.c.l.b16 %v216
      %v303 = vunpack.c.l.b16 %v217
      %v304 = vunpack.c.l.b16 %v218
      %v305 = vunpack.c.l.b16 %v219
      %v306 = vunpack.c.l.b16 %v220
      %v307 = vunpack.c.l.b16 %v221
      %v308 = vunpack.c.l.b16 %v222
      %v309 = vunpack.c.l.b16 %v223
      %v310 = vunpack.c.l.b16 %v224
      %v311 = vunpack.c.l.b16 %v225
      %v312 = vunpack.c.l.b16 %v226
      %v313 = vunpack.c.l.b16 %v227
      %v314 = vunpack.c.l.b16 %v228
      %v315 = vunpack.c.l.b16 %v229
      %v316 = vunpack.c.l.b16 %v230
      %v317 = vunpack.c.l.b16 %v231
      %v318 = vunpack.c.l.b16 %v232
      %v319 = vunpack.c.l.b16 %v233
      %v320 = vunpack.c.l.b16 %v234
      %v321 = vunpack.c.l.b16 %v235
      %v322 = vunpack.c.l.b16 %v236
      %v323 = vpack.c.b16 %v292, %v291
      %v324 = vpack.c.b16 %v294, %v293
      %v325 = vpack.c.b16 %v296, %v295
      %v326 = vpack.c.b16 %v298, %v297
      %v327 = vpack.c.b16 %v300, %v299
      %v328 = vpack.c.b16 %v302, %v301
      %v329 = vpack.c.b16 %v304, %v303
      %v330 = vpack.c.b16 %v306, %v305
      %v331 = vpack.c.b16 %v308, %v307
      %v332 = vpack.c.b16 %v310, %v309
      %v333 = vpack.c.b16 %v312, %v311
      %v334 = vpack.c.b16 %v314, %v313
      %v335 = vpack.c.b16 %v316, %v315
      %v336 = vpack.c.b16 %v318, %v317
      %v337 = vpack.c.b16 %v320, %v319
      %v338 = vpack.c.b16 %v322, %v321
      %355 = vmatprep.subr.bf16.mxu0 0
      %356 = vmatpush1.bf16.msra.mxu0 %v323
      %357 = vmatprep.subr.bf16.mxu0 0
      %358 = vmatpush1.bf16.msra.mxu0 %v324
      %359 = vmatprep.subr.bf16.mxu0 0
      %360 = vmatpush1.bf16.msra.mxu0 %v325
      %361 = vmatprep.subr.bf16.mxu0 0
      %362 = vmatpush1.bf16.msra.mxu0 %v326
      %363 = vmatprep.subr.bf16.mxu0 0
      %364 = vmatpush1.bf16.msra.mxu0 %v327
      %365 = vmatprep.subr.bf16.mxu0 0
      %366 = vmatpush1.bf16.msra.mxu0 %v328
      %367 = vmatprep.subr.bf16.mxu0 0
      %368 = vmatpush1.bf16.msra.mxu0 %v329
      %369 = vmatprep.subr.bf16.mxu0 0
      %370 = vmatpush1.bf16.msra.mxu0 %v330
      %371 = vmatprep.subr.bf16.mxu0 0
      %372 = vmatpush1.bf16.msra.mxu0 %v331
      %373 = vmatprep.subr.bf16.mxu0 0
      %374 = vmatpush1.bf16.msra.mxu0 %v332
      %375 = vmatprep.subr.bf16.mxu0 0
      %376 = vmatpush1.bf16.msra.mxu0 %v333
      %377 = vmatprep.subr.bf16.mxu0 0
      %378 = vmatpush1.bf16.msra.mxu0 %v334
      %379 = vmatprep.subr.bf16.mxu0 0
      %380 = vmatpush1.bf16.msra.mxu0 %v335
      %381 = vmatprep.subr.bf16.mxu0 0
      %382 = vmatpush1.bf16.msra.mxu0 %v336
      %383 = vmatprep.subr.bf16.mxu0 0
      %384 = vmatpush1.bf16.msra.mxu0 %v337
      %385 = vmatprep.subr.bf16.mxu0 0
      %386 = vmatpush1.bf16.msra.mxu0 %v338
      %387 = vmatprep.mubr.bf16.mxu0 %v256
      %388 = vmatmul.mubr.bf16.gmra.mrb[0].mxu0 %v255
      %v389 = vpop.f32.mrb[0].mxu0
      %v390 = vadd.f32 %v242, %v389
      %v391 = vpop.f32.mrb[0].mxu0
      %v392 = vpop.f32.mrb[0].mxu0
      %v393 = vadd.f32 %v247, %v392
      %v394 = vpop.f32.mrb[0].mxu0
      %395 = vdwg.mxu0
      %vm396 = vcmp.ge.f32.partialorder %v390, 0.0
      %vm397 = vcmp.ge.f32.partialorder %v393, 0.0
      %v398 = vmul.f32 %v390, 0.2
      %v399 = vmul.f32 %v393, 0.2
      %v400 = vsel %vm396, %v390, %v398
      %v401 = vsel %vm397, %v393, %v399
      %v402 = vpack.c.bf16 %v401, %v400
      %v404 = vunpack.c.l.b16 %v402
      %v405 = vunpack.c.h.b16 %v402
      %v406 = vpack.c.b16 %v404, %v404
      %v407 = vpack.c.b16 %v405, %v405
      %vm410 = vcmask 27648
      %411 = vst.msk [vmem:[%s201] sm:$0xf] %vm410, %v406
      %412 = vst.msk [vmem:[%s201 + $0x4] sm:$0xf] %vm410, %v407
      %p413 = scmp.lt.s32.totalorder %s18, 1
      %s414 = scalar_select %p413, %s18, 1
      %p415 = scmp.lt.s32.totalorder %s19, 0
      %s416 = scalar_select %p415, %s19, 0
      %s417 = smul.addr %s414, 2
      %s418 = sadd.s32 %s416, %s417
      %s419 = smul.addr %s418, 4
      %s420 = scalar_lea.vmem %s3, %s419
      // Predicated region
      $region33: #{u_network_forward.14} parent=31 // pred_check
        %p421 = pneg %p116
      $region34: #{u_network_forward.14} parent=31 // pred_check_branch
        %423 = sbr.rel (%p421) target = $region36
      $region35: #{u_network_forward.14} parent=31 // pred_region
        _
      $region36: #{u_network_forward.14} parent=31 // pred_fallthru
        _
    $region32: #{u_network_forward.14} parent=5 // pred_fallthru
      _
    %p424 = scmp.le.s32.totalorder 2, %s9
    // Predicated region
    $region37: #{u_network_forward.14} parent=5 // pred_check
      %p425 = pneg %p424
    $region38: #{u_network_forward.14} parent=5 // pred_check_branch
      %427 = sbr.rel (%p425) target = $region40
    $region39: #{u_network_forward.14} parent=5 // pred_region
      %s428 = ssub.s32 %s9, 2
      // Predicated region
      $region41: #{u_network_forward.14} parent=39 // pred_check
        %p429 = pneg %p122
      $region42: #{u_network_forward.14} parent=39 // pred_check_branch
        %431 = sbr.rel (%p429) target = $region44
      $region43: #{u_network_forward.14} parent=39 // pred_region
        %p432 = scmp.lt.s32.totalorder %s20, 1
        %s433 = scalar_select %p432, %s20, 1
        %p434 = scmp.lt.s32.totalorder %s21, 0
        %s435 = scalar_select %p434, %s21, 0
        %s436 = smul.addr %s433, 2
        %s437 = sadd.s32 %s435, %s436
        %s438 = smul.addr %s437, 4
        %s439 = scalar_lea.vmem %s3, %s438
      $region44: #{u_network_forward.14} parent=39 // pred_fallthru
        _
    $region40: #{u_network_forward.14} parent=5 // pred_fallthru
      _
  $region6: #{u_network_forward.14} parent=0 // loop_footer
    %s13 = sadd.s32 1, %s9
  $region7: #{u_network_forward.14} parent=0 // loop_footer_branch
    %8 = sbr.rel target = $region3
  $region8: #{u_network_forward.14} parent=0 // loop_exit
    _

// kernel: u_network_forward.15
$region0: #{u_network_forward.15}
  #allocation0 [shape = 'u32[]', space=smem, size = 0x4, offset = 0x4, fixed_abs, tag = 'smem constant byte address 0x4 - core index']
  #allocation1 [shape = 'u32[144,128]{1,0:T(1,128)}', space=vmem, size = 0x12000, scoped, tag = 'internal scratch']
  %s0 = inlined_call_operand.vmem [shape: bf16[2,256,1], index: 0, kind: input, shape index: {}]
  %s1 = inlined_call_operand.vmem [shape: bf16[16,256], index: 1, kind: input, shape index: {}]
  %s2 = inlined_call_operand.vmem [shape: f32[16,1], index: 2, kind: input, shape index: {}]
  %s3 = inlined_call_operand.vmem [shape: bf16[2,16,1], index: 3, kind: output, shape index: {}]
  %s4 = sld [smem:[#allocation0]]
  $region45: #{u_network_forward.15} parent=0
    _
  %s6 = ssub.s32 1, %s4
  %s7 = scalar_select 0, %s6, %s4
  loop: start=0, step=1, limit=4
  $region2: #{u_network_forward.15} parent=0 // loop_pre_header
    _
  $region3: #{u_network_forward.15} parent=0 // loop_header
    %s9 = sphi 0, %s13
    %p10 = scmp.ge.s32.totalorder %s9, 4
    %s16 = sphi 0, %s28
    %s17 = sphi 0, %s24
    %s18 = sphi 0, %s16
    %s19 = sphi 0, %s17
    %s20 = sphi 0, %s18
    %s21 = sphi 0, %s19
    %s33 = sphi 0, %s35
    %s36 = sphi 0, %s33
    %s37 = sphi 0, %s36
    %s53 = sphi 0, %s37
    %s57 = sphi 0, %s57
    %s59 = sphi 0, %s57
    %s60 = sphi 0, %s59
    %s74 = sphi 0, %s60
    %s78 = sphi 0, %s78
    %s80 = sphi 0, %s78
    %s81 = sphi 0, %s80
    %s95 = sphi 0, %s81
    %s103 = sphi 0, %s105
    %s106 = sphi 0, %s103
    %s107 = sphi 0, %s106
    %s123 = sphi 0, %s107
  $region4: #{u_network_forward.15} parent=0 // loop_header_branch
    %12 = sbr.rel (%p10) target = $region8
  $region5: #{u_network_forward.15} parent=0 // loop_body
    %s14 = ssub.s32 %s9, 1
    %s15 = ssub.s32 %s9, 2
    %s22 = sadd.s32 1, %s17
    %p23 = scmp.ge.s32.totalorder %s22, 1
    %s24 = scalar_select %p23, 0, %s22
    %s25 = sadd.s32 1, %s16
    %s26 = scalar_select %p23, %s25, %s16
    %p27 = scmp.ge.s32.totalorder %s26, 2
    %s28 = scalar_select %p27, 0, %s26
    %s29 = ssub.s32 %s16, %s28
    %s30 = ssub.s32 %s17, %s24
    %s31 = sor.u32 %s29, %s30
    %p32 = scmp.eq.s32.totalorder %s31, 0
    %s34 = sadd.s32 %s33, 1
    %s35 = scalar_select %p32, %s33, %s34
    %p38 = pneg %p32
    %p39 = scmp.eq.s32.totalorder %s9, 1
    %p40 = por %p38, %p39
    %p41 = scmp.ne.s32.totalorder %s33, %s36
    %p42 = scmp.eq.s32.totalorder %s9, 0
    %p43 = por %p41, %p42
    %p44 = scmp.ne.s32.totalorder %s33, %s36
    %p45 = scmp.eq.s32.totalorder %s14, 1
    %p46 = por %p44, %p45
    %p47 = scmp.ne.s32.totalorder %s36, %s37
    %p48 = scmp.eq.s32.totalorder %s14, 0
    %p49 = por %p47, %p48
    %p50 = scmp.ne.s32.totalorder %s36, %s37
    %p51 = scmp.eq.s32.totalorder %s15, 1
    %p52 = por %p50, %p51
    %p54 = scmp.ne.s32.totalorder %s37, %s53
    %p55 = scmp.eq.s32.totalorder %s15, 0
    %p56 = por %p54, %p55
    %s58 = sadd.s32 %s57, 1
    %p61 = scmp.eq.s32.totalorder %s9, 1
    %p62 = scmp.ne.s32.totalorder %s57, %s59
    %p63 = scmp.eq.s32.totalorder %s9, 0
    %p64 = por %p62, %p63
    %p65 = scmp.ne.s32.totalorder %s57, %s59
    %p66 = scmp.eq.s32.totalorder %s14, 1
    %p67 = por %p65, %p66
    %p68 = scmp.ne.s32.totalorder %s59, %s60
    %p69 = scmp.eq.s32.totalorder %s14, 0
    %p70 = por %p68, %p69
    %p71 = scmp.ne.s32.totalorder %s59, %s60
    %p72 = scmp.eq.s32.totalorder %s15, 1
    %p73 = por %p71, %p72
    %p75 = scmp.ne.s32.totalorder %s60, %s74
    %p76 = scmp.eq.s32.totalorder %s15, 0
    %p77 = por %p75, %p76
    %s79 = sadd.s32 %s78, 1
    %p82 = scmp.eq.s32.totalorder %s9, 1
    %p83 = scmp.ne.s32.totalorder %s78, %s80
    %p84 = scmp.eq.s32.totalorder %s9, 0
    %p85 = por %p83, %p84
    %p86 = scmp.ne.s32.totalorder %s78, %s80
    %p87 = scmp.eq.s32.totalorder %s14, 1
    %p88 = por %p86, %p87
    %p89 = scmp.ne.s32.totalorder %s80, %s81
    %p90 = scmp.eq.s32.totalorder %s14, 0
    %p91 = por %p89, %p90
    %p92 = scmp.ne.s32.totalorder %s80, %s81
    %p93 = scmp.eq.s32.totalorder %s15, 1
    %p94 = por %p92, %p93
    %p96 = scmp.ne.s32.totalorder %s81, %s95
    %p97 = scmp.eq.s32.totalorder %s15, 0
    %p98 = por %p96, %p97
    %s99 = ssub.s32 %s16, %s28
    %s100 = ssub.s32 %s17, %s24
    %s101 = sor.u32 %s99, %s100
    %p102 = scmp.eq.s32.totalorder %s101, 0
    %s104 = sadd.s32 %s103, 1
    %s105 = scalar_select %p102, %s103, %s104
    %p108 = pneg %p102
    %p109 = scmp.eq.s32.totalorder %s9, 1
    %p110 = por %p108, %p109
    %p111 = scmp.ne.s32.totalorder %s103, %s106
    %p112 = scmp.eq.s32.totalorder %s9, 0
    %p113 = por %p111, %p112
    %p114 = scmp.ne.s32.totalorder %s103, %s106
    %p115 = scmp.eq.s32.totalorder %s14, 1
    %p116 = por %p114, %p115
    %p117 = scmp.ne.s32.totalorder %s106, %s107
    %p118 = scmp.eq.s32.totalorder %s14, 0
    %p119 = por %p117, %p118
    %p120 = scmp.ne.s32.totalorder %s106, %s107
    %p121 = scmp.eq.s32.totalorder %s15, 1
    %p122 = por %p120, %p121
    %p124 = scmp.ne.s32.totalorder %s107, %s123
    %p125 = scmp.eq.s32.totalorder %s15, 0
    %p126 = por %p124, %p125
    %p127 = scmp.le.s32.totalorder 1, %s9
    %p128 = scmp.lt.s32.totalorder %s9, 3
    %p129 = pnand %p127, %p128
    %p130 = pneg %p129
    // Predicated region
    $region9: #{u_network_forward.15} parent=5 // pred_check
      _
    $region10: #{u_network_forward.15} parent=5 // pred_check_branch
      %132 = sbr.rel (%p129) target = $region12
    $region11: #{u_network_forward.15} parent=5 // pred_region
      %s133 = ssub.s32 %s9, 1
      // Predicated region
      $region13: #{u_network_forward.15} parent=11 // pred_check
        %p134 = pneg %p70
      $region14: #{u_network_forward.15} parent=11 // pred_check_branch
        %136 = sbr.rel (%p134) target = $region16
      $region15: #{u_network_forward.15} parent=11 // pred_region
        _
      $region16: #{u_network_forward.15} parent=11 // pred_fallthru
        _
      // Predicated region
      $region17: #{u_network_forward.15} parent=11 // pred_check
        %p137 = pneg %p91
      $region18: #{u_network_forward.15} parent=11 // pred_check_branch
        %139 = sbr.rel (%p137) target = $region20
      $region19: #{u_network_forward.15} parent=11 // pred_region
        _
      $region20: #{u_network_forward.15} parent=11 // pred_fallthru
        _
    $region12: #{u_network_forward.15} parent=5 // pred_fallthru
      _
    %p140 = scmp.lt.s32.totalorder %s9, 2
    // Predicated region
    $region21: #{u_network_forward.15} parent=5 // pred_check
      %p141 = pneg %p140
    $region22: #{u_network_forward.15} parent=5 // pred_check_branch
      %143 = sbr.rel (%p141) target = $region24
    $region23: #{u_network_forward.15} parent=5 // pred_region
      // Predicated region
      $region25: #{u_network_forward.15} parent=23 // pred_check
        %p144 = pneg %p43
      $region26: #{u_network_forward.15} parent=23 // pred_check_branch
        %146 = sbr.rel (%p144) target = $region28
      $region27: #{u_network_forward.15} parent=23 // pred_region
        %p147 = scmp.lt.s32.totalorder %s16, 1
        %s148 = scalar_select %p147, %s16, 1
        %p149 = scmp.lt.s32.totalorder %s17, 0
        %s150 = scalar_select %p149, %s17, 0
        %s151 = smul.addr %s148, 32
        %s152 = sadd.s32 %s150, %s151
        %s153 = smul.addr %s152, 4
        %s154 = scalar_lea.vmem %s0, %s153
      $region28: #{u_network_forward.15} parent=23 // pred_fallthru
        _
    $region24: #{u_network_forward.15} parent=5 // pred_fallthru
      _
    %p155 = scmp.le.s32.totalorder 1, %s9
    %p156 = scmp.lt.s32.totalorder %s9, 3
    %p157 = pnand %p155, %p156
    %p158 = pneg %p157
    // Predicated region
    $region29: #{u_network_forward.15} parent=5 // pred_check
      _
    $region30: #{u_network_forward.15} parent=5 // pred_check_branch
      %160 = sbr.rel (%p157) target = $region32
    $region31: #{u_network_forward.15} parent=5 // pred_region
      %s161 = ssub.s32 %s9, 1
      %p162 = scmp.lt.s32.totalorder %s18, 1
      %s163 = scalar_select %p162, %s18, 1
      %p164 = scmp.lt.s32.totalorder %s19, 0
      %s165 = scalar_select %p164, %s19, 0
      %s166 = smul.addr %s163, 32
      %s167 = sadd.s32 %s165, %s166
      %s168 = smul.addr %s167, 4
      %s169 = scalar_lea.vmem %s0, %s168
      %p170 = pneg %p49
      %p171 = pneg %p46
      %p172 = pneg %p70
      %p173 = pneg %p67
      %p174 = pneg %p91
      %p175 = pneg %p88
      %p176 = pneg %p119
      %p177 = pneg %p116
      %p178 = scmp.lt.s32.totalorder %s18, 1
      %s179 = scalar_select %p178, %s18, 1
      %p180 = scmp.lt.s32.totalorder %s19, 0
      %s181 = scalar_select %p180, %s19, 0
      %s182 = smul.addr %s179, 2
      %s183 = sadd.s32 %s181, %s182
      %s184 = smul.addr %s183, 4
      %s185 = scalar_lea.vmem %s3, %s184
      %p186 = scmp.lt.s32.totalorder %s18, 1
      %s187 = scalar_select %p186, %s18, 1
      %p188 = scmp.lt.s32.totalorder %s19, 0
      %s189 = scalar_select %p188, %s19, 0
      %s190 = smul.addr %s187, 32
      %s191 = sadd.s32 %s189, %s190
      %s192 = smul.addr %s191, 4
      %s193 = scalar_lea.vmem %s0, %s192
      %p194 = scmp.lt.s32.totalorder %s18, 1
      %s195 = scalar_select %p194, %s18, 1
      %p196 = scmp.lt.s32.totalorder %s19, 0
      %s197 = scalar_select %p196, %s19, 0
      %s198 = smul.addr %s195, 2
      %s199 = sadd.s32 %s197, %s198
      %s200 = smul.addr %s199, 4
      %s201 = scalar_lea.vmem %s3, %s200
      %v203 = vld [vmem:[%s1] sm:$0xff]
      %v204 = vld [vmem:[%s1 + $0x8] sm:$0xff]
      %v205 = vld [vmem:[%s193] sm:$0xf]
      %v206 = vld [vmem:[%s193 + $0x4] sm:$0xf]
      %v207 = vld [vmem:[%s193 + $0x8] sm:$0xf]
      %v208 = vld [vmem:[%s193 + $0xc] sm:$0xf]
      %v209 = vld [vmem:[%s193 + $0x10] sm:$0xf]
      %v210 = vld [vmem:[%s193 + $0x14] sm:$0xf]
      %v211 = vld [vmem:[%s193 + $0x18] sm:$0xf]
      %v212 = vld [vmem:[%s193 + $0x1c] sm:$0xf]
      %v213 = vld [vmem:[%s193 + $0x20] sm:$0xf]
      %v214 = vld [vmem:[%s193 + $0x24] sm:$0xf]
      %v215 = vld [vmem:[%s193 + $0x28] sm:$0xf]
      %v216 = vld [vmem:[%s193 + $0x2c] sm:$0xf]
      %v217 = vld [vmem:[%s193 + $0x30] sm:$0xf]
      %v218 = vld [vmem:[%s193 + $0x34] sm:$0xf]
      %v219 = vld [vmem:[%s193 + $0x38] sm:$0xf]
      %v220 = vld [vmem:[%s193 + $0x3c] sm:$0xf]
      %v221 = vld [vmem:[%s193 + $0x40] sm:$0xf]
      %v222 = vld [vmem:[%s193 + $0x44] sm:$0xf]
      %v223 = vld [vmem:[%s193 + $0x48] sm:$0xf]
      %v224 = vld [vmem:[%s193 + $0x4c] sm:$0xf]
      %v225 = vld [vmem:[%s193 + $0x50] sm:$0xf]
      %v226 = vld [vmem:[%s193 + $0x54] sm:$0xf]
      %v227 = vld [vmem:[%s193 + $0x58] sm:$0xf]
      %v228 = vld [vmem:[%s193 + $0x5c] sm:$0xf]
      %v229 = vld [vmem:[%s193 + $0x60] sm:$0xf]
      %v230 = vld [vmem:[%s193 + $0x64] sm:$0xf]
      %v231 = vld [vmem:[%s193 + $0x68] sm:$0xf]
      %v232 = vld [vmem:[%s193 + $0x6c] sm:$0xf]
      %v233 = vld [vmem:[%s193 + $0x70] sm:$0xf]
      %v234 = vld [vmem:[%s193 + $0x74] sm:$0xf]
      %v235 = vld [vmem:[%s193 + $0x78] sm:$0xf]
      %v236 = vld [vmem:[%s193 + $0x7c] sm:$0xf]
      %v237 = vld [vmem:[%s2] sm:$0xff]
      %v238 = vld [vmem:[%s2 + $0x8] sm:$0xff]
      %v241 = vunpack.c.l.b16 %v203
      %v242 = vunpack.c.h.b16 %v203
      %v243 = vunpack.c.l.b16 %v204
      %v244 = vunpack.c.h.b16 %v204
      %v245 = vpack.c.b16 %v243, %v241
      %v246 = vpack.c.b16 %v244, %v242
      %v281 = vunpack.c.l.b16 %v205
      %v282 = vunpack.c.l.b16 %v206
      %v283 = vunpack.c.l.b16 %v207
      %v284 = vunpack.c.l.b16 %v208
      %v285 = vunpack.c.l.b16 %v209
      %v286 = vunpack.c.l.b16 %v210
      %v287 = vunpack.c.l.b16 %v211
      %v288 = vunpack.c.l.b16 %v212
      %v289 = vunpack.c.l.b16 %v213
      %v290 = vunpack.c.l.b16 %v214
      %v291 = vunpack.c.l.b16 %v215
      %v292 = vunpack.c.l.b16 %v216
      %v293 = vunpack.c.l.b16 %v217
      %v294 = vunpack.c.l.b16 %v218
      %v295 = vunpack.c.l.b16 %v219
      %v296 = vunpack.c.l.b16 %v220
      %v297 = vunpack.c.l.b16 %v221
      %v298 = vunpack.c.l.b16 %v222
      %v299 = vunpack.c.l.b16 %v223
      %v300 = vunpack.c.l.b16 %v224
      %v301 = vunpack.c.l.b16 %v225
      %v302 = vunpack.c.l.b16 %v226
      %v303 = vunpack.c.l.b16 %v227
      %v304 = vunpack.c.l.b16 %v228
      %v305 = vunpack.c.l.b16 %v229
      %v306 = vunpack.c.l.b16 %v230
      %v307 = vunpack.c.l.b16 %v231
      %v308 = vunpack.c.l.b16 %v232
      %v309 = vunpack.c.l.b16 %v233
      %v310 = vunpack.c.l.b16 %v234
      %v311 = vunpack.c.l.b16 %v235
      %v312 = vunpack.c.l.b16 %v236
      %v313 = vpack.c.b16 %v282, %v281
      %v314 = vpack.c.b16 %v284, %v283
      %v315 = vpack.c.b16 %v286, %v285
      %v316 = vpack.c.b16 %v288, %v287
      %v317 = vpack.c.b16 %v290, %v289
      %v318 = vpack.c.b16 %v292, %v291
      %v319 = vpack.c.b16 %v294, %v293
      %v320 = vpack.c.b16 %v296, %v295
      %v321 = vpack.c.b16 %v298, %v297
      %v322 = vpack.c.b16 %v300, %v299
      %v323 = vpack.c.b16 %v302, %v301
      %v324 = vpack.c.b16 %v304, %v303
      %v325 = vpack.c.b16 %v306, %v305
      %v326 = vpack.c.b16 %v308, %v307
      %v327 = vpack.c.b16 %v310, %v309
      %v328 = vpack.c.b16 %v312, %v311
      %345 = vmatprep.subr.bf16.mxu0 0
      %346 = vmatpush1.bf16.msra.mxu0 %v313
      %347 = vmatprep.subr.bf16.mxu0 0
      %348 = vmatpush1.bf16.msra.mxu0 %v314
      %349 = vmatprep.subr.bf16.mxu0 0
      %350 = vmatpush1.bf16.msra.mxu0 %v315
      %351 = vmatprep.subr.bf16.mxu0 0
      %352 = vmatpush1.bf16.msra.mxu0 %v316
      %353 = vmatprep.subr.bf16.mxu0 0
      %354 = vmatpush1.bf16.msra.mxu0 %v317
      %355 = vmatprep.subr.bf16.mxu0 0
      %356 = vmatpush1.bf16.msra.mxu0 %v318
      %357 = vmatprep.subr.bf16.mxu0 0
      %358 = vmatpush1.bf16.msra.mxu0 %v319
      %359 = vmatprep.subr.bf16.mxu0 0
      %360 = vmatpush1.bf16.msra.mxu0 %v320
      %361 = vmatprep.subr.bf16.mxu0 0
      %362 = vmatpush1.bf16.msra.mxu0 %v321
      %363 = vmatprep.subr.bf16.mxu0 0
      %364 = vmatpush1.bf16.msra.mxu0 %v322
      %365 = vmatprep.subr.bf16.mxu0 0
      %366 = vmatpush1.bf16.msra.mxu0 %v323
      %367 = vmatprep.subr.bf16.mxu0 0
      %368 = vmatpush1.bf16.msra.mxu0 %v324
      %369 = vmatprep.subr.bf16.mxu0 0
      %370 = vmatpush1.bf16.msra.mxu0 %v325
      %371 = vmatprep.subr.bf16.mxu0 0
      %372 = vmatpush1.bf16.msra.mxu0 %v326
      %373 = vmatprep.subr.bf16.mxu0 0
      %374 = vmatpush1.bf16.msra.mxu0 %v327
      %375 = vmatprep.subr.bf16.mxu0 0
      %376 = vmatpush1.bf16.msra.mxu0 %v328
      %377 = vmatprep.mubr.bf16.mxu0 %v246
      %378 = vmatmul.mubr.bf16.gmra.mrb[0].mxu0 %v245
      %v379 = vpop.f32.mrb[0].mxu0
      %v380 = vadd.f32 %v237, %v379
      %v381 = vpop.f32.mrb[0].mxu0
      %v382 = vpop.f32.mrb[0].mxu0
      %v383 = vadd.f32 %v238, %v382
      %v384 = vpop.f32.mrb[0].mxu0
      %385 = vdwg.mxu0
      %vm386 = vcmp.ge.f32.partialorder %v380, 0.0
      %vm387 = vcmp.ge.f32.partialorder %v383, 0.0
      %v388 = vmul.f32 %v380, 0.2
      %v389 = vmul.f32 %v383, 0.2
      %v390 = vsel %vm386, %v380, %v388
      %v391 = vsel %vm387, %v383, %v389
      %v392 = vpack.c.bf16 %v391, %v390
      %v394 = vunpack.c.l.b16 %v392
      %v395 = vunpack.c.h.b16 %v392
      %v396 = vpack.c.b16 %v394, %v394
      %v397 = vpack.c.b16 %v395, %v395
      %vm400 = vcmask 3072
      %401 = vst.msk [vmem:[%s201] sm:$0xf] %vm400, %v396
      %402 = vst.msk [vmem:[%s201 + $0x4] sm:$0xf] %vm400, %v397
      %p403 = scmp.lt.s32.totalorder %s18, 1
      %s404 = scalar_select %p403, %s18, 1
      %p405 = scmp.lt.s32.totalorder %s19, 0
      %s406 = scalar_select %p405, %s19, 0
      %s407 = smul.addr %s404, 2
      %s408 = sadd.s32 %s406, %s407
      %s409 = smul.addr %s408, 4
      %s410 = scalar_lea.vmem %s3, %s409
      // Predicated region
      $region33: #{u_network_forward.15} parent=31 // pred_check
        %p411 = pneg %p116
      $region34: #{u_network_forward.15} parent=31 // pred_check_branch
        %413 = sbr.rel (%p411) target = $region36
      $region35: #{u_network_forward.15} parent=31 // pred_region
        _
      $region36: #{u_network_forward.15} parent=31 // pred_fallthru
        _
    $region32: #{u_network_forward.15} parent=5 // pred_fallthru
      _
    %p414 = scmp.le.s32.totalorder 2, %s9
    // Predicated region
    $region37: #{u_network_forward.15} parent=5 // pred_check
      %p415 = pneg %p414
    $region38: #{u_network_forward.15} parent=5 // pred_check_branch
      %417 = sbr.rel (%p415) target = $region40
    $region39: #{u_network_forward.15} parent=5 // pred_region
      %s418 = ssub.s32 %s9, 2
      // Predicated region
      $region41: #{u_network_forward.15} parent=39 // pred_check
        %p419 = pneg %p122
      $region42: #{u_network_forward.15} parent=39 // pred_check_branch
        %421 = sbr.rel (%p419) target = $region44
      $region43: #{u_network_forward.15} parent=39 // pred_region
        %p422 = scmp.lt.s32.totalorder %s20, 1
        %s423 = scalar_select %p422, %s20, 1
        %p424 = scmp.lt.s32.totalorder %s21, 0
        %s425 = scalar_select %p424, %s21, 0
        %s426 = smul.addr %s423, 2
        %s427 = sadd.s32 %s425, %s426
        %s428 = smul.addr %s427, 4
        %s429 = scalar_lea.vmem %s3, %s428
      $region44: #{u_network_forward.15} parent=39 // pred_fallthru
        _
    $region40: #{u_network_forward.15} parent=5 // pred_fallthru
      _
  $region6: #{u_network_forward.15} parent=0 // loop_footer
    %s13 = sadd.s32 1, %s9
  $region7: #{u_network_forward.15} parent=0 // loop_footer_branch
    %8 = sbr.rel target = $region3
  $region8: #{u_network_forward.15} parent=0 // loop_exit
    _

// kernel: u_network_forward.16
$region0: #{u_network_forward.16}
  #allocation0 [shape = 'u32[]', space=smem, size = 0x4, offset = 0x4, fixed_abs, tag = 'smem constant byte address 0x4 - core index']
  #allocation1 [shape = 'u32[144,128]{1,0:T(1,128)}', space=vmem, size = 0x12000, scoped, tag = 'internal scratch']
  %s0 = inlined_call_operand.vmem [shape: bf16[2,144,1], index: 0, kind: input, shape index: {}]
  %s1 = inlined_call_operand.vmem [shape: bf16[16,144], index: 1, kind: input, shape index: {}]
  %s2 = inlined_call_operand.vmem [shape: f32[16,1], index: 2, kind: input, shape index: {}]
  %s3 = inlined_call_operand.vmem [shape: bf16[2,16,1], index: 3, kind: output, shape index: {}]
  %s4 = sld [smem:[#allocation0]]
  $region45: #{u_network_forward.16} parent=0
    _
  %s6 = ssub.s32 1, %s4
  %s7 = scalar_select 0, %s6, %s4
  loop: start=0, step=1, limit=4
  $region2: #{u_network_forward.16} parent=0 // loop_pre_header
    _
  $region3: #{u_network_forward.16} parent=0 // loop_header
    %s9 = sphi 0, %s13
    %p10 = scmp.ge.s32.totalorder %s9, 4
    %s16 = sphi 0, %s28
    %s17 = sphi 0, %s24
    %s18 = sphi 0, %s16
    %s19 = sphi 0, %s17
    %s20 = sphi 0, %s18
    %s21 = sphi 0, %s19
    %s33 = sphi 0, %s35
    %s36 = sphi 0, %s33
    %s37 = sphi 0, %s36
    %s53 = sphi 0, %s37
    %s57 = sphi 0, %s57
    %s59 = sphi 0, %s57
    %s60 = sphi 0, %s59
    %s74 = sphi 0, %s60
    %s78 = sphi 0, %s78
    %s80 = sphi 0, %s78
    %s81 = sphi 0, %s80
    %s95 = sphi 0, %s81
    %s103 = sphi 0, %s105
    %s106 = sphi 0, %s103
    %s107 = sphi 0, %s106
    %s123 = sphi 0, %s107
  $region4: #{u_network_forward.16} parent=0 // loop_header_branch
    %12 = sbr.rel (%p10) target = $region8
  $region5: #{u_network_forward.16} parent=0 // loop_body
    %s14 = ssub.s32 %s9, 1
    %s15 = ssub.s32 %s9, 2
    %s22 = sadd.s32 1, %s17
    %p23 = scmp.ge.s32.totalorder %s22, 1
    %s24 = scalar_select %p23, 0, %s22
    %s25 = sadd.s32 1, %s16
    %s26 = scalar_select %p23, %s25, %s16
    %p27 = scmp.ge.s32.totalorder %s26, 2
    %s28 = scalar_select %p27, 0, %s26
    %s29 = ssub.s32 %s16, %s28
    %s30 = ssub.s32 %s17, %s24
    %s31 = sor.u32 %s29, %s30
    %p32 = scmp.eq.s32.totalorder %s31, 0
    %s34 = sadd.s32 %s33, 1
    %s35 = scalar_select %p32, %s33, %s34
    %p38 = pneg %p32
    %p39 = scmp.eq.s32.totalorder %s9, 1
    %p40 = por %p38, %p39
    %p41 = scmp.ne.s32.totalorder %s33, %s36
    %p42 = scmp.eq.s32.totalorder %s9, 0
    %p43 = por %p41, %p42
    %p44 = scmp.ne.s32.totalorder %s33, %s36
    %p45 = scmp.eq.s32.totalorder %s14, 1
    %p46 = por %p44, %p45
    %p47 = scmp.ne.s32.totalorder %s36, %s37
    %p48 = scmp.eq.s32.totalorder %s14, 0
    %p49 = por %p47, %p48
    %p50 = scmp.ne.s32.totalorder %s36, %s37
    %p51 = scmp.eq.s32.totalorder %s15, 1
    %p52 = por %p50, %p51
    %p54 = scmp.ne.s32.totalorder %s37, %s53
    %p55 = scmp.eq.s32.totalorder %s15, 0
    %p56 = por %p54, %p55
    %s58 = sadd.s32 %s57, 1
    %p61 = scmp.eq.s32.totalorder %s9, 1
    %p62 = scmp.ne.s32.totalorder %s57, %s59
    %p63 = scmp.eq.s32.totalorder %s9, 0
    %p64 = por %p62, %p63
    %p65 = scmp.ne.s32.totalorder %s57, %s59
    %p66 = scmp.eq.s32.totalorder %s14, 1
    %p67 = por %p65, %p66
    %p68 = scmp.ne.s32.totalorder %s59, %s60
    %p69 = scmp.eq.s32.totalorder %s14, 0
    %p70 = por %p68, %p69
    %p71 = scmp.ne.s32.totalorder %s59, %s60
    %p72 = scmp.eq.s32.totalorder %s15, 1
    %p73 = por %p71, %p72
    %p75 = scmp.ne.s32.totalorder %s60, %s74
    %p76 = scmp.eq.s32.totalorder %s15, 0
    %p77 = por %p75, %p76
    %s79 = sadd.s32 %s78, 1
    %p82 = scmp.eq.s32.totalorder %s9, 1
    %p83 = scmp.ne.s32.totalorder %s78, %s80
    %p84 = scmp.eq.s32.totalorder %s9, 0
    %p85 = por %p83, %p84
    %p86 = scmp.ne.s32.totalorder %s78, %s80
    %p87 = scmp.eq.s32.totalorder %s14, 1
    %p88 = por %p86, %p87
    %p89 = scmp.ne.s32.totalorder %s80, %s81
    %p90 = scmp.eq.s32.totalorder %s14, 0
    %p91 = por %p89, %p90
    %p92 = scmp.ne.s32.totalorder %s80, %s81
    %p93 = scmp.eq.s32.totalorder %s15, 1
    %p94 = por %p92, %p93
    %p96 = scmp.ne.s32.totalorder %s81, %s95
    %p97 = scmp.eq.s32.totalorder %s15, 0
    %p98 = por %p96, %p97
    %s99 = ssub.s32 %s16, %s28
    %s100 = ssub.s32 %s17, %s24
    %s101 = sor.u32 %s99, %s100
    %p102 = scmp.eq.s32.totalorder %s101, 0
    %s104 = sadd.s32 %s103, 1
    %s105 = scalar_select %p102, %s103, %s104
    %p108 = pneg %p102
    %p109 = scmp.eq.s32.totalorder %s9, 1
    %p110 = por %p108, %p109
    %p111 = scmp.ne.s32.totalorder %s103, %s106
    %p112 = scmp.eq.s32.totalorder %s9, 0
    %p113 = por %p111, %p112
    %p114 = scmp.ne.s32.totalorder %s103, %s106
    %p115 = scmp.eq.s32.totalorder %s14, 1
    %p116 = por %p114, %p115
    %p117 = scmp.ne.s32.totalorder %s106, %s107
    %p118 = scmp.eq.s32.totalorder %s14, 0
    %p119 = por %p117, %p118
    %p120 = scmp.ne.s32.totalorder %s106, %s107
    %p121 = scmp.eq.s32.totalorder %s15, 1
    %p122 = por %p120, %p121
    %p124 = scmp.ne.s32.totalorder %s107, %s123
    %p125 = scmp.eq.s32.totalorder %s15, 0
    %p126 = por %p124, %p125
    %p127 = scmp.le.s32.totalorder 1, %s9
    %p128 = scmp.lt.s32.totalorder %s9, 3
    %p129 = pnand %p127, %p128
    %p130 = pneg %p129
    // Predicated region
    $region9: #{u_network_forward.16} parent=5 // pred_check
      _
    $region10: #{u_network_forward.16} parent=5 // pred_check_branch
      %132 = sbr.rel (%p129) target = $region12
    $region11: #{u_network_forward.16} parent=5 // pred_region
      %s133 = ssub.s32 %s9, 1
      // Predicated region
      $region13: #{u_network_forward.16} parent=11 // pred_check
        %p134 = pneg %p70
      $region14: #{u_network_forward.16} parent=11 // pred_check_branch
        %136 = sbr.rel (%p134) target = $region16
      $region15: #{u_network_forward.16} parent=11 // pred_region
        _
      $region16: #{u_network_forward.16} parent=11 // pred_fallthru
        _
      // Predicated region
      $region17: #{u_network_forward.16} parent=11 // pred_check
        %p137 = pneg %p91
      $region18: #{u_network_forward.16} parent=11 // pred_check_branch
        %139 = sbr.rel (%p137) target = $region20
      $region19: #{u_network_forward.16} parent=11 // pred_region
        _
      $region20: #{u_network_forward.16} parent=11 // pred_fallthru
        _
    $region12: #{u_network_forward.16} parent=5 // pred_fallthru
      _
    %p140 = scmp.lt.s32.totalorder %s9, 2
    // Predicated region
    $region21: #{u_network_forward.16} parent=5 // pred_check
      %p141 = pneg %p140
    $region22: #{u_network_forward.16} parent=5 // pred_check_branch
      %143 = sbr.rel (%p141) target = $region24
    $region23: #{u_network_forward.16} parent=5 // pred_region
      // Predicated region
      $region25: #{u_network_forward.16} parent=23 // pred_check
        %p144 = pneg %p43
      $region26: #{u_network_forward.16} parent=23 // pred_check_branch
        %146 = sbr.rel (%p144) target = $region28
      $region27: #{u_network_forward.16} parent=23 // pred_region
        %p147 = scmp.lt.s32.totalorder %s16, 1
        %s148 = scalar_select %p147, %s16, 1
        %p149 = scmp.lt.s32.totalorder %s17, 0
        %s150 = scalar_select %p149, %s17, 0
        %s151 = smul.addr %s148, 18
        %s152 = sadd.s32 %s150, %s151
        %s153 = smul.addr %s152, 4
        %s154 = scalar_lea.vmem %s0, %s153
      $region28: #{u_network_forward.16} parent=23 // pred_fallthru
        _
    $region24: #{u_network_forward.16} parent=5 // pred_fallthru
      _
    %p155 = scmp.le.s32.totalorder 1, %s9
    %p156 = scmp.lt.s32.totalorder %s9, 3
    %p157 = pnand %p155, %p156
    %p158 = pneg %p157
    // Predicated region
    $region29: #{u_network_forward.16} parent=5 // pred_check
      _
    $region30: #{u_network_forward.16} parent=5 // pred_check_branch
      %160 = sbr.rel (%p157) target = $region32
    $region31: #{u_network_forward.16} parent=5 // pred_region
      %s161 = ssub.s32 %s9, 1
      %p162 = scmp.lt.s32.totalorder %s18, 1
      %s163 = scalar_select %p162, %s18, 1
      %p164 = scmp.lt.s32.totalorder %s19, 0
      %s165 = scalar_select %p164, %s19, 0
      %s166 = smul.addr %s163, 18
      %s167 = sadd.s32 %s165, %s166
      %s168 = smul.addr %s167, 4
      %s169 = scalar_lea.vmem %s0, %s168
      %p170 = pneg %p49
      %p171 = pneg %p46
      %p172 = pneg %p70
      %p173 = pneg %p67
      %p174 = pneg %p91
      %p175 = pneg %p88
      %p176 = pneg %p119
      %p177 = pneg %p116
      %p178 = scmp.lt.s32.totalorder %s18, 1
      %s179 = scalar_select %p178, %s18, 1
      %p180 = scmp.lt.s32.totalorder %s19, 0
      %s181 = scalar_select %p180, %s19, 0
      %s182 = smul.addr %s179, 2
      %s183 = sadd.s32 %s181, %s182
      %s184 = smul.addr %s183, 4
      %s185 = scalar_lea.vmem %s3, %s184
      %p186 = scmp.lt.s32.totalorder %s18, 1
      %s187 = scalar_select %p186, %s18, 1
      %p188 = scmp.lt.s32.totalorder %s19, 0
      %s189 = scalar_select %p188, %s19, 0
      %s190 = smul.addr %s187, 18
      %s191 = sadd.s32 %s189, %s190
      %s192 = smul.addr %s191, 4
      %s193 = scalar_lea.vmem %s0, %s192
      %p194 = scmp.lt.s32.totalorder %s18, 1
      %s195 = scalar_select %p194, %s18, 1
      %p196 = scmp.lt.s32.totalorder %s19, 0
      %s197 = scalar_select %p196, %s19, 0
      %s198 = smul.addr %s195, 2
      %s199 = sadd.s32 %s197, %s198
      %s200 = smul.addr %s199, 4
      %s201 = scalar_lea.vmem %s3, %s200
      %v203 = vld [vmem:[%s1] sm:$0xff]
      %v204 = vld [vmem:[%s1 + $0x8] sm:$0xff]
      %v205 = vld [vmem:[%s193] sm:$0xf]
      %v206 = vld [vmem:[%s193 + $0x4] sm:$0xf]
      %v207 = vld [vmem:[%s193 + $0x8] sm:$0xf]
      %v208 = vld [vmem:[%s193 + $0xc] sm:$0xf]
      %v209 = vld [vmem:[%s193 + $0x10] sm:$0xf]
      %v210 = vld [vmem:[%s193 + $0x14] sm:$0xf]
      %v211 = vld [vmem:[%s193 + $0x18] sm:$0xf]
      %v212 = vld [vmem:[%s193 + $0x1c] sm:$0xf]
      %v213 = vld [vmem:[%s193 + $0x20] sm:$0xf]
      %v214 = vld [vmem:[%s193 + $0x24] sm:$0xf]
      %v215 = vld [vmem:[%s193 + $0x28] sm:$0xf]
      %v216 = vld [vmem:[%s193 + $0x2c] sm:$0xf]
      %v217 = vld [vmem:[%s193 + $0x30] sm:$0xf]
      %v218 = vld [vmem:[%s193 + $0x34] sm:$0xf]
      %v219 = vld [vmem:[%s193 + $0x38] sm:$0xf]
      %v220 = vld [vmem:[%s193 + $0x3c] sm:$0xf]
      %v221 = vld [vmem:[%s193 + $0x40] sm:$0xf]
      %v222 = vld [vmem:[%s193 + $0x44] sm:$0xf]
      %v223 = vld [vmem:[%s2] sm:$0xff]
      %v224 = vld [vmem:[%s2 + $0x8] sm:$0xff]
      %v227 = vunpack.c.l.b16 %v203
      %v228 = vunpack.c.h.b16 %v203
      %v229 = vunpack.c.l.b16 %v204
      %v230 = vunpack.c.h.b16 %v204
      %v231 = vpack.c.b16 %v229, %v227
      %v232 = vpack.c.b16 %v230, %v228
      %v252 = vunpack.c.l.b16 %v205
      %v253 = vunpack.c.l.b16 %v206
      %v254 = vunpack.c.l.b16 %v207
      %v255 = vunpack.c.l.b16 %v208
      %v256 = vunpack.c.l.b16 %v209
      %v257 = vunpack.c.l.b16 %v210
      %v258 = vunpack.c.l.b16 %v211
      %v259 = vunpack.c.l.b16 %v212
      %v260 = vunpack.c.l.b16 %v213
      %v261 = vunpack.c.l.b16 %v214
      %v262 = vunpack.c.l.b16 %v215
      %v263 = vunpack.c.l.b16 %v216
      %v264 = vunpack.c.l.b16 %v217
      %v265 = vunpack.c.l.b16 %v218
      %v266 = vunpack.c.l.b16 %v219
      %v267 = vunpack.c.l.b16 %v220
      %v268 = vunpack.c.l.b16 %v221
      %v269 = vunpack.c.l.b16 %v222
      %v270 = vpack.c.b16 %v253, %v252
      %v271 = vpack.c.b16 %v255, %v254
      %v272 = vpack.c.b16 %v257, %v256
      %v273 = vpack.c.b16 %v259, %v258
      %v274 = vpack.c.b16 %v261, %v260
      %v275 = vpack.c.b16 %v263, %v262
      %v276 = vpack.c.b16 %v265, %v264
      %v277 = vpack.c.b16 %v267, %v266
      %v278 = vpack.c.b16 %v269, %v268
      %vm288 = vcmask 130048
      %v290 = vsel %vm288, %v232, 0
      %292 = vmatprep.subr.bf16.mxu0 0
      %293 = vmatpush1.bf16.msra.mxu0 %v270
      %294 = vmatprep.subr.bf16.mxu0 0
      %295 = vmatpush1.bf16.msra.mxu0 %v271
      %296 = vmatprep.subr.bf16.mxu0 0
      %297 = vmatpush1.bf16.msra.mxu0 %v272
      %298 = vmatprep.subr.bf16.mxu0 0
      %299 = vmatpush1.bf16.msra.mxu0 %v273
      %300 = vmatprep.subr.bf16.mxu0 0
      %301 = vmatpush1.bf16.msra.mxu0 %v274
      %302 = vmatprep.subr.bf16.mxu0 0
      %303 = vmatpush1.bf16.msra.mxu0 %v275
      %304 = vmatprep.subr.bf16.mxu0 0
      %305 = vmatpush1.bf16.msra.mxu0 %v276
      %306 = vmatprep.subr.bf16.mxu0 0
      %307 = vmatpush1.bf16.msra.mxu0 %v277
      %308 = vmatprep.subr.bf16.mxu0 0
      %309 = vmatpush1.bf16.msra.mxu0 %v278
      %310 = vmatprep.subr.bf16.mxu0 0
      %311 = vmatpush1.bf16.msra.mxu0 0
      %312 = vmatprep.subr.bf16.mxu0 0
      %313 = vmatpush1.bf16.msra.mxu0 0
      %314 = vmatprep.subr.bf16.mxu0 0
      %315 = vmatpush1.bf16.msra.mxu0 0
      %316 = vmatprep.subr.bf16.mxu0 0
      %317 = vmatpush1.bf16.msra.mxu0 0
      %318 = vmatprep.subr.bf16.mxu0 0
      %319 = vmatpush1.bf16.msra.mxu0 0
      %320 = vmatprep.subr.bf16.mxu0 0
      %321 = vmatpush1.bf16.msra.mxu0 0
      %322 = vmatprep.subr.bf16.mxu0 0
      %323 = vmatpush1.bf16.msra.mxu0 0
      %324 = vmatprep.mubr.bf16.mxu0 %v290
      %325 = vmatmul.mubr.bf16.gmra.mrb[0].mxu0 %v231
      %v326 = vpop.f32.mrb[0].mxu0
      %v327 = vadd.f32 %v223, %v326
      %v328 = vpop.f32.mrb[0].mxu0
      %v329 = vpop.f32.mrb[0].mxu0
      %v330 = vadd.f32 %v224, %v329
      %v331 = vpop.f32.mrb[0].mxu0
      %332 = vdwg.mxu0
      %vm333 = vcmp.ge.f32.partialorder %v327, 0.0
      %vm334 = vcmp.ge.f32.partialorder %v330, 0.0
      %v335 = vmul.f32 %v327, 0.2
      %v336 = vmul.f32 %v330, 0.2
      %v337 = vsel %vm333, %v327, %v335
      %v338 = vsel %vm334, %v330, %v336
      %v339 = vpack.c.bf16 %v338, %v337
      %v341 = vunpack.c.l.b16 %v339
      %v342 = vunpack.c.h.b16 %v339
      %v343 = vpack.c.b16 %v341, %v341
      %v344 = vpack.c.b16 %v342, %v342
      %vm347 = vcmask 3072
      %348 = vst.msk [vmem:[%s201] sm:$0xf] %vm347, %v343
      %349 = vst.msk [vmem:[%s201 + $0x4] sm:$0xf] %vm347, %v344
      %p350 = scmp.lt.s32.totalorder %s18, 1
      %s351 = scalar_select %p350, %s18, 1
      %p352 = scmp.lt.s32.totalorder %s19, 0
      %s353 = scalar_select %p352, %s19, 0
      %s354 = smul.addr %s351, 2
      %s355 = sadd.s32 %s353, %s354
      %s356 = smul.addr %s355, 4
      %s357 = scalar_lea.vmem %s3, %s356
      // Predicated region
      $region33: #{u_network_forward.16} parent=31 // pred_check
        %p358 = pneg %p116
      $region34: #{u_network_forward.16} parent=31 // pred_check_branch
        %360 = sbr.rel (%p358) target = $region36
      $region35: #{u_network_forward.16} parent=31 // pred_region
        _
      $region36: #{u_network_forward.16} parent=31 // pred_fallthru
        _
    $region32: #{u_network_forward.16} parent=5 // pred_fallthru
      _
    %p361 = scmp.le.s32.totalorder 2, %s9
    // Predicated region
    $region37: #{u_network_forward.16} parent=5 // pred_check
      %p362 = pneg %p361
    $region38: #{u_network_forward.16} parent=5 // pred_check_branch
      %364 = sbr.rel (%p362) target = $region40
    $region39: #{u_network_forward.16} parent=5 // pred_region
      %s365 = ssub.s32 %s9, 2
      // Predicated region
      $region41: #{u_network_forward.16} parent=39 // pred_check
        %p366 = pneg %p122
      $region42: #{u_network_forward.16} parent=39 // pred_check_branch
        %368 = sbr.rel (%p366) target = $region44
      $region43: #{u_network_forward.16} parent=39 // pred_region
        %p369 = scmp.lt.s32.totalorder %s20, 1
        %s370 = scalar_select %p369, %s20, 1
        %p371 = scmp.lt.s32.totalorder %s21, 0
        %s372 = scalar_select %p371, %s21, 0
        %s373 = smul.addr %s370, 2
        %s374 = sadd.s32 %s372, %s373
        %s375 = smul.addr %s374, 4
        %s376 = scalar_lea.vmem %s3, %s375
      $region44: #{u_network_forward.16} parent=39 // pred_fallthru
        _
    $region40: #{u_network_forward.16} parent=5 // pred_fallthru
      _
  $region6: #{u_network_forward.16} parent=0 // loop_footer
    %s13 = sadd.s32 1, %s9
  $region7: #{u_network_forward.16} parent=0 // loop_footer_branch
    %8 = sbr.rel target = $region3
  $region8: #{u_network_forward.16} parent=0 // loop_exit
    _

// kernel: u_network_forward.17
$region0: #{u_network_forward.17}
  #allocation0 [shape = 'u32[]', space=smem, size = 0x4, offset = 0x4, fixed_abs, tag = 'smem constant byte address 0x4 - core index']
  #allocation1 [shape = 'u32[144,128]{1,0:T(1,128)}', space=vmem, size = 0x12000, scoped, tag = 'internal scratch']
  %s0 = inlined_call_operand.vmem [shape: bf16[2,144,4], index: 0, kind: input, shape index: {}]
  %s1 = inlined_call_operand.vmem [shape: bf16[2,144,4], index: 1, kind: input, shape index: {}]
  %s2 = inlined_call_operand.vmem [shape: bf16[16,144], index: 2, kind: input, shape index: {}]
  %s3 = inlined_call_operand.vmem [shape: bf16[16,144], index: 3, kind: input, shape index: {}]
  %s4 = inlined_call_operand.vmem [shape: f32[16,1], index: 4, kind: input, shape index: {}]
  %s5 = inlined_call_operand.vmem [shape: bf16[2,16,4], index: 5, kind: output, shape index: {}]
  %s6 = sld [smem:[#allocation0]]
  $region53: #{u_network_forward.17} parent=0
    _
  %s8 = ssub.s32 1, %s6
  %s9 = scalar_select 0, %s8, %s6
  loop: start=0, step=1, limit=4
  $region2: #{u_network_forward.17} parent=0 // loop_pre_header
    _
  $region3: #{u_network_forward.17} parent=0 // loop_header
    %s11 = sphi 0, %s15
    %p12 = scmp.ge.s32.totalorder %s11, 4
    %s18 = sphi 0, %s30
    %s19 = sphi 0, %s26
    %s20 = sphi 0, %s18
    %s21 = sphi 0, %s19
    %s22 = sphi 0, %s20
    %s23 = sphi 0, %s21
    %s35 = sphi 0, %s37
    %s38 = sphi 0, %s35
    %s39 = sphi 0, %s38
    %s55 = sphi 0, %s39
    %s63 = sphi 0, %s65
    %s66 = sphi 0, %s63
    %s67 = sphi 0, %s66
    %s83 = sphi 0, %s67
    %s87 = sphi 0, %s87
    %s89 = sphi 0, %s87
    %s90 = sphi 0, %s89
    %s104 = sphi 0, %s90
    %s108 = sphi 0, %s108
    %s110 = sphi 0, %s108
    %s111 = sphi 0, %s110
    %s125 = sphi 0, %s111
    %s129 = sphi 0, %s129
    %s131 = sphi 0, %s129
    %s132 = sphi 0, %s131
    %s146 = sphi 0, %s132
    %s154 = sphi 0, %s156
    %s157 = sphi 0, %s154
    %s158 = sphi 0, %s157
    %s174 = sphi 0, %s158
  $region4: #{u_network_forward.17} parent=0 // loop_header_branch
    %14 = sbr.rel (%p12) target = $region8
  $region5: #{u_network_forward.17} parent=0 // loop_body
    %s16 = ssub.s32 %s11, 1
    %s17 = ssub.s32 %s11, 2
    %s24 = sadd.s32 1, %s19
    %p25 = scmp.ge.s32.totalorder %s24, 1
    %s26 = scalar_select %p25, 0, %s24
    %s27 = sadd.s32 1, %s18
    %s28 = scalar_select %p25, %s27, %s18
    %p29 = scmp.ge.s32.totalorder %s28, 2
    %s30 = scalar_select %p29, 0, %s28
    %s31 = ssub.s32 %s18, %s30
    %s32 = ssub.s32 %s19, %s26
    %s33 = sor.u32 %s31, %s32
    %p34 = scmp.eq.s32.totalorder %s33, 0
    %s36 = sadd.s32 %s35, 1
    %s37 = scalar_select %p34, %s35, %s36
    %p40 = pneg %p34
    %p41 = scmp.eq.s32.totalorder %s11, 1
    %p42 = por %p40, %p41
    %p43 = scmp.ne.s32.totalorder %s35, %s38
    %p44 = scmp.eq.s32.totalorder %s11, 0
    %p45 = por %p43, %p44
    %p46 = scmp.ne.s32.totalorder %s35, %s38
    %p47 = scmp.eq.s32.totalorder %s16, 1
    %p48 = por %p46, %p47
    %p49 = scmp.ne.s32.totalorder %s38, %s39
    %p50 = scmp.eq.s32.totalorder %s16, 0
    %p51 = por %p49, %p50
    %p52 = scmp.ne.s32.totalorder %s38, %s39
    %p53 = scmp.eq.s32.totalorder %s17, 1
    %p54 = por %p52, %p53
    %p56 = scmp.ne.s32.totalorder %s39, %s55
    %p57 = scmp.eq.s32.totalorder %s17, 0
    %p58 = por %p56, %p57
    %s59 = ssub.s32 %s18, %s30
    %s60 = ssub.s32 %s19, %s26
    %s61 = sor.u32 %s59, %s60
    %p62 = scmp.eq.s32.totalorder %s61, 0
    %s64 = sadd.s32 %s63, 1
    %s65 = scalar_select %p62, %s63, %s64
    %p68 = pneg %p62
    %p69 = scmp.eq.s32.totalorder %s11, 1
    %p70 = por %p68, %p69
    %p71 = scmp.ne.s32.totalorder %s63, %s66
    %p72 = scmp.eq.s32.totalorder %s11, 0
    %p73 = por %p71, %p72
    %p74 = scmp.ne.s32.totalorder %s63, %s66
    %p75 = scmp.eq.s32.totalorder %s16, 1
    %p76 = por %p74, %p75
    %p77 = scmp.ne.s32.totalorder %s66, %s67
    %p78 = scmp.eq.s32.totalorder %s16, 0
    %p79 = por %p77, %p78
    %p80 = scmp.ne.s32.totalorder %s66, %s67
    %p81 = scmp.eq.s32.totalorder %s17, 1
    %p82 = por %p80, %p81
    %p84 = scmp.ne.s32.totalorder %s67, %s83
    %p85 = scmp.eq.s32.totalorder %s17, 0
    %p86 = por %p84, %p85
    %s88 = sadd.s32 %s87, 1
    %p91 = scmp.eq.s32.totalorder %s11, 1
    %p92 = scmp.ne.s32.totalorder %s87, %s89
    %p93 = scmp.eq.s32.totalorder %s11, 0
    %p94 = por %p92, %p93
    %p95 = scmp.ne.s32.totalorder %s87, %s89
    %p96 = scmp.eq.s32.totalorder %s16, 1
    %p97 = por %p95, %p96
    %p98 = scmp.ne.s32.totalorder %s89, %s90
    %p99 = scmp.eq.s32.totalorder %s16, 0
    %p100 = por %p98, %p99
    %p101 = scmp.ne.s32.totalorder %s89, %s90
    %p102 = scmp.eq.s32.totalorder %s17, 1
    %p103 = por %p101, %p102
    %p105 = scmp.ne.s32.totalorder %s90, %s104
    %p106 = scmp.eq.s32.totalorder %s17, 0
    %p107 = por %p105, %p106
    %s109 = sadd.s32 %s108, 1
    %p112 = scmp.eq.s32.totalorder %s11, 1
    %p113 = scmp.ne.s32.totalorder %s108, %s110
    %p114 = scmp.eq.s32.totalorder %s11, 0
    %p115 = por %p113, %p114
    %p116 = scmp.ne.s32.totalorder %s108, %s110
    %p117 = scmp.eq.s32.totalorder %s16, 1
    %p118 = por %p116, %p117
    %p119 = scmp.ne.s32.totalorder %s110, %s111
    %p120 = scmp.eq.s32.totalorder %s16, 0
    %p121 = por %p119, %p120
    %p122 = scmp.ne.s32.totalorder %s110, %s111
    %p123 = scmp.eq.s32.totalorder %s17, 1
    %p124 = por %p122, %p123
    %p126 = scmp.ne.s32.totalorder %s111, %s125
    %p127 = scmp.eq.s32.totalorder %s17, 0
    %p128 = por %p126, %p127
    %s130 = sadd.s32 %s129, 1
    %p133 = scmp.eq.s32.totalorder %s11, 1
    %p134 = scmp.ne.s32.totalorder %s129, %s131
    %p135 = scmp.eq.s32.totalorder %s11, 0
    %p136 = por %p134, %p135
    %p137 = scmp.ne.s32.totalorder %s129, %s131
    %p138 = scmp.eq.s32.totalorder %s16, 1
    %p139 = por %p137, %p138
    %p140 = scmp.ne.s32.totalorder %s131, %s132
    %p141 = scmp.eq.s32.totalorder %s16, 0
    %p142 = por %p140, %p141
    %p143 = scmp.ne.s32.totalorder %s131, %s132
    %p144 = scmp.eq.s32.totalorder %s17, 1
    %p145 = por %p143, %p144
    %p147 = scmp.ne.s32.totalorder %s132, %s146
    %p148 = scmp.eq.s32.totalorder %s17, 0
    %p149 = por %p147, %p148
    %s150 = ssub.s32 %s18, %s30
    %s151 = ssub.s32 %s19, %s26
    %s152 = sor.u32 %s150, %s151
    %p153 = scmp.eq.s32.totalorder %s152, 0
    %s155 = sadd.s32 %s154, 1
    %s156 = scalar_select %p153, %s154, %s155
    %p159 = pneg %p153
    %p160 = scmp.eq.s32.totalorder %s11, 1
    %p161 = por %p159, %p160
    %p162 = scmp.ne.s32.totalorder %s154, %s157
    %p163 = scmp.eq.s32.totalorder %s11, 0
    %p164 = por %p162, %p163
    %p165 = scmp.ne.s32.totalorder %s154, %s157
    %p166 = scmp.eq.s32.totalorder %s16, 1
    %p167 = por %p165, %p166
    %p168 = scmp.ne.s32.totalorder %s157, %s158
    %p169 = scmp.eq.s32.totalorder %s16, 0
    %p170 = por %p168, %p169
    %p171 = scmp.ne.s32.totalorder %s157, %s158
    %p172 = scmp.eq.s32.totalorder %s17, 1
    %p173 = por %p171, %p172
    %p175 = scmp.ne.s32.totalorder %s158, %s174
    %p176 = scmp.eq.s32.totalorder %s17, 0
    %p177 = por %p175, %p176
    %p178 = scmp.le.s32.totalorder 1, %s11
    %p179 = scmp.lt.s32.totalorder %s11, 3
    %p180 = pnand %p178, %p179
    %p181 = pneg %p180
    // Predicated region
    $region9: #{u_network_forward.17} parent=5 // pred_check
      _
    $region10: #{u_network_forward.17} parent=5 // pred_check_branch
      %183 = sbr.rel (%p180) target = $region12
    $region11: #{u_network_forward.17} parent=5 // pred_region
      %s184 = ssub.s32 %s11, 1
      // Predicated region
      $region13: #{u_network_forward.17} parent=11 // pred_check
        %p185 = pneg %p100
      $region14: #{u_network_forward.17} parent=11 // pred_check_branch
        %187 = sbr.rel (%p185) target = $region16
      $region15: #{u_network_forward.17} parent=11 // pred_region
        _
      $region16: #{u_network_forward.17} parent=11 // pred_fallthru
        _
      // Predicated region
      $region17: #{u_network_forward.17} parent=11 // pred_check
        %p188 = pneg %p121
      $region18: #{u_network_forward.17} parent=11 // pred_check_branch
        %190 = sbr.rel (%p188) target = $region20
      $region19: #{u_network_forward.17} parent=11 // pred_region
        _
      $region20: #{u_network_forward.17} parent=11 // pred_fallthru
        _
      // Predicated region
      $region21: #{u_network_forward.17} parent=11 // pred_check
        %p191 = pneg %p142
      $region22: #{u_network_forward.17} parent=11 // pred_check_branch
        %193 = sbr.rel (%p191) target = $region24
      $region23: #{u_network_forward.17} parent=11 // pred_region
        _
      $region24: #{u_network_forward.17} parent=11 // pred_fallthru
        _
    $region12: #{u_network_forward.17} parent=5 // pred_fallthru
      _
    %p194 = scmp.lt.s32.totalorder %s11, 2
    // Predicated region
    $region25: #{u_network_forward.17} parent=5 // pred_check
      %p195 = pneg %p194
    $region26: #{u_network_forward.17} parent=5 // pred_check_branch
      %197 = sbr.rel (%p195) target = $region28
    $region27: #{u_network_forward.17} parent=5 // pred_region
      // Predicated region
      $region29: #{u_network_forward.17} parent=27 // pred_check
        %p198 = pneg %p45
      $region30: #{u_network_forward.17} parent=27 // pred_check_branch
        %200 = sbr.rel (%p198) target = $region32
      $region31: #{u_network_forward.17} parent=27 // pred_region
        %p201 = scmp.lt.s32.totalorder %s18, 1
        %s202 = scalar_select %p201, %s18, 1
        %p203 = scmp.lt.s32.totalorder %s19, 0
        %s204 = scalar_select %p203, %s19, 0
        %s205 = smul.addr %s202, 18
        %s206 = sadd.s32 %s204, %s205
        %s207 = smul.addr %s206, 4
        %s208 = scalar_lea.vmem %s0, %s207
      $region32: #{u_network_forward.17} parent=27 // pred_fallthru
        _
      // Predicated region
      $region33: #{u_network_forward.17} parent=27 // pred_check
        %p209 = pneg %p73
      $region34: #{u_network_forward.17} parent=27 // pred_check_branch
        %211 = sbr.rel (%p209) target = $region36
      $region35: #{u_network_forward.17} parent=27 // pred_region
        %p212 = scmp.lt.s32.totalorder %s18, 1
        %s213 = scalar_select %p212, %s18, 1
        %p214 = scmp.lt.s32.totalorder %s19, 0
        %s215 = scalar_select %p214, %s19, 0
        %s216 = smul.addr %s213, 18
        %s217 = sadd.s32 %s215, %s216
        %s218 = smul.addr %s217, 4
        %s219 = scalar_lea.vmem %s1, %s218
      $region36: #{u_network_forward.17} parent=27 // pred_fallthru
        _
    $region28: #{u_network_forward.17} parent=5 // pred_fallthru
      _
    %p220 = scmp.le.s32.totalorder 1, %s11
    %p221 = scmp.lt.s32.totalorder %s11, 3
    %p222 = pnand %p220, %p221
    %p223 = pneg %p222
    // Predicated region
    $region37: #{u_network_forward.17} parent=5 // pred_check
      _
    $region38: #{u_network_forward.17} parent=5 // pred_check_branch
      %225 = sbr.rel (%p222) target = $region40
    $region39: #{u_network_forward.17} parent=5 // pred_region
      %s226 = ssub.s32 %s11, 1
      %p227 = scmp.lt.s32.totalorder %s20, 1
      %s228 = scalar_select %p227, %s20, 1
      %p229 = scmp.lt.s32.totalorder %s21, 0
      %s230 = scalar_select %p229, %s21, 0
      %s231 = smul.addr %s228, 18
      %s232 = sadd.s32 %s230, %s231
      %s233 = smul.addr %s232, 4
      %s234 = scalar_lea.vmem %s0, %s233
      %p235 = pneg %p51
      %p236 = pneg %p48
      %p237 = scmp.lt.s32.totalorder %s20, 1
      %s238 = scalar_select %p237, %s20, 1
      %p239 = scmp.lt.s32.totalorder %s21, 0
      %s240 = scalar_select %p239, %s21, 0
      %s241 = smul.addr %s238, 18
      %s242 = sadd.s32 %s240, %s241
      %s243 = smul.addr %s242, 4
      %s244 = scalar_lea.vmem %s1, %s243
      %p245 = pneg %p79
      %p246 = pneg %p76
      %p247 = pneg %p100
      %p248 = pneg %p97
      %p249 = pneg %p121
      %p250 = pneg %p118
      %p251 = pneg %p142
      %p252 = pneg %p139
      %p253 = pneg %p170
      %p254 = pneg %p167
      %p255 = scmp.lt.s32.totalorder %s20, 1
      %s256 = scalar_select %p255, %s20, 1
      %p257 = scmp.lt.s32.totalorder %s21, 0
      %s258 = scalar_select %p257, %s21, 0
      %s259 = smul.addr %s256, 2
      %s260 = sadd.s32 %s258, %s259
      %s261 = smul.addr %s260, 4
      %s262 = scalar_lea.vmem %s5, %s261
      %p263 = scmp.lt.s32.totalorder %s20, 1
      %s264 = scalar_select %p263, %s20, 1
      %p265 = scmp.lt.s32.totalorder %s21, 0
      %s266 = scalar_select %p265, %s21, 0
      %s267 = smul.addr %s264, 18
      %s268 = sadd.s32 %s266, %s267
      %s269 = smul.addr %s268, 4
      %s270 = scalar_lea.vmem %s0, %s269
      %p271 = scmp.lt.s32.totalorder %s20, 1
      %s272 = scalar_select %p271, %s20, 1
      %p273 = scmp.lt.s32.totalorder %s21, 0
      %s274 = scalar_select %p273, %s21, 0
      %s275 = smul.addr %s272, 18
      %s276 = sadd.s32 %s274, %s275
      %s277 = smul.addr %s276, 4
      %s278 = scalar_lea.vmem %s1, %s277
      %p279 = scmp.lt.s32.totalorder %s20, 1
      %s280 = scalar_select %p279, %s20, 1
      %p281 = scmp.lt.s32.totalorder %s21, 0
      %s282 = scalar_select %p281, %s21, 0
      %s283 = smul.addr %s280, 2
      %s284 = sadd.s32 %s282, %s283
      %s285 = smul.addr %s284, 4
      %s286 = scalar_lea.vmem %s5, %s285
      %v288 = vld [vmem:[%s2] sm:$0xff]
      %v289 = vld [vmem:[%s2 + $0x8] sm:$0xff]
      %v290 = vld [vmem:[%s270] sm:$0xf]
      %v291 = vld [vmem:[%s270 + $0x4] sm:$0xf]
      %v292 = vld [vmem:[%s270 + $0x8] sm:$0xf]
      %v293 = vld [vmem:[%s270 + $0xc] sm:$0xf]
      %v294 = vld [vmem:[%s270 + $0x10] sm:$0xf]
      %v295 = vld [vmem:[%s270 + $0x14] sm:$0xf]
      %v296 = vld [vmem:[%s270 + $0x18] sm:$0xf]
      %v297 = vld [vmem:[%s270 + $0x1c] sm:$0xf]
      %v298 = vld [vmem:[%s270 + $0x20] sm:$0xf]
      %v299 = vld [vmem:[%s270 + $0x24] sm:$0xf]
      %v300 = vld [vmem:[%s270 + $0x28] sm:$0xf]
      %v301 = vld [vmem:[%s270 + $0x2c] sm:$0xf]
      %v302 = vld [vmem:[%s270 + $0x30] sm:$0xf]
      %v303 = vld [vmem:[%s270 + $0x34] sm:$0xf]
      %v304 = vld [vmem:[%s270 + $0x38] sm:$0xf]
      %v305 = vld [vmem:[%s270 + $0x3c] sm:$0xf]
      %v306 = vld [vmem:[%s270 + $0x40] sm:$0xf]
      %v307 = vld [vmem:[%s270 + $0x44] sm:$0xf]
      %v308 = vld [vmem:[%s3] sm:$0xff]
      %v309 = vld [vmem:[%s3 + $0x8] sm:$0xff]
      %v310 = vld [vmem:[%s278] sm:$0xf]
      %v311 = vld [vmem:[%s278 + $0x4] sm:$0xf]
      %v312 = vld [vmem:[%s278 + $0x8] sm:$0xf]
      %v313 = vld [vmem:[%s278 + $0xc] sm:$0xf]
      %v314 = vld [vmem:[%s278 + $0x10] sm:$0xf]
      %v315 = vld [vmem:[%s278 + $0x14] sm:$0xf]
      %v316 = vld [vmem:[%s278 + $0x18] sm:$0xf]
      %v317 = vld [vmem:[%s278 + $0x1c] sm:$0xf]
      %v318 = vld [vmem:[%s278 + $0x20] sm:$0xf]
      %v319 = vld [vmem:[%s278 + $0x24] sm:$0xf]
      %v320 = vld [vmem:[%s278 + $0x28] sm:$0xf]
      %v321 = vld [vmem:[%s278 + $0x2c] sm:$0xf]
      %v322 = vld [vmem:[%s278 + $0x30] sm:$0xf]
      %v323 = vld [vmem:[%s278 + $0x34] sm:$0xf]
      %v324 = vld [vmem:[%s278 + $0x38] sm:$0xf]
      %v325 = vld [vmem:[%s278 + $0x3c] sm:$0xf]
      %v326 = vld [vmem:[%s278 + $0x40] sm:$0xf]
      %v327 = vld [vmem:[%s278 + $0x44] sm:$0xf]
      %v330 = vunpack.c.l.b16 %v308
      %v331 = vunpack.c.h.b16 %v308
      %v332 = vunpack.c.l.b16 %v309
      %v333 = vunpack.c.h.b16 %v309
      %v334 = vpack.c.b16 %v332, %v330
      %v335 = vpack.c.b16 %v333, %v331
      %v355 = vunpack.c.l.b16 %v310
      %v356 = vunpack.c.l.b16 %v311
      %v357 = vunpack.c.l.b16 %v312
      %v358 = vunpack.c.l.b16 %v313
      %v359 = vunpack.c.l.b16 %v314
      %v360 = vunpack.c.l.b16 %v315
      %v361 = vunpack.c.l.b16 %v316
      %v362 = vunpack.c.l.b16 %v317
      %v363 = vunpack.c.l.b16 %v318
      %v364 = vunpack.c.l.b16 %v319
      %v365 = vunpack.c.l.b16 %v320
      %v366 = vunpack.c.l.b16 %v321
      %v367 = vunpack.c.l.b16 %v322
      %v368 = vunpack.c.l.b16 %v323
      %v369 = vunpack.c.l.b16 %v324
      %v370 = vunpack.c.l.b16 %v325
      %v371 = vunpack.c.l.b16 %v326
      %v372 = vunpack.c.l.b16 %v327
      %v373 = vpack.c.b16 %v356, %v355
      %v374 = vpack.c.b16 %v358, %v357
      %v375 = vpack.c.b16 %v360, %v359
      %v376 = vpack.c.b16 %v362, %v361
      %v377 = vpack.c.b16 %v364, %v363
      %v378 = vpack.c.b16 %v366, %v365
      %v379 = vpack.c.b16 %v368, %v367
      %v380 = vpack.c.b16 %v370, %v369
      %v381 = vpack.c.b16 %v372, %v371
      %vm391 = vcmask 130048
      %v393 = vsel %vm391, %v335, 0
      %395 = vmatprep.subr.bf16.mxu0 0
      %396 = vmatpush1.bf16.msra.mxu0 %v373
      %397 = vmatprep.subr.bf16.mxu0 0
      %398 = vmatpush1.bf16.msra.mxu0 %v374
      %399 = vmatprep.subr.bf16.mxu0 0
      %400 = vmatpush1.bf16.msra.mxu0 %v375
      %401 = vmatprep.subr.bf16.mxu0 0
      %402 = vmatpush1.bf16.msra.mxu0 %v376
      %403 = vmatprep.subr.bf16.mxu0 0
      %404 = vmatpush1.bf16.msra.mxu0 %v377
      %405 = vmatprep.subr.bf16.mxu0 0
      %406 = vmatpush1.bf16.msra.mxu0 %v378
      %407 = vmatprep.subr.bf16.mxu0 0
      %408 = vmatpush1.bf16.msra.mxu0 %v379
      %409 = vmatprep.subr.bf16.mxu0 0
      %410 = vmatpush1.bf16.msra.mxu0 %v380
      %411 = vmatprep.subr.bf16.mxu0 0
      %412 = vmatpush1.bf16.msra.mxu0 %v381
      %413 = vmatprep.subr.bf16.mxu0 0
      %414 = vmatpush1.bf16.msra.mxu0 0
      %415 = vmatprep.subr.bf16.mxu0 0
      %416 = vmatpush1.bf16.msra.mxu0 0
      %417 = vmatprep.subr.bf16.mxu0 0
      %418 = vmatpush1.bf16.msra.mxu0 0
      %419 = vmatprep.subr.bf16.mxu0 0
      %420 = vmatpush1.bf16.msra.mxu0 0
      %421 = vmatprep.subr.bf16.mxu0 0
      %422 = vmatpush1.bf16.msra.mxu0 0
      %423 = vmatprep.subr.bf16.mxu0 0
      %424 = vmatpush1.bf16.msra.mxu0 0
      %425 = vmatprep.subr.bf16.mxu0 0
      %426 = vmatpush1.bf16.msra.mxu0 0
      %427 = vmatprep.mubr.bf16.mxu0 %v393
      %428 = vmatmul.mubr.bf16.gmra.mrb[0].mxu0 %v334
      %v429 = vpop.f32.mrb[0].mxu0
      %v430 = vadd.f32 0.0, %v429
      %v431 = vpop.f32.mrb[0].mxu0
      %v432 = vpop.f32.mrb[0].mxu0
      %v433 = vadd.f32 0.0, %v432
      %v434 = vpop.f32.mrb[0].mxu0
      %435 = vdwg.mxu0
      %v438 = vunpack.c.l.b16 %v288
      %v439 = vunpack.c.h.b16 %v288
      %v440 = vunpack.c.l.b16 %v289
      %v441 = vunpack.c.h.b16 %v289
      %v442 = vpack.c.b16 %v440, %v438
      %v443 = vpack.c.b16 %v441, %v439
      %v463 = vunpack.c.l.b16 %v290
      %v464 = vunpack.c.l.b16 %v291
      %v465 = vunpack.c.l.b16 %v292
      %v466 = vunpack.c.l.b16 %v293
      %v467 = vunpack.c.l.b16 %v294
      %v468 = vunpack.c.l.b16 %v295
      %v469 = vunpack.c.l.b16 %v296
      %v470 = vunpack.c.l.b16 %v297
      %v471 = vunpack.c.l.b16 %v298
      %v472 = vunpack.c.l.b16 %v299
      %v473 = vunpack.c.l.b16 %v300
      %v474 = vunpack.c.l.b16 %v301
      %v475 = vunpack.c.l.b16 %v302
      %v476 = vunpack.c.l.b16 %v303
      %v477 = vunpack.c.l.b16 %v304
      %v478 = vunpack.c.l.b16 %v305
      %v479 = vunpack.c.l.b16 %v306
      %v480 = vunpack.c.l.b16 %v307
      %v481 = vpack.c.b16 %v464, %v463
      %v482 = vpack.c.b16 %v466, %v465
      %v483 = vpack.c.b16 %v468, %v467
      %v484 = vpack.c.b16 %v470, %v469
      %v485 = vpack.c.b16 %v472, %v471
      %v486 = vpack.c.b16 %v474, %v473
      %v487 = vpack.c.b16 %v476, %v475
      %v488 = vpack.c.b16 %v478, %v477
      %v489 = vpack.c.b16 %v480, %v479
      %v500 = vsel %vm391, %v443, 0
      %502 = vmatprep.subr.bf16.mxu0 0
      %503 = vmatpush1.bf16.msra.mxu0 %v481
      %504 = vmatprep.subr.bf16.mxu0 0
      %505 = vmatpush1.bf16.msra.mxu0 %v482
      %506 = vmatprep.subr.bf16.mxu0 0
      %507 = vmatpush1.bf16.msra.mxu0 %v483
      %508 = vmatprep.subr.bf16.mxu0 0
      %509 = vmatpush1.bf16.msra.mxu0 %v484
      %510 = vmatprep.subr.bf16.mxu0 0
      %511 = vmatpush1.bf16.msra.mxu0 %v485
      %512 = vmatprep.subr.bf16.mxu0 0
      %513 = vmatpush1.bf16.msra.mxu0 %v486
      %514 = vmatprep.subr.bf16.mxu0 0
      %515 = vmatpush1.bf16.msra.mxu0 %v487
      %516 = vmatprep.subr.bf16.mxu0 0
      %517 = vmatpush1.bf16.msra.mxu0 %v488
      %518 = vmatprep.subr.bf16.mxu0 0
      %519 = vmatpush1.bf16.msra.mxu0 %v489
      %520 = vmatprep.subr.bf16.mxu0 0
      %521 = vmatpush1.bf16.msra.mxu0 0
      %522 = vmatprep.subr.bf16.mxu0 0
      %523 = vmatpush1.bf16.msra.mxu0 0
      %524 = vmatprep.subr.bf16.mxu0 0
      %525 = vmatpush1.bf16.msra.mxu0 0
      %526 = vmatprep.subr.bf16.mxu0 0
      %527 = vmatpush1.bf16.msra.mxu0 0
      %528 = vmatprep.subr.bf16.mxu0 0
      %529 = vmatpush1.bf16.msra.mxu0 0
      %530 = vmatprep.subr.bf16.mxu0 0
      %531 = vmatpush1.bf16.msra.mxu0 0
      %532 = vmatprep.subr.bf16.mxu0 0
      %533 = vmatpush1.bf16.msra.mxu0 0
      %534 = vmatprep.mubr.bf16.mxu0 %v500
      %535 = vmatmul.mubr.bf16.gmra.mrb[0].mxu0 %v442
      %v536 = vpop.f32.mrb[0].mxu0
      %v537 = vadd.f32 %v430, %v536
      %v538 = vpop.f32.mrb[0].mxu0
      %v539 = vpop.f32.mrb[0].mxu0
      %v540 = vadd.f32 %v433, %v539
      %v541 = vpop.f32.mrb[0].mxu0
      %542 = vdwg.mxu0
      %v543 = vld [vmem:[%s4] sm:$0xff]
      %v544 = vld [vmem:[%s4 + $0x8] sm:$0xff]
      %546 = vset.pattern.permute.xlu0 0
      %547 = vperm.xlu0 %546, %v543
      %v548 = vpop.permute.xlu0 %547
      %551 = vset.pattern.permute.xlu0 0
      %552 = vperm.xlu0 %551, %v544
      %v553 = vpop.permute.xlu0 %552
      %v555 = vadd.f32 %v537, %v548
      %v556 = vadd.f32 %v540, %v553
      %vm557 = vcmp.ge.f32.partialorder %v555, 0.0
      %vm558 = vcmp.ge.f32.partialorder %v556, 0.0
      %v559 = vmul.f32 %v555, 0.2
      %v560 = vmul.f32 %v556, 0.2
      %v561 = vsel %vm557, %v555, %v559
      %v562 = vsel %vm558, %v556, %v560
      %v563 = vpack.c.bf16 %v562, %v561
      %v565 = vunpack.c.l.b16 %v563
      %v566 = vunpack.c.h.b16 %v563
      %v567 = vpack.c.b16 %v565, %v565
      %v568 = vpack.c.b16 %v566, %v566
      %vm571 = vcmask 27648
      %572 = vst.msk [vmem:[%s286] sm:$0xf] %vm571, %v567
      %573 = vst.msk [vmem:[%s286 + $0x4] sm:$0xf] %vm571, %v568
      %p574 = scmp.lt.s32.totalorder %s20, 1
      %s575 = scalar_select %p574, %s20, 1
      %p576 = scmp.lt.s32.totalorder %s21, 0
      %s577 = scalar_select %p576, %s21, 0
      %s578 = smul.addr %s575, 2
      %s579 = sadd.s32 %s577, %s578
      %s580 = smul.addr %s579, 4
      %s581 = scalar_lea.vmem %s5, %s580
      // Predicated region
      $region41: #{u_network_forward.17} parent=39 // pred_check
        %p582 = pneg %p167
      $region42: #{u_network_forward.17} parent=39 // pred_check_branch
        %584 = sbr.rel (%p582) target = $region44
      $region43: #{u_network_forward.17} parent=39 // pred_region
        _
      $region44: #{u_network_forward.17} parent=39 // pred_fallthru
        _
    $region40: #{u_network_forward.17} parent=5 // pred_fallthru
      _
    %p585 = scmp.le.s32.totalorder 2, %s11
    // Predicated region
    $region45: #{u_network_forward.17} parent=5 // pred_check
      %p586 = pneg %p585
    $region46: #{u_network_forward.17} parent=5 // pred_check_branch
      %588 = sbr.rel (%p586) target = $region48
    $region47: #{u_network_forward.17} parent=5 // pred_region
      %s589 = ssub.s32 %s11, 2
      // Predicated region
      $region49: #{u_network_forward.17} parent=47 // pred_check
        %p590 = pneg %p173
      $region50: #{u_network_forward.17} parent=47 // pred_check_branch
        %592 = sbr.rel (%p590) target = $region52
      $region51: #{u_network_forward.17} parent=47 // pred_region
        %p593 = scmp.lt.s32.totalorder %s22, 1
        %s594 = scalar_select %p593, %s22, 1
        %p595 = scmp.lt.s32.totalorder %s23, 0
        %s596 = scalar_select %p595, %s23, 0
        %s597 = smul.addr %s594, 2
        %s598 = sadd.s32 %s596, %s597
        %s599 = smul.addr %s598, 4
        %s600 = scalar_lea.vmem %s5, %s599
      $region52: #{u_network_forward.17} parent=47 // pred_fallthru
        _
    $region48: #{u_network_forward.17} parent=5 // pred_fallthru
      _
  $region6: #{u_network_forward.17} parent=0 // loop_footer
    %s15 = sadd.s32 1, %s11
  $region7: #{u_network_forward.17} parent=0 // loop_footer_branch
    %10 = sbr.rel target = $region3
  $region8: #{u_network_forward.17} parent=0 // loop_exit
    _

// kernel: u_network_forward.18
$region0: #{u_network_forward.18}
  #allocation0 [shape = 'u32[]', space=smem, size = 0x4, offset = 0x4, fixed_abs, tag = 'smem constant byte address 0x4 - core index']
  #allocation1 [shape = 'u32[144,128]{1,0:T(1,128)}', space=vmem, size = 0x12000, scoped, tag = 'internal scratch']
  %s0 = inlined_call_operand.vmem [shape: bf16[2,144,16], index: 0, kind: input, shape index: {}]
  %s1 = inlined_call_operand.vmem [shape: bf16[2,144,16], index: 1, kind: input, shape index: {}]
  %s2 = inlined_call_operand.vmem [shape: bf16[16,144], index: 2, kind: input, shape index: {}]
  %s3 = inlined_call_operand.vmem [shape: bf16[16,144], index: 3, kind: input, shape index: {}]
  %s4 = inlined_call_operand.vmem [shape: f32[16,1], index: 4, kind: input, shape index: {}]
  %s5 = inlined_call_operand.vmem [shape: bf16[2,16,16], index: 5, kind: output, shape index: {}]
  %s6 = sld [smem:[#allocation0]]
  $region53: #{u_network_forward.18} parent=0
    _
  %s8 = ssub.s32 1, %s6
  %s9 = scalar_select 0, %s8, %s6
  loop: start=0, step=1, limit=4
  $region2: #{u_network_forward.18} parent=0 // loop_pre_header
    _
  $region3: #{u_network_forward.18} parent=0 // loop_header
    %s11 = sphi 0, %s15
    %p12 = scmp.ge.s32.totalorder %s11, 4
    %s18 = sphi 0, %s30
    %s19 = sphi 0, %s26
    %s20 = sphi 0, %s18
    %s21 = sphi 0, %s19
    %s22 = sphi 0, %s20
    %s23 = sphi 0, %s21
    %s35 = sphi 0, %s37
    %s38 = sphi 0, %s35
    %s39 = sphi 0, %s38
    %s55 = sphi 0, %s39
    %s63 = sphi 0, %s65
    %s66 = sphi 0, %s63
    %s67 = sphi 0, %s66
    %s83 = sphi 0, %s67
    %s87 = sphi 0, %s87
    %s89 = sphi 0, %s87
    %s90 = sphi 0, %s89
    %s104 = sphi 0, %s90
    %s108 = sphi 0, %s108
    %s110 = sphi 0, %s108
    %s111 = sphi 0, %s110
    %s125 = sphi 0, %s111
    %s129 = sphi 0, %s129
    %s131 = sphi 0, %s129
    %s132 = sphi 0, %s131
    %s146 = sphi 0, %s132
    %s154 = sphi 0, %s156
    %s157 = sphi 0, %s154
    %s158 = sphi 0, %s157
    %s174 = sphi 0, %s158
  $region4: #{u_network_forward.18} parent=0 // loop_header_branch
    %14 = sbr.rel (%p12) target = $region8
  $region5: #{u_network_forward.18} parent=0 // loop_body
    %s16 = ssub.s32 %s11, 1
    %s17 = ssub.s32 %s11, 2
    %s24 = sadd.s32 1, %s19
    %p25 = scmp.ge.s32.totalorder %s24, 1
    %s26 = scalar_select %p25, 0, %s24
    %s27 = sadd.s32 1, %s18
    %s28 = scalar_select %p25, %s27, %s18
    %p29 = scmp.ge.s32.totalorder %s28, 2
    %s30 = scalar_select %p29, 0, %s28
    %s31 = ssub.s32 %s18, %s30
    %s32 = ssub.s32 %s19, %s26
    %s33 = sor.u32 %s31, %s32
    %p34 = scmp.eq.s32.totalorder %s33, 0
    %s36 = sadd.s32 %s35, 1
    %s37 = scalar_select %p34, %s35, %s36
    %p40 = pneg %p34
    %p41 = scmp.eq.s32.totalorder %s11, 1
    %p42 = por %p40, %p41
    %p43 = scmp.ne.s32.totalorder %s35, %s38
    %p44 = scmp.eq.s32.totalorder %s11, 0
    %p45 = por %p43, %p44
    %p46 = scmp.ne.s32.totalorder %s35, %s38
    %p47 = scmp.eq.s32.totalorder %s16, 1
    %p48 = por %p46, %p47
    %p49 = scmp.ne.s32.totalorder %s38, %s39
    %p50 = scmp.eq.s32.totalorder %s16, 0
    %p51 = por %p49, %p50
    %p52 = scmp.ne.s32.totalorder %s38, %s39
    %p53 = scmp.eq.s32.totalorder %s17, 1
    %p54 = por %p52, %p53
    %p56 = scmp.ne.s32.totalorder %s39, %s55
    %p57 = scmp.eq.s32.totalorder %s17, 0
    %p58 = por %p56, %p57
    %s59 = ssub.s32 %s18, %s30
    %s60 = ssub.s32 %s19, %s26
    %s61 = sor.u32 %s59, %s60
    %p62 = scmp.eq.s32.totalorder %s61, 0
    %s64 = sadd.s32 %s63, 1
    %s65 = scalar_select %p62, %s63, %s64
    %p68 = pneg %p62
    %p69 = scmp.eq.s32.totalorder %s11, 1
    %p70 = por %p68, %p69
    %p71 = scmp.ne.s32.totalorder %s63, %s66
    %p72 = scmp.eq.s32.totalorder %s11, 0
    %p73 = por %p71, %p72
    %p74 = scmp.ne.s32.totalorder %s63, %s66
    %p75 = scmp.eq.s32.totalorder %s16, 1
    %p76 = por %p74, %p75
    %p77 = scmp.ne.s32.totalorder %s66, %s67
    %p78 = scmp.eq.s32.totalorder %s16, 0
    %p79 = por %p77, %p78
    %p80 = scmp.ne.s32.totalorder %s66, %s67
    %p81 = scmp.eq.s32.totalorder %s17, 1
    %p82 = por %p80, %p81
    %p84 = scmp.ne.s32.totalorder %s67, %s83
    %p85 = scmp.eq.s32.totalorder %s17, 0
    %p86 = por %p84, %p85
    %s88 = sadd.s32 %s87, 1
    %p91 = scmp.eq.s32.totalorder %s11, 1
    %p92 = scmp.ne.s32.totalorder %s87, %s89
    %p93 = scmp.eq.s32.totalorder %s11, 0
    %p94 = por %p92, %p93
    %p95 = scmp.ne.s32.totalorder %s87, %s89
    %p96 = scmp.eq.s32.totalorder %s16, 1
    %p97 = por %p95, %p96
    %p98 = scmp.ne.s32.totalorder %s89, %s90
    %p99 = scmp.eq.s32.totalorder %s16, 0
    %p100 = por %p98, %p99
    %p101 = scmp.ne.s32.totalorder %s89, %s90
    %p102 = scmp.eq.s32.totalorder %s17, 1
    %p103 = por %p101, %p102
    %p105 = scmp.ne.s32.totalorder %s90, %s104
    %p106 = scmp.eq.s32.totalorder %s17, 0
    %p107 = por %p105, %p106
    %s109 = sadd.s32 %s108, 1
    %p112 = scmp.eq.s32.totalorder %s11, 1
    %p113 = scmp.ne.s32.totalorder %s108, %s110
    %p114 = scmp.eq.s32.totalorder %s11, 0
    %p115 = por %p113, %p114
    %p116 = scmp.ne.s32.totalorder %s108, %s110
    %p117 = scmp.eq.s32.totalorder %s16, 1
    %p118 = por %p116, %p117
    %p119 = scmp.ne.s32.totalorder %s110, %s111
    %p120 = scmp.eq.s32.totalorder %s16, 0
    %p121 = por %p119, %p120
    %p122 = scmp.ne.s32.totalorder %s110, %s111
    %p123 = scmp.eq.s32.totalorder %s17, 1
    %p124 = por %p122, %p123
    %p126 = scmp.ne.s32.totalorder %s111, %s125
    %p127 = scmp.eq.s32.totalorder %s17, 0
    %p128 = por %p126, %p127
    %s130 = sadd.s32 %s129, 1
    %p133 = scmp.eq.s32.totalorder %s11, 1
    %p134 = scmp.ne.s32.totalorder %s129, %s131
    %p135 = scmp.eq.s32.totalorder %s11, 0
    %p136 = por %p134, %p135
    %p137 = scmp.ne.s32.totalorder %s129, %s131
    %p138 = scmp.eq.s32.totalorder %s16, 1
    %p139 = por %p137, %p138
    %p140 = scmp.ne.s32.totalorder %s131, %s132
    %p141 = scmp.eq.s32.totalorder %s16, 0
    %p142 = por %p140, %p141
    %p143 = scmp.ne.s32.totalorder %s131, %s132
    %p144 = scmp.eq.s32.totalorder %s17, 1
    %p145 = por %p143, %p144
    %p147 = scmp.ne.s32.totalorder %s132, %s146
    %p148 = scmp.eq.s32.totalorder %s17, 0
    %p149 = por %p147, %p148
    %s150 = ssub.s32 %s18, %s30
    %s151 = ssub.s32 %s19, %s26
    %s152 = sor.u32 %s150, %s151
    %p153 = scmp.eq.s32.totalorder %s152, 0
    %s155 = sadd.s32 %s154, 1
    %s156 = scalar_select %p153, %s154, %s155
    %p159 = pneg %p153
    %p160 = scmp.eq.s32.totalorder %s11, 1
    %p161 = por %p159, %p160
    %p162 = scmp.ne.s32.totalorder %s154, %s157
    %p163 = scmp.eq.s32.totalorder %s11, 0
    %p164 = por %p162, %p163
    %p165 = scmp.ne.s32.totalorder %s154, %s157
    %p166 = scmp.eq.s32.totalorder %s16, 1
    %p167 = por %p165, %p166
    %p168 = scmp.ne.s32.totalorder %s157, %s158
    %p169 = scmp.eq.s32.totalorder %s16, 0
    %p170 = por %p168, %p169
    %p171 = scmp.ne.s32.totalorder %s157, %s158
    %p172 = scmp.eq.s32.totalorder %s17, 1
    %p173 = por %p171, %p172
    %p175 = scmp.ne.s32.totalorder %s158, %s174
    %p176 = scmp.eq.s32.totalorder %s17, 0
    %p177 = por %p175, %p176
    %p178 = scmp.le.s32.totalorder 1, %s11
    %p179 = scmp.lt.s32.totalorder %s11, 3
    %p180 = pnand %p178, %p179
    %p181 = pneg %p180
    // Predicated region
    $region9: #{u_network_forward.18} parent=5 // pred_check
      _
    $region10: #{u_network_forward.18} parent=5 // pred_check_branch
      %183 = sbr.rel (%p180) target = $region12
    $region11: #{u_network_forward.18} parent=5 // pred_region
      %s184 = ssub.s32 %s11, 1
      // Predicated region
      $region13: #{u_network_forward.18} parent=11 // pred_check
        %p185 = pneg %p100
      $region14: #{u_network_forward.18} parent=11 // pred_check_branch
        %187 = sbr.rel (%p185) target = $region16
      $region15: #{u_network_forward.18} parent=11 // pred_region
        _
      $region16: #{u_network_forward.18} parent=11 // pred_fallthru
        _
      // Predicated region
      $region17: #{u_network_forward.18} parent=11 // pred_check
        %p188 = pneg %p121
      $region18: #{u_network_forward.18} parent=11 // pred_check_branch
        %190 = sbr.rel (%p188) target = $region20
      $region19: #{u_network_forward.18} parent=11 // pred_region
        _
      $region20: #{u_network_forward.18} parent=11 // pred_fallthru
        _
      // Predicated region
      $region21: #{u_network_forward.18} parent=11 // pred_check
        %p191 = pneg %p142
      $region22: #{u_network_forward.18} parent=11 // pred_check_branch
        %193 = sbr.rel (%p191) target = $region24
      $region23: #{u_network_forward.18} parent=11 // pred_region
        _
      $region24: #{u_network_forward.18} parent=11 // pred_fallthru
        _
    $region12: #{u_network_forward.18} parent=5 // pred_fallthru
      _
    %p194 = scmp.lt.s32.totalorder %s11, 2
    // Predicated region
    $region25: #{u_network_forward.18} parent=5 // pred_check
      %p195 = pneg %p194
    $region26: #{u_network_forward.18} parent=5 // pred_check_branch
      %197 = sbr.rel (%p195) target = $region28
    $region27: #{u_network_forward.18} parent=5 // pred_region
      // Predicated region
      $region29: #{u_network_forward.18} parent=27 // pred_check
        %p198 = pneg %p45
      $region30: #{u_network_forward.18} parent=27 // pred_check_branch
        %200 = sbr.rel (%p198) target = $region32
      $region31: #{u_network_forward.18} parent=27 // pred_region
        %p201 = scmp.lt.s32.totalorder %s18, 1
        %s202 = scalar_select %p201, %s18, 1
        %p203 = scmp.lt.s32.totalorder %s19, 0
        %s204 = scalar_select %p203, %s19, 0
        %s205 = smul.addr %s202, 18
        %s206 = sadd.s32 %s204, %s205
        %s207 = smul.addr %s206, 4
        %s208 = scalar_lea.vmem %s0, %s207
      $region32: #{u_network_forward.18} parent=27 // pred_fallthru
        _
      // Predicated region
      $region33: #{u_network_forward.18} parent=27 // pred_check
        %p209 = pneg %p73
      $region34: #{u_network_forward.18} parent=27 // pred_check_branch
        %211 = sbr.rel (%p209) target = $region36
      $region35: #{u_network_forward.18} parent=27 // pred_region
        %p212 = scmp.lt.s32.totalorder %s18, 1
        %s213 = scalar_select %p212, %s18, 1
        %p214 = scmp.lt.s32.totalorder %s19, 0
        %s215 = scalar_select %p214, %s19, 0
        %s216 = smul.addr %s213, 18
        %s217 = sadd.s32 %s215, %s216
        %s218 = smul.addr %s217, 4
        %s219 = scalar_lea.vmem %s1, %s218
      $region36: #{u_network_forward.18} parent=27 // pred_fallthru
        _
    $region28: #{u_network_forward.18} parent=5 // pred_fallthru
      _
    %p220 = scmp.le.s32.totalorder 1, %s11
    %p221 = scmp.lt.s32.totalorder %s11, 3
    %p222 = pnand %p220, %p221
    %p223 = pneg %p222
    // Predicated region
    $region37: #{u_network_forward.18} parent=5 // pred_check
      _
    $region38: #{u_network_forward.18} parent=5 // pred_check_branch
      %225 = sbr.rel (%p222) target = $region40
    $region39: #{u_network_forward.18} parent=5 // pred_region
      %s226 = ssub.s32 %s11, 1
      %p227 = scmp.lt.s32.totalorder %s20, 1
      %s228 = scalar_select %p227, %s20, 1
      %p229 = scmp.lt.s32.totalorder %s21, 0
      %s230 = scalar_select %p229, %s21, 0
      %s231 = smul.addr %s228, 18
      %s232 = sadd.s32 %s230, %s231
      %s233 = smul.addr %s232, 4
      %s234 = scalar_lea.vmem %s0, %s233
      %p235 = pneg %p51
      %p236 = pneg %p48
      %p237 = scmp.lt.s32.totalorder %s20, 1
      %s238 = scalar_select %p237, %s20, 1
      %p239 = scmp.lt.s32.totalorder %s21, 0
      %s240 = scalar_select %p239, %s21, 0
      %s241 = smul.addr %s238, 18
      %s242 = sadd.s32 %s240, %s241
      %s243 = smul.addr %s242, 4
      %s244 = scalar_lea.vmem %s1, %s243
      %p245 = pneg %p79
      %p246 = pneg %p76
      %p247 = pneg %p100
      %p248 = pneg %p97
      %p249 = pneg %p121
      %p250 = pneg %p118
      %p251 = pneg %p142
      %p252 = pneg %p139
      %p253 = pneg %p170
      %p254 = pneg %p167
      %p255 = scmp.lt.s32.totalorder %s20, 1
      %s256 = scalar_select %p255, %s20, 1
      %p257 = scmp.lt.s32.totalorder %s21, 0
      %s258 = scalar_select %p257, %s21, 0
      %s259 = smul.addr %s256, 2
      %s260 = sadd.s32 %s258, %s259
      %s261 = smul.addr %s260, 4
      %s262 = scalar_lea.vmem %s5, %s261
      %p263 = scmp.lt.s32.totalorder %s20, 1
      %s264 = scalar_select %p263, %s20, 1
      %p265 = scmp.lt.s32.totalorder %s21, 0
      %s266 = scalar_select %p265, %s21, 0
      %s267 = smul.addr %s264, 18
      %s268 = sadd.s32 %s266, %s267
      %s269 = smul.addr %s268, 4
      %s270 = scalar_lea.vmem %s0, %s269
      %p271 = scmp.lt.s32.totalorder %s20, 1
      %s272 = scalar_select %p271, %s20, 1
      %p273 = scmp.lt.s32.totalorder %s21, 0
      %s274 = scalar_select %p273, %s21, 0
      %s275 = smul.addr %s272, 18
      %s276 = sadd.s32 %s274, %s275
      %s277 = smul.addr %s276, 4
      %s278 = scalar_lea.vmem %s1, %s277
      %p279 = scmp.lt.s32.totalorder %s20, 1
      %s280 = scalar_select %p279, %s20, 1
      %p281 = scmp.lt.s32.totalorder %s21, 0
      %s282 = scalar_select %p281, %s21, 0
      %s283 = smul.addr %s280, 2
      %s284 = sadd.s32 %s282, %s283
      %s285 = smul.addr %s284, 4
      %s286 = scalar_lea.vmem %s5, %s285
      %v288 = vld [vmem:[%s2] sm:$0xff]
      %v289 = vld [vmem:[%s2 + $0x8] sm:$0xff]
      %v290 = vld [vmem:[%s270] sm:$0xf]
      %v291 = vld [vmem:[%s270 + $0x4] sm:$0xf]
      %v292 = vld [vmem:[%s270 + $0x8] sm:$0xf]
      %v293 = vld [vmem:[%s270 + $0xc] sm:$0xf]
      %v294 = vld [vmem:[%s270 + $0x10] sm:$0xf]
      %v295 = vld [vmem:[%s270 + $0x14] sm:$0xf]
      %v296 = vld [vmem:[%s270 + $0x18] sm:$0xf]
      %v297 = vld [vmem:[%s270 + $0x1c] sm:$0xf]
      %v298 = vld [vmem:[%s270 + $0x20] sm:$0xf]
      %v299 = vld [vmem:[%s270 + $0x24] sm:$0xf]
      %v300 = vld [vmem:[%s270 + $0x28] sm:$0xf]
      %v301 = vld [vmem:[%s270 + $0x2c] sm:$0xf]
      %v302 = vld [vmem:[%s270 + $0x30] sm:$0xf]
      %v303 = vld [vmem:[%s270 + $0x34] sm:$0xf]
      %v304 = vld [vmem:[%s270 + $0x38] sm:$0xf]
      %v305 = vld [vmem:[%s270 + $0x3c] sm:$0xf]
      %v306 = vld [vmem:[%s270 + $0x40] sm:$0xf]
      %v307 = vld [vmem:[%s270 + $0x44] sm:$0xf]
      %v308 = vld [vmem:[%s3] sm:$0xff]
      %v309 = vld [vmem:[%s3 + $0x8] sm:$0xff]
      %v310 = vld [vmem:[%s278] sm:$0xf]
      %v311 = vld [vmem:[%s278 + $0x4] sm:$0xf]
      %v312 = vld [vmem:[%s278 + $0x8] sm:$0xf]
      %v313 = vld [vmem:[%s278 + $0xc] sm:$0xf]
      %v314 = vld [vmem:[%s278 + $0x10] sm:$0xf]
      %v315 = vld [vmem:[%s278 + $0x14] sm:$0xf]
      %v316 = vld [vmem:[%s278 + $0x18] sm:$0xf]
      %v317 = vld [vmem:[%s278 + $0x1c] sm:$0xf]
      %v318 = vld [vmem:[%s278 + $0x20] sm:$0xf]
      %v319 = vld [vmem:[%s278 + $0x24] sm:$0xf]
      %v320 = vld [vmem:[%s278 + $0x28] sm:$0xf]
      %v321 = vld [vmem:[%s278 + $0x2c] sm:$0xf]
      %v322 = vld [vmem:[%s278 + $0x30] sm:$0xf]
      %v323 = vld [vmem:[%s278 + $0x34] sm:$0xf]
      %v324 = vld [vmem:[%s278 + $0x38] sm:$0xf]
      %v325 = vld [vmem:[%s278 + $0x3c] sm:$0xf]
      %v326 = vld [vmem:[%s278 + $0x40] sm:$0xf]
      %v327 = vld [vmem:[%s278 + $0x44] sm:$0xf]
      %v330 = vunpack.c.l.b16 %v308
      %v331 = vunpack.c.h.b16 %v308
      %v332 = vunpack.c.l.b16 %v309
      %v333 = vunpack.c.h.b16 %v309
      %v334 = vpack.c.b16 %v332, %v330
      %v335 = vpack.c.b16 %v333, %v331
      %v355 = vunpack.c.l.b16 %v310
      %v356 = vunpack.c.l.b16 %v311
      %v357 = vunpack.c.l.b16 %v312
      %v358 = vunpack.c.l.b16 %v313
      %v359 = vunpack.c.l.b16 %v314
      %v360 = vunpack.c.l.b16 %v315
      %v361 = vunpack.c.l.b16 %v316
      %v362 = vunpack.c.l.b16 %v317
      %v363 = vunpack.c.l.b16 %v318
      %v364 = vunpack.c.l.b16 %v319
      %v365 = vunpack.c.l.b16 %v320
      %v366 = vunpack.c.l.b16 %v321
      %v367 = vunpack.c.l.b16 %v322
      %v368 = vunpack.c.l.b16 %v323
      %v369 = vunpack.c.l.b16 %v324
      %v370 = vunpack.c.l.b16 %v325
      %v371 = vunpack.c.l.b16 %v326
      %v372 = vunpack.c.l.b16 %v327
      %v373 = vpack.c.b16 %v356, %v355
      %v374 = vpack.c.b16 %v358, %v357
      %v375 = vpack.c.b16 %v360, %v359
      %v376 = vpack.c.b16 %v362, %v361
      %v377 = vpack.c.b16 %v364, %v363
      %v378 = vpack.c.b16 %v366, %v365
      %v379 = vpack.c.b16 %v368, %v367
      %v380 = vpack.c.b16 %v370, %v369
      %v381 = vpack.c.b16 %v372, %v371
      %vm391 = vcmask 130048
      %v393 = vsel %vm391, %v335, 0
      %395 = vmatprep.subr.bf16.mxu0 0
      %396 = vmatpush1.bf16.msra.mxu0 %v373
      %397 = vmatprep.subr.bf16.mxu0 0
      %398 = vmatpush1.bf16.msra.mxu0 %v374
      %399 = vmatprep.subr.bf16.mxu0 0
      %400 = vmatpush1.bf16.msra.mxu0 %v375
      %401 = vmatprep.subr.bf16.mxu0 0
      %402 = vmatpush1.bf16.msra.mxu0 %v376
      %403 = vmatprep.subr.bf16.mxu0 0
      %404 = vmatpush1.bf16.msra.mxu0 %v377
      %405 = vmatprep.subr.bf16.mxu0 0
      %406 = vmatpush1.bf16.msra.mxu0 %v378
      %407 = vmatprep.subr.bf16.mxu0 0
      %408 = vmatpush1.bf16.msra.mxu0 %v379
      %409 = vmatprep.subr.bf16.mxu0 0
      %410 = vmatpush1.bf16.msra.mxu0 %v380
      %411 = vmatprep.subr.bf16.mxu0 0
      %412 = vmatpush1.bf16.msra.mxu0 %v381
      %413 = vmatprep.subr.bf16.mxu0 0
      %414 = vmatpush1.bf16.msra.mxu0 0
      %415 = vmatprep.subr.bf16.mxu0 0
      %416 = vmatpush1.bf16.msra.mxu0 0
      %417 = vmatprep.subr.bf16.mxu0 0
      %418 = vmatpush1.bf16.msra.mxu0 0
      %419 = vmatprep.subr.bf16.mxu0 0
      %420 = vmatpush1.bf16.msra.mxu0 0
      %421 = vmatprep.subr.bf16.mxu0 0
      %422 = vmatpush1.bf16.msra.mxu0 0
      %423 = vmatprep.subr.bf16.mxu0 0
      %424 = vmatpush1.bf16.msra.mxu0 0
      %425 = vmatprep.subr.bf16.mxu0 0
      %426 = vmatpush1.bf16.msra.mxu0 0
      %427 = vmatprep.mubr.bf16.mxu0 %v393
      %428 = vmatmul.mubr.bf16.gmra.mrb[0].mxu0 %v334
      %v429 = vpop.f32.mrb[0].mxu0
      %v430 = vadd.f32 0.0, %v429
      %v431 = vpop.f32.mrb[0].mxu0
      %v432 = vpop.f32.mrb[0].mxu0
      %v433 = vadd.f32 0.0, %v432
      %v434 = vpop.f32.mrb[0].mxu0
      %435 = vdwg.mxu0
      %v438 = vunpack.c.l.b16 %v288
      %v439 = vunpack.c.h.b16 %v288
      %v440 = vunpack.c.l.b16 %v289
      %v441 = vunpack.c.h.b16 %v289
      %v442 = vpack.c.b16 %v440, %v438
      %v443 = vpack.c.b16 %v441, %v439
      %v463 = vunpack.c.l.b16 %v290
      %v464 = vunpack.c.l.b16 %v291
      %v465 = vunpack.c.l.b16 %v292
      %v466 = vunpack.c.l.b16 %v293
      %v467 = vunpack.c.l.b16 %v294
      %v468 = vunpack.c.l.b16 %v295
      %v469 = vunpack.c.l.b16 %v296
      %v470 = vunpack.c.l.b16 %v297
      %v471 = vunpack.c.l.b16 %v298
      %v472 = vunpack.c.l.b16 %v299
      %v473 = vunpack.c.l.b16 %v300
      %v474 = vunpack.c.l.b16 %v301
      %v475 = vunpack.c.l.b16 %v302
      %v476 = vunpack.c.l.b16 %v303
      %v477 = vunpack.c.l.b16 %v304
      %v478 = vunpack.c.l.b16 %v305
      %v479 = vunpack.c.l.b16 %v306
      %v480 = vunpack.c.l.b16 %v307
      %v481 = vpack.c.b16 %v464, %v463
      %v482 = vpack.c.b16 %v466, %v465
      %v483 = vpack.c.b16 %v468, %v467
      %v484 = vpack.c.b16 %v470, %v469
      %v485 = vpack.c.b16 %v472, %v471
      %v486 = vpack.c.b16 %v474, %v473
      %v487 = vpack.c.b16 %v476, %v475
      %v488 = vpack.c.b16 %v478, %v477
      %v489 = vpack.c.b16 %v480, %v479
      %v500 = vsel %vm391, %v443, 0
      %502 = vmatprep.subr.bf16.mxu0 0
      %503 = vmatpush1.bf16.msra.mxu0 %v481
      %504 = vmatprep.subr.bf16.mxu0 0
      %505 = vmatpush1.bf16.msra.mxu0 %v482
      %506 = vmatprep.subr.bf16.mxu0 0
      %507 = vmatpush1.bf16.msra.mxu0 %v483
      %508 = vmatprep.subr.bf16.mxu0 0
      %509 = vmatpush1.bf16.msra.mxu0 %v484
      %510 = vmatprep.subr.bf16.mxu0 0
      %511 = vmatpush1.bf16.msra.mxu0 %v485
      %512 = vmatprep.subr.bf16.mxu0 0
      %513 = vmatpush1.bf16.msra.mxu0 %v486
      %514 = vmatprep.subr.bf16.mxu0 0
      %515 = vmatpush1.bf16.msra.mxu0 %v487
      %516 = vmatprep.subr.bf16.mxu0 0
      %517 = vmatpush1.bf16.msra.mxu0 %v488
      %518 = vmatprep.subr.bf16.mxu0 0
      %519 = vmatpush1.bf16.msra.mxu0 %v489
      %520 = vmatprep.subr.bf16.mxu0 0
      %521 = vmatpush1.bf16.msra.mxu0 0
      %522 = vmatprep.subr.bf16.mxu0 0
      %523 = vmatpush1.bf16.msra.mxu0 0
      %524 = vmatprep.subr.bf16.mxu0 0
      %525 = vmatpush1.bf16.msra.mxu0 0
      %526 = vmatprep.subr.bf16.mxu0 0
      %527 = vmatpush1.bf16.msra.mxu0 0
      %528 = vmatprep.subr.bf16.mxu0 0
      %529 = vmatpush1.bf16.msra.mxu0 0
      %530 = vmatprep.subr.bf16.mxu0 0
      %531 = vmatpush1.bf16.msra.mxu0 0
      %532 = vmatprep.subr.bf16.mxu0 0
      %533 = vmatpush1.bf16.msra.mxu0 0
      %534 = vmatprep.mubr.bf16.mxu0 %v500
      %535 = vmatmul.mubr.bf16.gmra.mrb[0].mxu0 %v442
      %v536 = vpop.f32.mrb[0].mxu0
      %v537 = vadd.f32 %v430, %v536
      %v538 = vpop.f32.mrb[0].mxu0
      %v539 = vpop.f32.mrb[0].mxu0
      %v540 = vadd.f32 %v433, %v539
      %v541 = vpop.f32.mrb[0].mxu0
      %542 = vdwg.mxu0
      %v543 = vld [vmem:[%s4] sm:$0xff]
      %v544 = vld [vmem:[%s4 + $0x8] sm:$0xff]
      %546 = vset.pattern.permute.xlu0 0
      %547 = vperm.xlu0 %546, %v543
      %v548 = vpop.permute.xlu0 %547
      %551 = vset.pattern.permute.xlu0 0
      %552 = vperm.xlu0 %551, %v544
      %v553 = vpop.permute.xlu0 %552
      %v555 = vadd.f32 %v537, %v548
      %v556 = vadd.f32 %v540, %v553
      %vm557 = vcmp.ge.f32.partialorder %v555, 0.0
      %vm558 = vcmp.ge.f32.partialorder %v556, 0.0
      %v559 = vmul.f32 %v555, 0.2
      %v560 = vmul.f32 %v556, 0.2
      %v561 = vsel %vm557, %v555, %v559
      %v562 = vsel %vm558, %v556, %v560
      %v563 = vpack.c.bf16 %v562, %v561
      %v565 = vunpack.c.l.b16 %v563
      %v566 = vunpack.c.h.b16 %v563
      %v567 = vpack.c.b16 %v565, %v565
      %v568 = vpack.c.b16 %v566, %v566
      %vm571 = vcmask 125952
      %572 = vst.msk [vmem:[%s286] sm:$0xf] %vm571, %v567
      %573 = vst.msk [vmem:[%s286 + $0x4] sm:$0xf] %vm571, %v568
      %p574 = scmp.lt.s32.totalorder %s20, 1
      %s575 = scalar_select %p574, %s20, 1
      %p576 = scmp.lt.s32.totalorder %s21, 0
      %s577 = scalar_select %p576, %s21, 0
      %s578 = smul.addr %s575, 2
      %s579 = sadd.s32 %s577, %s578
      %s580 = smul.addr %s579, 4
      %s581 = scalar_lea.vmem %s5, %s580
      // Predicated region
      $region41: #{u_network_forward.18} parent=39 // pred_check
        %p582 = pneg %p167
      $region42: #{u_network_forward.18} parent=39 // pred_check_branch
        %584 = sbr.rel (%p582) target = $region44
      $region43: #{u_network_forward.18} parent=39 // pred_region
        _
      $region44: #{u_network_forward.18} parent=39 // pred_fallthru
        _
    $region40: #{u_network_forward.18} parent=5 // pred_fallthru
      _
    %p585 = scmp.le.s32.totalorder 2, %s11
    // Predicated region
    $region45: #{u_network_forward.18} parent=5 // pred_check
      %p586 = pneg %p585
    $region46: #{u_network_forward.18} parent=5 // pred_check_branch
      %588 = sbr.rel (%p586) target = $region48
    $region47: #{u_network_forward.18} parent=5 // pred_region
      %s589 = ssub.s32 %s11, 2
      // Predicated region
      $region49: #{u_network_forward.18} parent=47 // pred_check
        %p590 = pneg %p173
      $region50: #{u_network_forward.18} parent=47 // pred_check_branch
        %592 = sbr.rel (%p590) target = $region52
      $region51: #{u_network_forward.18} parent=47 // pred_region
        %p593 = scmp.lt.s32.totalorder %s22, 1
        %s594 = scalar_select %p593, %s22, 1
        %p595 = scmp.lt.s32.totalorder %s23, 0
        %s596 = scalar_select %p595, %s23, 0
        %s597 = smul.addr %s594, 2
        %s598 = sadd.s32 %s596, %s597
        %s599 = smul.addr %s598, 4
        %s600 = scalar_lea.vmem %s5, %s599
      $region52: #{u_network_forward.18} parent=47 // pred_fallthru
        _
    $region48: #{u_network_forward.18} parent=5 // pred_fallthru
      _
  $region6: #{u_network_forward.18} parent=0 // loop_footer
    %s15 = sadd.s32 1, %s11
  $region7: #{u_network_forward.18} parent=0 // loop_footer_branch
    %10 = sbr.rel target = $region3
  $region8: #{u_network_forward.18} parent=0 // loop_exit
    _

// kernel: u_network_forward.19
$region0: #{u_network_forward.19}
  #allocation0 [shape = 'u32[]', space=smem, size = 0x4, offset = 0x4, fixed_abs, tag = 'smem constant byte address 0x4 - core index']
  #allocation1 [shape = 'u32[144,128]{1,0:T(1,128)}', space=vmem, size = 0x12000, scoped, tag = 'internal scratch']
  %s0 = inlined_call_operand.vmem [shape: bf16[2,144,64], index: 0, kind: input, shape index: {}]
  %s1 = inlined_call_operand.vmem [shape: bf16[2,72,64], index: 1, kind: input, shape index: {}]
  %s2 = inlined_call_operand.vmem [shape: bf16[16,144], index: 2, kind: input, shape index: {}]
  %s3 = inlined_call_operand.vmem [shape: bf16[16,72], index: 3, kind: input, shape index: {}]
  %s4 = inlined_call_operand.vmem [shape: f32[16,1], index: 4, kind: input, shape index: {}]
  %s5 = inlined_call_operand.vmem [shape: bf16[2,16,64], index: 5, kind: output, shape index: {}]
  %s6 = sld [smem:[#allocation0]]
  $region53: #{u_network_forward.19} parent=0
    _
  %s8 = ssub.s32 1, %s6
  %s9 = scalar_select 0, %s8, %s6
  loop: start=0, step=1, limit=4
  $region2: #{u_network_forward.19} parent=0 // loop_pre_header
    _
  $region3: #{u_network_forward.19} parent=0 // loop_header
    %s11 = sphi 0, %s15
    %p12 = scmp.ge.s32.totalorder %s11, 4
    %s18 = sphi 0, %s30
    %s19 = sphi 0, %s26
    %s20 = sphi 0, %s18
    %s21 = sphi 0, %s19
    %s22 = sphi 0, %s20
    %s23 = sphi 0, %s21
    %s35 = sphi 0, %s37
    %s38 = sphi 0, %s35
    %s39 = sphi 0, %s38
    %s55 = sphi 0, %s39
    %s63 = sphi 0, %s65
    %s66 = sphi 0, %s63
    %s67 = sphi 0, %s66
    %s83 = sphi 0, %s67
    %s87 = sphi 0, %s87
    %s89 = sphi 0, %s87
    %s90 = sphi 0, %s89
    %s104 = sphi 0, %s90
    %s108 = sphi 0, %s108
    %s110 = sphi 0, %s108
    %s111 = sphi 0, %s110
    %s125 = sphi 0, %s111
    %s129 = sphi 0, %s129
    %s131 = sphi 0, %s129
    %s132 = sphi 0, %s131
    %s146 = sphi 0, %s132
    %s154 = sphi 0, %s156
    %s157 = sphi 0, %s154
    %s158 = sphi 0, %s157
    %s174 = sphi 0, %s158
  $region4: #{u_network_forward.19} parent=0 // loop_header_branch
    %14 = sbr.rel (%p12) target = $region8
  $region5: #{u_network_forward.19} parent=0 // loop_body
    %s16 = ssub.s32 %s11, 1
    %s17 = ssub.s32 %s11, 2
    %s24 = sadd.s32 1, %s19
    %p25 = scmp.ge.s32.totalorder %s24, 1
    %s26 = scalar_select %p25, 0, %s24
    %s27 = sadd.s32 1, %s18
    %s28 = scalar_select %p25, %s27, %s18
    %p29 = scmp.ge.s32.totalorder %s28, 2
    %s30 = scalar_select %p29, 0, %s28
    %s31 = ssub.s32 %s18, %s30
    %s32 = ssub.s32 %s19, %s26
    %s33 = sor.u32 %s31, %s32
    %p34 = scmp.eq.s32.totalorder %s33, 0
    %s36 = sadd.s32 %s35, 1
    %s37 = scalar_select %p34, %s35, %s36
    %p40 = pneg %p34
    %p41 = scmp.eq.s32.totalorder %s11, 1
    %p42 = por %p40, %p41
    %p43 = scmp.ne.s32.totalorder %s35, %s38
    %p44 = scmp.eq.s32.totalorder %s11, 0
    %p45 = por %p43, %p44
    %p46 = scmp.ne.s32.totalorder %s35, %s38
    %p47 = scmp.eq.s32.totalorder %s16, 1
    %p48 = por %p46, %p47
    %p49 = scmp.ne.s32.totalorder %s38, %s39
    %p50 = scmp.eq.s32.totalorder %s16, 0
    %p51 = por %p49, %p50
    %p52 = scmp.ne.s32.totalorder %s38, %s39
    %p53 = scmp.eq.s32.totalorder %s17, 1
    %p54 = por %p52, %p53
    %p56 = scmp.ne.s32.totalorder %s39, %s55
    %p57 = scmp.eq.s32.totalorder %s17, 0
    %p58 = por %p56, %p57
    %s59 = ssub.s32 %s18, %s30
    %s60 = ssub.s32 %s19, %s26
    %s61 = sor.u32 %s59, %s60
    %p62 = scmp.eq.s32.totalorder %s61, 0
    %s64 = sadd.s32 %s63, 1
    %s65 = scalar_select %p62, %s63, %s64
    %p68 = pneg %p62
    %p69 = scmp.eq.s32.totalorder %s11, 1
    %p70 = por %p68, %p69
    %p71 = scmp.ne.s32.totalorder %s63, %s66
    %p72 = scmp.eq.s32.totalorder %s11, 0
    %p73 = por %p71, %p72
    %p74 = scmp.ne.s32.totalorder %s63, %s66
    %p75 = scmp.eq.s32.totalorder %s16, 1
    %p76 = por %p74, %p75
    %p77 = scmp.ne.s32.totalorder %s66, %s67
    %p78 = scmp.eq.s32.totalorder %s16, 0
    %p79 = por %p77, %p78
    %p80 = scmp.ne.s32.totalorder %s66, %s67
    %p81 = scmp.eq.s32.totalorder %s17, 1
    %p82 = por %p80, %p81
    %p84 = scmp.ne.s32.totalorder %s67, %s83
    %p85 = scmp.eq.s32.totalorder %s17, 0
    %p86 = por %p84, %p85
    %s88 = sadd.s32 %s87, 1
    %p91 = scmp.eq.s32.totalorder %s11, 1
    %p92 = scmp.ne.s32.totalorder %s87, %s89
    %p93 = scmp.eq.s32.totalorder %s11, 0
    %p94 = por %p92, %p93
    %p95 = scmp.ne.s32.totalorder %s87, %s89
    %p96 = scmp.eq.s32.totalorder %s16, 1
    %p97 = por %p95, %p96
    %p98 = scmp.ne.s32.totalorder %s89, %s90
    %p99 = scmp.eq.s32.totalorder %s16, 0
    %p100 = por %p98, %p99
    %p101 = scmp.ne.s32.totalorder %s89, %s90
    %p102 = scmp.eq.s32.totalorder %s17, 1
    %p103 = por %p101, %p102
    %p105 = scmp.ne.s32.totalorder %s90, %s104
    %p106 = scmp.eq.s32.totalorder %s17, 0
    %p107 = por %p105, %p106
    %s109 = sadd.s32 %s108, 1
    %p112 = scmp.eq.s32.totalorder %s11, 1
    %p113 = scmp.ne.s32.totalorder %s108, %s110
    %p114 = scmp.eq.s32.totalorder %s11, 0
    %p115 = por %p113, %p114
    %p116 = scmp.ne.s32.totalorder %s108, %s110
    %p117 = scmp.eq.s32.totalorder %s16, 1
    %p118 = por %p116, %p117
    %p119 = scmp.ne.s32.totalorder %s110, %s111
    %p120 = scmp.eq.s32.totalorder %s16, 0
    %p121 = por %p119, %p120
    %p122 = scmp.ne.s32.totalorder %s110, %s111
    %p123 = scmp.eq.s32.totalorder %s17, 1
    %p124 = por %p122, %p123
    %p126 = scmp.ne.s32.totalorder %s111, %s125
    %p127 = scmp.eq.s32.totalorder %s17, 0
    %p128 = por %p126, %p127
    %s130 = sadd.s32 %s129, 1
    %p133 = scmp.eq.s32.totalorder %s11, 1
    %p134 = scmp.ne.s32.totalorder %s129, %s131
    %p135 = scmp.eq.s32.totalorder %s11, 0
    %p136 = por %p134, %p135
    %p137 = scmp.ne.s32.totalorder %s129, %s131
    %p138 = scmp.eq.s32.totalorder %s16, 1
    %p139 = por %p137, %p138
    %p140 = scmp.ne.s32.totalorder %s131, %s132
    %p141 = scmp.eq.s32.totalorder %s16, 0
    %p142 = por %p140, %p141
    %p143 = scmp.ne.s32.totalorder %s131, %s132
    %p144 = scmp.eq.s32.totalorder %s17, 1
    %p145 = por %p143, %p144
    %p147 = scmp.ne.s32.totalorder %s132, %s146
    %p148 = scmp.eq.s32.totalorder %s17, 0
    %p149 = por %p147, %p148
    %s150 = ssub.s32 %s18, %s30
    %s151 = ssub.s32 %s19, %s26
    %s152 = sor.u32 %s150, %s151
    %p153 = scmp.eq.s32.totalorder %s152, 0
    %s155 = sadd.s32 %s154, 1
    %s156 = scalar_select %p153, %s154, %s155
    %p159 = pneg %p153
    %p160 = scmp.eq.s32.totalorder %s11, 1
    %p161 = por %p159, %p160
    %p162 = scmp.ne.s32.totalorder %s154, %s157
    %p163 = scmp.eq.s32.totalorder %s11, 0
    %p164 = por %p162, %p163
    %p165 = scmp.ne.s32.totalorder %s154, %s157
    %p166 = scmp.eq.s32.totalorder %s16, 1
    %p167 = por %p165, %p166
    %p168 = scmp.ne.s32.totalorder %s157, %s158
    %p169 = scmp.eq.s32.totalorder %s16, 0
    %p170 = por %p168, %p169
    %p171 = scmp.ne.s32.totalorder %s157, %s158
    %p172 = scmp.eq.s32.totalorder %s17, 1
    %p173 = por %p171, %p172
    %p175 = scmp.ne.s32.totalorder %s158, %s174
    %p176 = scmp.eq.s32.totalorder %s17, 0
    %p177 = por %p175, %p176
    %p178 = scmp.le.s32.totalorder 1, %s11
    %p179 = scmp.lt.s32.totalorder %s11, 3
    %p180 = pnand %p178, %p179
    %p181 = pneg %p180
    // Predicated region
    $region9: #{u_network_forward.19} parent=5 // pred_check
      _
    $region10: #{u_network_forward.19} parent=5 // pred_check_branch
      %183 = sbr.rel (%p180) target = $region12
    $region11: #{u_network_forward.19} parent=5 // pred_region
      %s184 = ssub.s32 %s11, 1
      // Predicated region
      $region13: #{u_network_forward.19} parent=11 // pred_check
        %p185 = pneg %p100
      $region14: #{u_network_forward.19} parent=11 // pred_check_branch
        %187 = sbr.rel (%p185) target = $region16
      $region15: #{u_network_forward.19} parent=11 // pred_region
        _
      $region16: #{u_network_forward.19} parent=11 // pred_fallthru
        _
      // Predicated region
      $region17: #{u_network_forward.19} parent=11 // pred_check
        %p188 = pneg %p121
      $region18: #{u_network_forward.19} parent=11 // pred_check_branch
        %190 = sbr.rel (%p188) target = $region20
      $region19: #{u_network_forward.19} parent=11 // pred_region
        _
      $region20: #{u_network_forward.19} parent=11 // pred_fallthru
        _
      // Predicated region
      $region21: #{u_network_forward.19} parent=11 // pred_check
        %p191 = pneg %p142
      $region22: #{u_network_forward.19} parent=11 // pred_check_branch
        %193 = sbr.rel (%p191) target = $region24
      $region23: #{u_network_forward.19} parent=11 // pred_region
        _
      $region24: #{u_network_forward.19} parent=11 // pred_fallthru
        _
    $region12: #{u_network_forward.19} parent=5 // pred_fallthru
      _
    %p194 = scmp.lt.s32.totalorder %s11, 2
    // Predicated region
    $region25: #{u_network_forward.19} parent=5 // pred_check
      %p195 = pneg %p194
    $region26: #{u_network_forward.19} parent=5 // pred_check_branch
      %197 = sbr.rel (%p195) target = $region28
    $region27: #{u_network_forward.19} parent=5 // pred_region
      // Predicated region
      $region29: #{u_network_forward.19} parent=27 // pred_check
        %p198 = pneg %p45
      $region30: #{u_network_forward.19} parent=27 // pred_check_branch
        %200 = sbr.rel (%p198) target = $region32
      $region31: #{u_network_forward.19} parent=27 // pred_region
        %p201 = scmp.lt.s32.totalorder %s18, 1
        %s202 = scalar_select %p201, %s18, 1
        %p203 = scmp.lt.s32.totalorder %s19, 0
        %s204 = scalar_select %p203, %s19, 0
        %s205 = smul.addr %s202, 18
        %s206 = sadd.s32 %s204, %s205
        %s207 = smul.addr %s206, 4
        %s208 = scalar_lea.vmem %s0, %s207
      $region32: #{u_network_forward.19} parent=27 // pred_fallthru
        _
      // Predicated region
      $region33: #{u_network_forward.19} parent=27 // pred_check
        %p209 = pneg %p73
      $region34: #{u_network_forward.19} parent=27 // pred_check_branch
        %211 = sbr.rel (%p209) target = $region36
      $region35: #{u_network_forward.19} parent=27 // pred_region
        %p212 = scmp.lt.s32.totalorder %s18, 1
        %s213 = scalar_select %p212, %s18, 1
        %p214 = scmp.lt.s32.totalorder %s19, 0
        %s215 = scalar_select %p214, %s19, 0
        %s216 = smul.addr %s213, 9
        %s217 = sadd.s32 %s215, %s216
        %s218 = smul.addr %s217, 4
        %s219 = scalar_lea.vmem %s1, %s218
      $region36: #{u_network_forward.19} parent=27 // pred_fallthru
        _
    $region28: #{u_network_forward.19} parent=5 // pred_fallthru
      _
    %p220 = scmp.le.s32.totalorder 1, %s11
    %p221 = scmp.lt.s32.totalorder %s11, 3
    %p222 = pnand %p220, %p221
    %p223 = pneg %p222
    // Predicated region
    $region37: #{u_network_forward.19} parent=5 // pred_check
      _
    $region38: #{u_network_forward.19} parent=5 // pred_check_branch
      %225 = sbr.rel (%p222) target = $region40
    $region39: #{u_network_forward.19} parent=5 // pred_region
      %s226 = ssub.s32 %s11, 1
      %p227 = scmp.lt.s32.totalorder %s20, 1
      %s228 = scalar_select %p227, %s20, 1
      %p229 = scmp.lt.s32.totalorder %s21, 0
      %s230 = scalar_select %p229, %s21, 0
      %s231 = smul.addr %s228, 18
      %s232 = sadd.s32 %s230, %s231
      %s233 = smul.addr %s232, 4
      %s234 = scalar_lea.vmem %s0, %s233
      %p235 = pneg %p51
      %p236 = pneg %p48
      %p237 = scmp.lt.s32.totalorder %s20, 1
      %s238 = scalar_select %p237, %s20, 1
      %p239 = scmp.lt.s32.totalorder %s21, 0
      %s240 = scalar_select %p239, %s21, 0
      %s241 = smul.addr %s238, 9
      %s242 = sadd.s32 %s240, %s241
      %s243 = smul.addr %s242, 4
      %s244 = scalar_lea.vmem %s1, %s243
      %p245 = pneg %p79
      %p246 = pneg %p76
      %p247 = pneg %p100
      %p248 = pneg %p97
      %p249 = pneg %p121
      %p250 = pneg %p118
      %p251 = pneg %p142
      %p252 = pneg %p139
      %p253 = pneg %p170
      %p254 = pneg %p167
      %p255 = scmp.lt.s32.totalorder %s20, 1
      %s256 = scalar_select %p255, %s20, 1
      %p257 = scmp.lt.s32.totalorder %s21, 0
      %s258 = scalar_select %p257, %s21, 0
      %s259 = smul.addr %s256, 2
      %s260 = sadd.s32 %s258, %s259
      %s261 = smul.addr %s260, 4
      %s262 = scalar_lea.vmem %s5, %s261
      %p263 = scmp.lt.s32.totalorder %s20, 1
      %s264 = scalar_select %p263, %s20, 1
      %p265 = scmp.lt.s32.totalorder %s21, 0
      %s266 = scalar_select %p265, %s21, 0
      %s267 = smul.addr %s264, 18
      %s268 = sadd.s32 %s266, %s267
      %s269 = smul.addr %s268, 4
      %s270 = scalar_lea.vmem %s0, %s269
      %p271 = scmp.lt.s32.totalorder %s20, 1
      %s272 = scalar_select %p271, %s20, 1
      %p273 = scmp.lt.s32.totalorder %s21, 0
      %s274 = scalar_select %p273, %s21, 0
      %s275 = smul.addr %s272, 9
      %s276 = sadd.s32 %s274, %s275
      %s277 = smul.addr %s276, 4
      %s278 = scalar_lea.vmem %s1, %s277
      %p279 = scmp.lt.s32.totalorder %s20, 1
      %s280 = scalar_select %p279, %s20, 1
      %p281 = scmp.lt.s32.totalorder %s21, 0
      %s282 = scalar_select %p281, %s21, 0
      %s283 = smul.addr %s280, 2
      %s284 = sadd.s32 %s282, %s283
      %s285 = smul.addr %s284, 4
      %s286 = scalar_lea.vmem %s5, %s285
      %v288 = vld [vmem:[%s2] sm:$0xff]
      %v289 = vld [vmem:[%s2 + $0x8] sm:$0xff]
      %v290 = vld [vmem:[%s270] sm:$0xf]
      %v291 = vld [vmem:[%s270 + $0x4] sm:$0xf]
      %v292 = vld [vmem:[%s270 + $0x8] sm:$0xf]
      %v293 = vld [vmem:[%s270 + $0xc] sm:$0xf]
      %v294 = vld [vmem:[%s270 + $0x10] sm:$0xf]
      %v295 = vld [vmem:[%s270 + $0x14] sm:$0xf]
      %v296 = vld [vmem:[%s270 + $0x18] sm:$0xf]
      %v297 = vld [vmem:[%s270 + $0x1c] sm:$0xf]
      %v298 = vld [vmem:[%s270 + $0x20] sm:$0xf]
      %v299 = vld [vmem:[%s270 + $0x24] sm:$0xf]
      %v300 = vld [vmem:[%s270 + $0x28] sm:$0xf]
      %v301 = vld [vmem:[%s270 + $0x2c] sm:$0xf]
      %v302 = vld [vmem:[%s270 + $0x30] sm:$0xf]
      %v303 = vld [vmem:[%s270 + $0x34] sm:$0xf]
      %v304 = vld [vmem:[%s270 + $0x38] sm:$0xf]
      %v305 = vld [vmem:[%s270 + $0x3c] sm:$0xf]
      %v306 = vld [vmem:[%s270 + $0x40] sm:$0xf]
      %v307 = vld [vmem:[%s270 + $0x44] sm:$0xf]
      %v308 = vld [vmem:[%s3] sm:$0xf]
      %v309 = vld [vmem:[%s3 + $0x4] sm:$0xf]
      %v310 = vld [vmem:[%s278] sm:$0xf]
      %v311 = vld [vmem:[%s278 + $0x4] sm:$0xf]
      %v312 = vld [vmem:[%s278 + $0x8] sm:$0xf]
      %v313 = vld [vmem:[%s278 + $0xc] sm:$0xf]
      %v314 = vld [vmem:[%s278 + $0x10] sm:$0xf]
      %v315 = vld [vmem:[%s278 + $0x14] sm:$0xf]
      %v316 = vld [vmem:[%s278 + $0x18] sm:$0xf]
      %v317 = vld [vmem:[%s278 + $0x1c] sm:$0xf]
      %v318 = vld [vmem:[%s278 + $0x20] sm:$0xf]
      %v321 = vunpack.c.l.b16 %v308
      %v322 = vunpack.c.l.b16 %v309
      %v323 = vpack.c.b16 %v322, %v321
      %v333 = vunpack.c.l.b16 %v310
      %v334 = vunpack.c.l.b16 %v311
      %v335 = vunpack.c.l.b16 %v312
      %v336 = vunpack.c.l.b16 %v313
      %v337 = vunpack.c.l.b16 %v314
      %v338 = vunpack.c.l.b16 %v315
      %v339 = vunpack.c.l.b16 %v316
      %v340 = vunpack.c.l.b16 %v317
      %v341 = vunpack.c.l.b16 %v318
      %v342 = vpack.c.b16 %v334, %v333
      %v343 = vpack.c.b16 %v336, %v335
      %v344 = vpack.c.b16 %v338, %v337
      %v345 = vpack.c.b16 %v340, %v339
      %v346 = vpack.c.b16 %v341, %v341
      %vm351 = vcmask 588800
      %v353 = vsel %vm351, %v323, 0
      %vm355 = vcmask 1043456
      %v357 = vsel %vm355, %v346, 0
      %359 = vmatprep.subr.bf16.mxu0 0
      %360 = vmatpush1.bf16.msra.mxu0 %v342
      %361 = vmatprep.subr.bf16.mxu0 0
      %362 = vmatpush1.bf16.msra.mxu0 %v343
      %363 = vmatprep.subr.bf16.mxu0 0
      %364 = vmatpush1.bf16.msra.mxu0 %v344
      %365 = vmatprep.subr.bf16.mxu0 0
      %366 = vmatpush1.bf16.msra.mxu0 %v345
      %367 = vmatprep.subr.bf16.mxu0 0
      %368 = vmatpush1.bf16.msra.mxu0 %v357
      %369 = vmatprep.subr.bf16.mxu0 0
      %370 = vmatpush1.bf16.msra.mxu0 0
      %371 = vmatprep.subr.bf16.mxu0 0
      %372 = vmatpush1.bf16.msra.mxu0 0
      %373 = vmatprep.subr.bf16.mxu0 0
      %374 = vmatpush1.bf16.msra.mxu0 0
      %375 = vmatprep.subr.bf16.mxu0 0
      %376 = vmatpush1.bf16.msra.mxu0 0
      %377 = vmatprep.subr.bf16.mxu0 0
      %378 = vmatpush1.bf16.msra.mxu0 0
      %379 = vmatprep.subr.bf16.mxu0 0
      %380 = vmatpush1.bf16.msra.mxu0 0
      %381 = vmatprep.subr.bf16.mxu0 0
      %382 = vmatpush1.bf16.msra.mxu0 0
      %383 = vmatprep.subr.bf16.mxu0 0
      %384 = vmatpush1.bf16.msra.mxu0 0
      %385 = vmatprep.subr.bf16.mxu0 0
      %386 = vmatpush1.bf16.msra.mxu0 0
      %387 = vmatprep.subr.bf16.mxu0 0
      %388 = vmatpush1.bf16.msra.mxu0 0
      %389 = vmatprep.subr.bf16.mxu0 0
      %390 = vmatpush1.bf16.msra.mxu0 0
      %391 = vmatprep.mubr.bf16.mxu0 0
      %392 = vmatmul.mubr.bf16.gmra.mrb[0].mxu0 %v353
      %v393 = vpop.f32.mrb[0].mxu0
      %v394 = vadd.f32 0.0, %v393
      %v395 = vpop.f32.mrb[0].mxu0
      %v396 = vpop.f32.mrb[0].mxu0
      %v397 = vadd.f32 0.0, %v396
      %v398 = vpop.f32.mrb[0].mxu0
      %399 = vdwg.mxu0
      %v402 = vunpack.c.l.b16 %v288
      %v403 = vunpack.c.h.b16 %v288
      %v404 = vunpack.c.l.b16 %v289
      %v405 = vunpack.c.h.b16 %v289
      %v406 = vpack.c.b16 %v404, %v402
      %v407 = vpack.c.b16 %v405, %v403
      %v427 = vunpack.c.l.b16 %v290
      %v428 = vunpack.c.l.b16 %v291
      %v429 = vunpack.c.l.b16 %v292
      %v430 = vunpack.c.l.b16 %v293
      %v431 = vunpack.c.l.b16 %v294
      %v432 = vunpack.c.l.b16 %v295
      %v433 = vunpack.c.l.b16 %v296
      %v434 = vunpack.c.l.b16 %v297
      %v435 = vunpack.c.l.b16 %v298
      %v436 = vunpack.c.l.b16 %v299
      %v437 = vunpack.c.l.b16 %v300
      %v438 = vunpack.c.l.b16 %v301
      %v439 = vunpack.c.l.b16 %v302
      %v440 = vunpack.c.l.b16 %v303
      %v441 = vunpack.c.l.b16 %v304
      %v442 = vunpack.c.l.b16 %v305
      %v443 = vunpack.c.l.b16 %v306
      %v444 = vunpack.c.l.b16 %v307
      %v445 = vpack.c.b16 %v428, %v427
      %v446 = vpack.c.b16 %v430, %v429
      %v447 = vpack.c.b16 %v432, %v431
      %v448 = vpack.c.b16 %v434, %v433
      %v449 = vpack.c.b16 %v436, %v435
      %v450 = vpack.c.b16 %v438, %v437
      %v451 = vpack.c.b16 %v440, %v439
      %v452 = vpack.c.b16 %v442, %v441
      %v453 = vpack.c.b16 %v444, %v443
      %vm463 = vcmask 130048
      %v465 = vsel %vm463, %v407, 0
      %467 = vmatprep.subr.bf16.mxu0 0
      %468 = vmatpush1.bf16.msra.mxu0 %v445
      %469 = vmatprep.subr.bf16.mxu0 0
      %470 = vmatpush1.bf16.msra.mxu0 %v446
      %471 = vmatprep.subr.bf16.mxu0 0
      %472 = vmatpush1.bf16.msra.mxu0 %v447
      %473 = vmatprep.subr.bf16.mxu0 0
      %474 = vmatpush1.bf16.msra.mxu0 %v448
      %475 = vmatprep.subr.bf16.mxu0 0
      %476 = vmatpush1.bf16.msra.mxu0 %v449
      %477 = vmatprep.subr.bf16.mxu0 0
      %478 = vmatpush1.bf16.msra.mxu0 %v450
      %479 = vmatprep.subr.bf16.mxu0 0
      %480 = vmatpush1.bf16.msra.mxu0 %v451
      %481 = vmatprep.subr.bf16.mxu0 0
      %482 = vmatpush1.bf16.msra.mxu0 %v452
      %483 = vmatprep.subr.bf16.mxu0 0
      %484 = vmatpush1.bf16.msra.mxu0 %v453
      %485 = vmatprep.subr.bf16.mxu0 0
      %486 = vmatpush1.bf16.msra.mxu0 0
      %487 = vmatprep.subr.bf16.mxu0 0
      %488 = vmatpush1.bf16.msra.mxu0 0
      %489 = vmatprep.subr.bf16.mxu0 0
      %490 = vmatpush1.bf16.msra.mxu0 0
      %491 = vmatprep.subr.bf16.mxu0 0
      %492 = vmatpush1.bf16.msra.mxu0 0
      %493 = vmatprep.subr.bf16.mxu0 0
      %494 = vmatpush1.bf16.msra.mxu0 0
      %495 = vmatprep.subr.bf16.mxu0 0
      %496 = vmatpush1.bf16.msra.mxu0 0
      %497 = vmatprep.subr.bf16.mxu0 0
      %498 = vmatpush1.bf16.msra.mxu0 0
      %499 = vmatprep.mubr.bf16.mxu0 %v465
      %500 = vmatmul.mubr.bf16.gmra.mrb[0].mxu0 %v406
      %v501 = vpop.f32.mrb[0].mxu0
      %v502 = vadd.f32 %v394, %v501
      %v503 = vpop.f32.mrb[0].mxu0
      %v504 = vpop.f32.mrb[0].mxu0
      %v505 = vadd.f32 %v397, %v504
      %v506 = vpop.f32.mrb[0].mxu0
      %507 = vdwg.mxu0
      %v508 = vld [vmem:[%s4] sm:$0xff]
      %v509 = vld [vmem:[%s4 + $0x8] sm:$0xff]
      %511 = vset.pattern.permute.xlu0 0
      %512 = vperm.xlu0 %511, %v508
      %v513 = vpop.permute.xlu0 %512
      %516 = vset.pattern.permute.xlu0 0
      %517 = vperm.xlu0 %516, %v509
      %v518 = vpop.permute.xlu0 %517
      %v520 = vadd.f32 %v502, %v513
      %v521 = vadd.f32 %v505, %v518
      %vm522 = vcmp.ge.f32.partialorder %v520, 0.0
      %vm523 = vcmp.ge.f32.partialorder %v521, 0.0
      %v524 = vmul.f32 %v520, 0.2
      %v525 = vmul.f32 %v521, 0.2
      %v526 = vsel %vm522, %v520, %v524
      %v527 = vsel %vm523, %v521, %v525
      %v528 = vpack.c.bf16 %v527, %v526
      %v530 = vunpack.c.l.b16 %v528
      %v531 = vunpack.c.h.b16 %v528
      %v532 = vpack.c.b16 %v530, %v530
      %v533 = vpack.c.b16 %v531, %v531
      %vm536 = vcmask 519168
      %537 = vst.msk [vmem:[%s286] sm:$0xf] %vm536, %v532
      %538 = vst.msk [vmem:[%s286 + $0x4] sm:$0xf] %vm536, %v533
      %p539 = scmp.lt.s32.totalorder %s20, 1
      %s540 = scalar_select %p539, %s20, 1
      %p541 = scmp.lt.s32.totalorder %s21, 0
      %s542 = scalar_select %p541, %s21, 0
      %s543 = smul.addr %s540, 2
      %s544 = sadd.s32 %s542, %s543
      %s545 = smul.addr %s544, 4
      %s546 = scalar_lea.vmem %s5, %s545
      // Predicated region
      $region41: #{u_network_forward.19} parent=39 // pred_check
        %p547 = pneg %p167
      $region42: #{u_network_forward.19} parent=39 // pred_check_branch
        %549 = sbr.rel (%p547) target = $region44
      $region43: #{u_network_forward.19} parent=39 // pred_region
        _
      $region44: #{u_network_forward.19} parent=39 // pred_fallthru
        _
    $region40: #{u_network_forward.19} parent=5 // pred_fallthru
      _
    %p550 = scmp.le.s32.totalorder 2, %s11
    // Predicated region
    $region45: #{u_network_forward.19} parent=5 // pred_check
      %p551 = pneg %p550
    $region46: #{u_network_forward.19} parent=5 // pred_check_branch
      %553 = sbr.rel (%p551) target = $region48
    $region47: #{u_network_forward.19} parent=5 // pred_region
      %s554 = ssub.s32 %s11, 2
      // Predicated region
      $region49: #{u_network_forward.19} parent=47 // pred_check
        %p555 = pneg %p173
      $region50: #{u_network_forward.19} parent=47 // pred_check_branch
        %557 = sbr.rel (%p555) target = $region52
      $region51: #{u_network_forward.19} parent=47 // pred_region
        %p558 = scmp.lt.s32.totalorder %s22, 1
        %s559 = scalar_select %p558, %s22, 1
        %p560 = scmp.lt.s32.totalorder %s23, 0
        %s561 = scalar_select %p560, %s23, 0
        %s562 = smul.addr %s559, 2
        %s563 = sadd.s32 %s561, %s562
        %s564 = smul.addr %s563, 4
        %s565 = scalar_lea.vmem %s5, %s564
      $region52: #{u_network_forward.19} parent=47 // pred_fallthru
        _
    $region48: #{u_network_forward.19} parent=5 // pred_fallthru
      _
  $region6: #{u_network_forward.19} parent=0 // loop_footer
    %s15 = sadd.s32 1, %s11
  $region7: #{u_network_forward.19} parent=0 // loop_footer_branch
    %10 = sbr.rel target = $region3
  $region8: #{u_network_forward.19} parent=0 // loop_exit
    _

// kernel: u_network_forward.20
$region0: #{u_network_forward.20}
  #allocation0 [shape = 'u32[]', space=smem, size = 0x4, offset = 0x4, fixed_abs, tag = 'smem constant byte address 0x4 - core index']
  #allocation1 [shape = 'u32[144,128]{1,0:T(1,128)}', space=vmem, size = 0x12000, scoped, tag = 'internal scratch']
  %s0 = inlined_call_operand.vmem [shape: bf16[2,144,64], index: 0, kind: input, shape index: {}]
  %s1 = inlined_call_operand.vmem [shape: bf16[8,144], index: 1, kind: input, shape index: {}]
  %s2 = inlined_call_operand.vmem [shape: f32[8,1], index: 2, kind: input, shape index: {}]
  %s3 = inlined_call_operand.vmem [shape: bf16[2,8,64], index: 3, kind: output, shape index: {}]
  %s4 = sld [smem:[#allocation0]]
  $region45: #{u_network_forward.20} parent=0
    _
  %s6 = ssub.s32 1, %s4
  %s7 = scalar_select 0, %s6, %s4
  loop: start=0, step=1, limit=4
  $region2: #{u_network_forward.20} parent=0 // loop_pre_header
    _
  $region3: #{u_network_forward.20} parent=0 // loop_header
    %s9 = sphi 0, %s13
    %p10 = scmp.ge.s32.totalorder %s9, 4
    %s16 = sphi 0, %s28
    %s17 = sphi 0, %s24
    %s18 = sphi 0, %s16
    %s19 = sphi 0, %s17
    %s20 = sphi 0, %s18
    %s21 = sphi 0, %s19
    %s33 = sphi 0, %s35
    %s36 = sphi 0, %s33
    %s37 = sphi 0, %s36
    %s53 = sphi 0, %s37
    %s57 = sphi 0, %s57
    %s59 = sphi 0, %s57
    %s60 = sphi 0, %s59
    %s74 = sphi 0, %s60
    %s78 = sphi 0, %s78
    %s80 = sphi 0, %s78
    %s81 = sphi 0, %s80
    %s95 = sphi 0, %s81
    %s103 = sphi 0, %s105
    %s106 = sphi 0, %s103
    %s107 = sphi 0, %s106
    %s123 = sphi 0, %s107
  $region4: #{u_network_forward.20} parent=0 // loop_header_branch
    %12 = sbr.rel (%p10) target = $region8
  $region5: #{u_network_forward.20} parent=0 // loop_body
    %s14 = ssub.s32 %s9, 1
    %s15 = ssub.s32 %s9, 2
    %s22 = sadd.s32 1, %s17
    %p23 = scmp.ge.s32.totalorder %s22, 1
    %s24 = scalar_select %p23, 0, %s22
    %s25 = sadd.s32 1, %s16
    %s26 = scalar_select %p23, %s25, %s16
    %p27 = scmp.ge.s32.totalorder %s26, 2
    %s28 = scalar_select %p27, 0, %s26
    %s29 = ssub.s32 %s16, %s28
    %s30 = ssub.s32 %s17, %s24
    %s31 = sor.u32 %s29, %s30
    %p32 = scmp.eq.s32.totalorder %s31, 0
    %s34 = sadd.s32 %s33, 1
    %s35 = scalar_select %p32, %s33, %s34
    %p38 = pneg %p32
    %p39 = scmp.eq.s32.totalorder %s9, 1
    %p40 = por %p38, %p39
    %p41 = scmp.ne.s32.totalorder %s33, %s36
    %p42 = scmp.eq.s32.totalorder %s9, 0
    %p43 = por %p41, %p42
    %p44 = scmp.ne.s32.totalorder %s33, %s36
    %p45 = scmp.eq.s32.totalorder %s14, 1
    %p46 = por %p44, %p45
    %p47 = scmp.ne.s32.totalorder %s36, %s37
    %p48 = scmp.eq.s32.totalorder %s14, 0
    %p49 = por %p47, %p48
    %p50 = scmp.ne.s32.totalorder %s36, %s37
    %p51 = scmp.eq.s32.totalorder %s15, 1
    %p52 = por %p50, %p51
    %p54 = scmp.ne.s32.totalorder %s37, %s53
    %p55 = scmp.eq.s32.totalorder %s15, 0
    %p56 = por %p54, %p55
    %s58 = sadd.s32 %s57, 1
    %p61 = scmp.eq.s32.totalorder %s9, 1
    %p62 = scmp.ne.s32.totalorder %s57, %s59
    %p63 = scmp.eq.s32.totalorder %s9, 0
    %p64 = por %p62, %p63
    %p65 = scmp.ne.s32.totalorder %s57, %s59
    %p66 = scmp.eq.s32.totalorder %s14, 1
    %p67 = por %p65, %p66
    %p68 = scmp.ne.s32.totalorder %s59, %s60
    %p69 = scmp.eq.s32.totalorder %s14, 0
    %p70 = por %p68, %p69
    %p71 = scmp.ne.s32.totalorder %s59, %s60
    %p72 = scmp.eq.s32.totalorder %s15, 1
    %p73 = por %p71, %p72
    %p75 = scmp.ne.s32.totalorder %s60, %s74
    %p76 = scmp.eq.s32.totalorder %s15, 0
    %p77 = por %p75, %p76
    %s79 = sadd.s32 %s78, 1
    %p82 = scmp.eq.s32.totalorder %s9, 1
    %p83 = scmp.ne.s32.totalorder %s78, %s80
    %p84 = scmp.eq.s32.totalorder %s9, 0
    %p85 = por %p83, %p84
    %p86 = scmp.ne.s32.totalorder %s78, %s80
    %p87 = scmp.eq.s32.totalorder %s14, 1
    %p88 = por %p86, %p87
    %p89 = scmp.ne.s32.totalorder %s80, %s81
    %p90 = scmp.eq.s32.totalorder %s14, 0
    %p91 = por %p89, %p90
    %p92 = scmp.ne.s32.totalorder %s80, %s81
    %p93 = scmp.eq.s32.totalorder %s15, 1
    %p94 = por %p92, %p93
    %p96 = scmp.ne.s32.totalorder %s81, %s95
    %p97 = scmp.eq.s32.totalorder %s15, 0
    %p98 = por %p96, %p97
    %s99 = ssub.s32 %s16, %s28
    %s100 = ssub.s32 %s17, %s24
    %s101 = sor.u32 %s99, %s100
    %p102 = scmp.eq.s32.totalorder %s101, 0
    %s104 = sadd.s32 %s103, 1
    %s105 = scalar_select %p102, %s103, %s104
    %p108 = pneg %p102
    %p109 = scmp.eq.s32.totalorder %s9, 1
    %p110 = por %p108, %p109
    %p111 = scmp.ne.s32.totalorder %s103, %s106
    %p112 = scmp.eq.s32.totalorder %s9, 0
    %p113 = por %p111, %p112
    %p114 = scmp.ne.s32.totalorder %s103, %s106
    %p115 = scmp.eq.s32.totalorder %s14, 1
    %p116 = por %p114, %p115
    %p117 = scmp.ne.s32.totalorder %s106, %s107
    %p118 = scmp.eq.s32.totalorder %s14, 0
    %p119 = por %p117, %p118
    %p120 = scmp.ne.s32.totalorder %s106, %s107
    %p121 = scmp.eq.s32.totalorder %s15, 1
    %p122 = por %p120, %p121
    %p124 = scmp.ne.s32.totalorder %s107, %s123
    %p125 = scmp.eq.s32.totalorder %s15, 0
    %p126 = por %p124, %p125
    %p127 = scmp.le.s32.totalorder 1, %s9
    %p128 = scmp.lt.s32.totalorder %s9, 3
    %p129 = pnand %p127, %p128
    %p130 = pneg %p129
    // Predicated region
    $region9: #{u_network_forward.20} parent=5 // pred_check
      _
    $region10: #{u_network_forward.20} parent=5 // pred_check_branch
      %132 = sbr.rel (%p129) target = $region12
    $region11: #{u_network_forward.20} parent=5 // pred_region
      %s133 = ssub.s32 %s9, 1
      // Predicated region
      $region13: #{u_network_forward.20} parent=11 // pred_check
        %p134 = pneg %p70
      $region14: #{u_network_forward.20} parent=11 // pred_check_branch
        %136 = sbr.rel (%p134) target = $region16
      $region15: #{u_network_forward.20} parent=11 // pred_region
        _
      $region16: #{u_network_forward.20} parent=11 // pred_fallthru
        _
      // Predicated region
      $region17: #{u_network_forward.20} parent=11 // pred_check
        %p137 = pneg %p91
      $region18: #{u_network_forward.20} parent=11 // pred_check_branch
        %139 = sbr.rel (%p137) target = $region20
      $region19: #{u_network_forward.20} parent=11 // pred_region
        _
      $region20: #{u_network_forward.20} parent=11 // pred_fallthru
        _
    $region12: #{u_network_forward.20} parent=5 // pred_fallthru
      _
    %p140 = scmp.lt.s32.totalorder %s9, 2
    // Predicated region
    $region21: #{u_network_forward.20} parent=5 // pred_check
      %p141 = pneg %p140
    $region22: #{u_network_forward.20} parent=5 // pred_check_branch
      %143 = sbr.rel (%p141) target = $region24
    $region23: #{u_network_forward.20} parent=5 // pred_region
      // Predicated region
      $region25: #{u_network_forward.20} parent=23 // pred_check
        %p144 = pneg %p43
      $region26: #{u_network_forward.20} parent=23 // pred_check_branch
        %146 = sbr.rel (%p144) target = $region28
      $region27: #{u_network_forward.20} parent=23 // pred_region
        %p147 = scmp.lt.s32.totalorder %s16, 1
        %s148 = scalar_select %p147, %s16, 1
        %p149 = scmp.lt.s32.totalorder %s17, 0
        %s150 = scalar_select %p149, %s17, 0
        %s151 = smul.addr %s148, 18
        %s152 = sadd.s32 %s150, %s151
        %s153 = smul.addr %s152, 4
        %s154 = scalar_lea.vmem %s0, %s153
      $region28: #{u_network_forward.20} parent=23 // pred_fallthru
        _
    $region24: #{u_network_forward.20} parent=5 // pred_fallthru
      _
    %p155 = scmp.le.s32.totalorder 1, %s9
    %p156 = scmp.lt.s32.totalorder %s9, 3
    %p157 = pnand %p155, %p156
    %p158 = pneg %p157
    // Predicated region
    $region29: #{u_network_forward.20} parent=5 // pred_check
      _
    $region30: #{u_network_forward.20} parent=5 // pred_check_branch
      %160 = sbr.rel (%p157) target = $region32
    $region31: #{u_network_forward.20} parent=5 // pred_region
      %s161 = ssub.s32 %s9, 1
      %p162 = scmp.lt.s32.totalorder %s18, 1
      %s163 = scalar_select %p162, %s18, 1
      %p164 = scmp.lt.s32.totalorder %s19, 0
      %s165 = scalar_select %p164, %s19, 0
      %s166 = smul.addr %s163, 18
      %s167 = sadd.s32 %s165, %s166
      %s168 = smul.addr %s167, 4
      %s169 = scalar_lea.vmem %s0, %s168
      %p170 = pneg %p49
      %p171 = pneg %p46
      %p172 = pneg %p70
      %p173 = pneg %p67
      %p174 = pneg %p91
      %p175 = pneg %p88
      %p176 = pneg %p119
      %p177 = pneg %p116
      %p178 = scmp.lt.s32.totalorder %s18, 1
      %s179 = scalar_select %p178, %s18, 1
      %p180 = scmp.lt.s32.totalorder %s19, 0
      %s181 = scalar_select %p180, %s19, 0
      %s182 = sadd.s32 %s181, %s179
      %s183 = smul.addr %s182, 4
      %s184 = scalar_lea.vmem %s3, %s183
      %p185 = scmp.lt.s32.totalorder %s18, 1
      %s186 = scalar_select %p185, %s18, 1
      %p187 = scmp.lt.s32.totalorder %s19, 0
      %s188 = scalar_select %p187, %s19, 0
      %s189 = smul.addr %s186, 18
      %s190 = sadd.s32 %s188, %s189
      %s191 = smul.addr %s190, 4
      %s192 = scalar_lea.vmem %s0, %s191
      %p193 = scmp.lt.s32.totalorder %s18, 1
      %s194 = scalar_select %p193, %s18, 1
      %p195 = scmp.lt.s32.totalorder %s19, 0
      %s196 = scalar_select %p195, %s19, 0
      %s197 = sadd.s32 %s196, %s194
      %s198 = smul.addr %s197, 4
      %s199 = scalar_lea.vmem %s3, %s198
      %v201 = vld [vmem:[%s1] sm:$0xff]
      %v202 = vld [vmem:[%s192] sm:$0xf]
      %v203 = vld [vmem:[%s192 + $0x4] sm:$0xf]
      %v204 = vld [vmem:[%s192 + $0x8] sm:$0xf]
      %v205 = vld [vmem:[%s192 + $0xc] sm:$0xf]
      %v206 = vld [vmem:[%s192 + $0x10] sm:$0xf]
      %v207 = vld [vmem:[%s192 + $0x14] sm:$0xf]
      %v208 = vld [vmem:[%s192 + $0x18] sm:$0xf]
      %v209 = vld [vmem:[%s192 + $0x1c] sm:$0xf]
      %v210 = vld [vmem:[%s192 + $0x20] sm:$0xf]
      %v211 = vld [vmem:[%s192 + $0x24] sm:$0xf]
      %v212 = vld [vmem:[%s192 + $0x28] sm:$0xf]
      %v213 = vld [vmem:[%s192 + $0x2c] sm:$0xf]
      %v214 = vld [vmem:[%s192 + $0x30] sm:$0xf]
      %v215 = vld [vmem:[%s192 + $0x34] sm:$0xf]
      %v216 = vld [vmem:[%s192 + $0x38] sm:$0xf]
      %v217 = vld [vmem:[%s192 + $0x3c] sm:$0xf]
      %v218 = vld [vmem:[%s192 + $0x40] sm:$0xf]
      %v219 = vld [vmem:[%s192 + $0x44] sm:$0xf]
      %v220 = vld [vmem:[%s2] sm:$0xff]
      %222 = vset.pattern.permute.xlu0 0
      %223 = vperm.xlu0 %222, %v220
      %v224 = vpop.permute.xlu0 %223
      %v227 = vunpack.c.l.b16 %v201
      %v228 = vunpack.c.h.b16 %v201
      %v229 = vpack.c.b16 %v227, %v227
      %v230 = vpack.c.b16 %v228, %v228
      %v250 = vunpack.c.l.b16 %v202
      %v251 = vunpack.c.l.b16 %v203
      %v252 = vunpack.c.l.b16 %v204
      %v253 = vunpack.c.l.b16 %v205
      %v254 = vunpack.c.l.b16 %v206
      %v255 = vunpack.c.l.b16 %v207
      %v256 = vunpack.c.l.b16 %v208
      %v257 = vunpack.c.l.b16 %v209
      %v258 = vunpack.c.l.b16 %v210
      %v259 = vunpack.c.l.b16 %v211
      %v260 = vunpack.c.l.b16 %v212
      %v261 = vunpack.c.l.b16 %v213
      %v262 = vunpack.c.l.b16 %v214
      %v263 = vunpack.c.l.b16 %v215
      %v264 = vunpack.c.l.b16 %v216
      %v265 = vunpack.c.l.b16 %v217
      %v266 = vunpack.c.l.b16 %v218
      %v267 = vunpack.c.l.b16 %v219
      %v268 = vpack.c.b16 %v251, %v250
      %v269 = vpack.c.b16 %v253, %v252
      %v270 = vpack.c.b16 %v255, %v254
      %v271 = vpack.c.b16 %v257, %v256
      %v272 = vpack.c.b16 %v259, %v258
      %v273 = vpack.c.b16 %v261, %v260
      %v274 = vpack.c.b16 %v263, %v262
      %v275 = vpack.c.b16 %v265, %v264
      %v276 = vpack.c.b16 %v267, %v266
      %vm286 = vcmask 130048
      %v288 = vsel %vm286, %v230, 0
      %290 = vmatprep.subr.bf16.mxu0 0
      %291 = vmatpush1.bf16.msra.mxu0 %v268
      %292 = vmatprep.subr.bf16.mxu0 0
      %293 = vmatpush1.bf16.msra.mxu0 %v269
      %294 = vmatprep.subr.bf16.mxu0 0
      %295 = vmatpush1.bf16.msra.mxu0 %v270
      %296 = vmatprep.subr.bf16.mxu0 0
      %297 = vmatpush1.bf16.msra.mxu0 %v271
      %298 = vmatprep.subr.bf16.mxu0 0
      %299 = vmatpush1.bf16.msra.mxu0 %v272
      %300 = vmatprep.subr.bf16.mxu0 0
      %301 = vmatpush1.bf16.msra.mxu0 %v273
      %302 = vmatprep.subr.bf16.mxu0 0
      %303 = vmatpush1.bf16.msra.mxu0 %v274
      %304 = vmatprep.subr.bf16.mxu0 0
      %305 = vmatpush1.bf16.msra.mxu0 %v275
      %306 = vmatprep.subr.bf16.mxu0 0
      %307 = vmatpush1.bf16.msra.mxu0 %v276
      %308 = vmatprep.subr.bf16.mxu0 0
      %309 = vmatpush1.bf16.msra.mxu0 0
      %310 = vmatprep.subr.bf16.mxu0 0
      %311 = vmatpush1.bf16.msra.mxu0 0
      %312 = vmatprep.subr.bf16.mxu0 0
      %313 = vmatpush1.bf16.msra.mxu0 0
      %314 = vmatprep.subr.bf16.mxu0 0
      %315 = vmatpush1.bf16.msra.mxu0 0
      %316 = vmatprep.subr.bf16.mxu0 0
      %317 = vmatpush1.bf16.msra.mxu0 0
      %318 = vmatprep.subr.bf16.mxu0 0
      %319 = vmatpush1.bf16.msra.mxu0 0
      %320 = vmatprep.subr.bf16.mxu0 0
      %321 = vmatpush1.bf16.msra.mxu0 0
      %322 = vmatprep.mubr.bf16.mxu0 %v288
      %323 = vmatmul.mubr.bf16.gmra.mrb[0].mxu0 %v229
      %v324 = vpop.f32.mrb[0].mxu0
      %v325 = vadd.f32 %v224, %v324
      %v326 = vpop.f32.mrb[0].mxu0
      %v327 = vpop.f32.mrb[0].mxu0
      %v328 = vpop.f32.mrb[0].mxu0
      %329 = vdwg.mxu0
      %vm330 = vcmp.ge.f32.partialorder %v325, 0.0
      %v331 = vmul.f32 %v325, 0.2
      %v332 = vsel %vm330, %v325, %v331
      %v333 = vpack.c.bf16 %v332, %v332
      %vm334 = vcmask 519168
      %335 = vst.msk [vmem:[%s199] sm:$0xf] %vm334, %v333
      %p336 = scmp.lt.s32.totalorder %s18, 1
      %s337 = scalar_select %p336, %s18, 1
      %p338 = scmp.lt.s32.totalorder %s19, 0
      %s339 = scalar_select %p338, %s19, 0
      %s340 = sadd.s32 %s339, %s337
      %s341 = smul.addr %s340, 4
      %s342 = scalar_lea.vmem %s3, %s341
      // Predicated region
      $region33: #{u_network_forward.20} parent=31 // pred_check
        %p343 = pneg %p116
      $region34: #{u_network_forward.20} parent=31 // pred_check_branch
        %345 = sbr.rel (%p343) target = $region36
      $region35: #{u_network_forward.20} parent=31 // pred_region
        _
      $region36: #{u_network_forward.20} parent=31 // pred_fallthru
        _
    $region32: #{u_network_forward.20} parent=5 // pred_fallthru
      _
    %p346 = scmp.le.s32.totalorder 2, %s9
    // Predicated region
    $region37: #{u_network_forward.20} parent=5 // pred_check
      %p347 = pneg %p346
    $region38: #{u_network_forward.20} parent=5 // pred_check_branch
      %349 = sbr.rel (%p347) target = $region40
    $region39: #{u_network_forward.20} parent=5 // pred_region
      %s350 = ssub.s32 %s9, 2
      // Predicated region
      $region41: #{u_network_forward.20} parent=39 // pred_check
        %p351 = pneg %p122
      $region42: #{u_network_forward.20} parent=39 // pred_check_branch
        %353 = sbr.rel (%p351) target = $region44
      $region43: #{u_network_forward.20} parent=39 // pred_region
        %p354 = scmp.lt.s32.totalorder %s20, 1
        %s355 = scalar_select %p354, %s20, 1
        %p356 = scmp.lt.s32.totalorder %s21, 0
        %s357 = scalar_select %p356, %s21, 0
        %s358 = sadd.s32 %s357, %s355
        %s359 = smul.addr %s358, 4
        %s360 = scalar_lea.vmem %s3, %s359
      $region44: #{u_network_forward.20} parent=39 // pred_fallthru
        _
    $region40: #{u_network_forward.20} parent=5 // pred_fallthru
      _
  $region6: #{u_network_forward.20} parent=0 // loop_footer
    %s13 = sadd.s32 1, %s9
  $region7: #{u_network_forward.20} parent=0 // loop_footer_branch
    %8 = sbr.rel target = $region3
  $region8: #{u_network_forward.20} parent=0 // loop_exit
    _

// kernel: u_network_forward.21
$region0: #{u_network_forward.21}
  #allocation0 [shape = 'u32[]', space=smem, size = 0x4, offset = 0x4, fixed_abs, tag = 'smem constant byte address 0x4 - core index']
  #allocation1 [shape = 'u32[144,128]{1,0:T(1,128)}', space=vmem, size = 0x12000, scoped, tag = 'internal scratch']
  %s0 = inlined_call_operand.vmem [shape: bf16[2,72,256], index: 0, kind: input, shape index: {}]
  %s1 = inlined_call_operand.vmem [shape: bf16[2,18,256], index: 1, kind: input, shape index: {}]
  %s2 = inlined_call_operand.vmem [shape: bf16[8,72], index: 2, kind: input, shape index: {}]
  %s3 = inlined_call_operand.vmem [shape: bf16[8,18], index: 3, kind: input, shape index: {}]
  %s4 = inlined_call_operand.vmem [shape: f32[8,1], index: 4, kind: input, shape index: {}]
  %s5 = inlined_call_operand.vmem [shape: bf16[2,8,256], index: 5, kind: output, shape index: {}]
  %s6 = sld [smem:[#allocation0]]
  $region53: #{u_network_forward.21} parent=0
    _
  %s8 = ssub.s32 1, %s6
  %s9 = scalar_select 0, %s8, %s6
  loop: start=0, step=1, limit=4
  $region2: #{u_network_forward.21} parent=0 // loop_pre_header
    _
  $region3: #{u_network_forward.21} parent=0 // loop_header
    %s11 = sphi 0, %s15
    %p12 = scmp.ge.s32.totalorder %s11, 4
    %s18 = sphi 0, %s30
    %s19 = sphi 0, %s26
    %s20 = sphi 0, %s18
    %s21 = sphi 0, %s19
    %s22 = sphi 0, %s20
    %s23 = sphi 0, %s21
    %s35 = sphi 0, %s37
    %s38 = sphi 0, %s35
    %s39 = sphi 0, %s38
    %s55 = sphi 0, %s39
    %s63 = sphi 0, %s65
    %s66 = sphi 0, %s63
    %s67 = sphi 0, %s66
    %s83 = sphi 0, %s67
    %s87 = sphi 0, %s87
    %s89 = sphi 0, %s87
    %s90 = sphi 0, %s89
    %s104 = sphi 0, %s90
    %s108 = sphi 0, %s108
    %s110 = sphi 0, %s108
    %s111 = sphi 0, %s110
    %s125 = sphi 0, %s111
    %s129 = sphi 0, %s129
    %s131 = sphi 0, %s129
    %s132 = sphi 0, %s131
    %s146 = sphi 0, %s132
    %s154 = sphi 0, %s156
    %s157 = sphi 0, %s154
    %s158 = sphi 0, %s157
    %s174 = sphi 0, %s158
  $region4: #{u_network_forward.21} parent=0 // loop_header_branch
    %14 = sbr.rel (%p12) target = $region8
  $region5: #{u_network_forward.21} parent=0 // loop_body
    %s16 = ssub.s32 %s11, 1
    %s17 = ssub.s32 %s11, 2
    %s24 = sadd.s32 1, %s19
    %p25 = scmp.ge.s32.totalorder %s24, 1
    %s26 = scalar_select %p25, 0, %s24
    %s27 = sadd.s32 1, %s18
    %s28 = scalar_select %p25, %s27, %s18
    %p29 = scmp.ge.s32.totalorder %s28, 2
    %s30 = scalar_select %p29, 0, %s28
    %s31 = ssub.s32 %s18, %s30
    %s32 = ssub.s32 %s19, %s26
    %s33 = sor.u32 %s31, %s32
    %p34 = scmp.eq.s32.totalorder %s33, 0
    %s36 = sadd.s32 %s35, 1
    %s37 = scalar_select %p34, %s35, %s36
    %p40 = pneg %p34
    %p41 = scmp.eq.s32.totalorder %s11, 1
    %p42 = por %p40, %p41
    %p43 = scmp.ne.s32.totalorder %s35, %s38
    %p44 = scmp.eq.s32.totalorder %s11, 0
    %p45 = por %p43, %p44
    %p46 = scmp.ne.s32.totalorder %s35, %s38
    %p47 = scmp.eq.s32.totalorder %s16, 1
    %p48 = por %p46, %p47
    %p49 = scmp.ne.s32.totalorder %s38, %s39
    %p50 = scmp.eq.s32.totalorder %s16, 0
    %p51 = por %p49, %p50
    %p52 = scmp.ne.s32.totalorder %s38, %s39
    %p53 = scmp.eq.s32.totalorder %s17, 1
    %p54 = por %p52, %p53
    %p56 = scmp.ne.s32.totalorder %s39, %s55
    %p57 = scmp.eq.s32.totalorder %s17, 0
    %p58 = por %p56, %p57
    %s59 = ssub.s32 %s18, %s30
    %s60 = ssub.s32 %s19, %s26
    %s61 = sor.u32 %s59, %s60
    %p62 = scmp.eq.s32.totalorder %s61, 0
    %s64 = sadd.s32 %s63, 1
    %s65 = scalar_select %p62, %s63, %s64
    %p68 = pneg %p62
    %p69 = scmp.eq.s32.totalorder %s11, 1
    %p70 = por %p68, %p69
    %p71 = scmp.ne.s32.totalorder %s63, %s66
    %p72 = scmp.eq.s32.totalorder %s11, 0
    %p73 = por %p71, %p72
    %p74 = scmp.ne.s32.totalorder %s63, %s66
    %p75 = scmp.eq.s32.totalorder %s16, 1
    %p76 = por %p74, %p75
    %p77 = scmp.ne.s32.totalorder %s66, %s67
    %p78 = scmp.eq.s32.totalorder %s16, 0
    %p79 = por %p77, %p78
    %p80 = scmp.ne.s32.totalorder %s66, %s67
    %p81 = scmp.eq.s32.totalorder %s17, 1
    %p82 = por %p80, %p81
    %p84 = scmp.ne.s32.totalorder %s67, %s83
    %p85 = scmp.eq.s32.totalorder %s17, 0
    %p86 = por %p84, %p85
    %s88 = sadd.s32 %s87, 1
    %p91 = scmp.eq.s32.totalorder %s11, 1
    %p92 = scmp.ne.s32.totalorder %s87, %s89
    %p93 = scmp.eq.s32.totalorder %s11, 0
    %p94 = por %p92, %p93
    %p95 = scmp.ne.s32.totalorder %s87, %s89
    %p96 = scmp.eq.s32.totalorder %s16, 1
    %p97 = por %p95, %p96
    %p98 = scmp.ne.s32.totalorder %s89, %s90
    %p99 = scmp.eq.s32.totalorder %s16, 0
    %p100 = por %p98, %p99
    %p101 = scmp.ne.s32.totalorder %s89, %s90
    %p102 = scmp.eq.s32.totalorder %s17, 1
    %p103 = por %p101, %p102
    %p105 = scmp.ne.s32.totalorder %s90, %s104
    %p106 = scmp.eq.s32.totalorder %s17, 0
    %p107 = por %p105, %p106
    %s109 = sadd.s32 %s108, 1
    %p112 = scmp.eq.s32.totalorder %s11, 1
    %p113 = scmp.ne.s32.totalorder %s108, %s110
    %p114 = scmp.eq.s32.totalorder %s11, 0
    %p115 = por %p113, %p114
    %p116 = scmp.ne.s32.totalorder %s108, %s110
    %p117 = scmp.eq.s32.totalorder %s16, 1
    %p118 = por %p116, %p117
    %p119 = scmp.ne.s32.totalorder %s110, %s111
    %p120 = scmp.eq.s32.totalorder %s16, 0
    %p121 = por %p119, %p120
    %p122 = scmp.ne.s32.totalorder %s110, %s111
    %p123 = scmp.eq.s32.totalorder %s17, 1
    %p124 = por %p122, %p123
    %p126 = scmp.ne.s32.totalorder %s111, %s125
    %p127 = scmp.eq.s32.totalorder %s17, 0
    %p128 = por %p126, %p127
    %s130 = sadd.s32 %s129, 1
    %p133 = scmp.eq.s32.totalorder %s11, 1
    %p134 = scmp.ne.s32.totalorder %s129, %s131
    %p135 = scmp.eq.s32.totalorder %s11, 0
    %p136 = por %p134, %p135
    %p137 = scmp.ne.s32.totalorder %s129, %s131
    %p138 = scmp.eq.s32.totalorder %s16, 1
    %p139 = por %p137, %p138
    %p140 = scmp.ne.s32.totalorder %s131, %s132
    %p141 = scmp.eq.s32.totalorder %s16, 0
    %p142 = por %p140, %p141
    %p143 = scmp.ne.s32.totalorder %s131, %s132
    %p144 = scmp.eq.s32.totalorder %s17, 1
    %p145 = por %p143, %p144
    %p147 = scmp.ne.s32.totalorder %s132, %s146
    %p148 = scmp.eq.s32.totalorder %s17, 0
    %p149 = por %p147, %p148
    %s150 = ssub.s32 %s18, %s30
    %s151 = ssub.s32 %s19, %s26
    %s152 = sor.u32 %s150, %s151
    %p153 = scmp.eq.s32.totalorder %s152, 0
    %s155 = sadd.s32 %s154, 1
    %s156 = scalar_select %p153, %s154, %s155
    %p159 = pneg %p153
    %p160 = scmp.eq.s32.totalorder %s11, 1
    %p161 = por %p159, %p160
    %p162 = scmp.ne.s32.totalorder %s154, %s157
    %p163 = scmp.eq.s32.totalorder %s11, 0
    %p164 = por %p162, %p163
    %p165 = scmp.ne.s32.totalorder %s154, %s157
    %p166 = scmp.eq.s32.totalorder %s16, 1
    %p167 = por %p165, %p166
    %p168 = scmp.ne.s32.totalorder %s157, %s158
    %p169 = scmp.eq.s32.totalorder %s16, 0
    %p170 = por %p168, %p169
    %p171 = scmp.ne.s32.totalorder %s157, %s158
    %p172 = scmp.eq.s32.totalorder %s17, 1
    %p173 = por %p171, %p172
    %p175 = scmp.ne.s32.totalorder %s158, %s174
    %p176 = scmp.eq.s32.totalorder %s17, 0
    %p177 = por %p175, %p176
    %p178 = scmp.le.s32.totalorder 1, %s11
    %p179 = scmp.lt.s32.totalorder %s11, 3
    %p180 = pnand %p178, %p179
    %p181 = pneg %p180
    // Predicated region
    $region9: #{u_network_forward.21} parent=5 // pred_check
      _
    $region10: #{u_network_forward.21} parent=5 // pred_check_branch
      %183 = sbr.rel (%p180) target = $region12
    $region11: #{u_network_forward.21} parent=5 // pred_region
      %s184 = ssub.s32 %s11, 1
      // Predicated region
      $region13: #{u_network_forward.21} parent=11 // pred_check
        %p185 = pneg %p100
      $region14: #{u_network_forward.21} parent=11 // pred_check_branch
        %187 = sbr.rel (%p185) target = $region16
      $region15: #{u_network_forward.21} parent=11 // pred_region
        _
      $region16: #{u_network_forward.21} parent=11 // pred_fallthru
        _
      // Predicated region
      $region17: #{u_network_forward.21} parent=11 // pred_check
        %p188 = pneg %p121
      $region18: #{u_network_forward.21} parent=11 // pred_check_branch
        %190 = sbr.rel (%p188) target = $region20
      $region19: #{u_network_forward.21} parent=11 // pred_region
        _
      $region20: #{u_network_forward.21} parent=11 // pred_fallthru
        _
      // Predicated region
      $region21: #{u_network_forward.21} parent=11 // pred_check
        %p191 = pneg %p142
      $region22: #{u_network_forward.21} parent=11 // pred_check_branch
        %193 = sbr.rel (%p191) target = $region24
      $region23: #{u_network_forward.21} parent=11 // pred_region
        _
      $region24: #{u_network_forward.21} parent=11 // pred_fallthru
        _
    $region12: #{u_network_forward.21} parent=5 // pred_fallthru
      _
    %p194 = scmp.lt.s32.totalorder %s11, 2
    // Predicated region
    $region25: #{u_network_forward.21} parent=5 // pred_check
      %p195 = pneg %p194
    $region26: #{u_network_forward.21} parent=5 // pred_check_branch
      %197 = sbr.rel (%p195) target = $region28
    $region27: #{u_network_forward.21} parent=5 // pred_region
      // Predicated region
      $region29: #{u_network_forward.21} parent=27 // pred_check
        %p198 = pneg %p45
      $region30: #{u_network_forward.21} parent=27 // pred_check_branch
        %200 = sbr.rel (%p198) target = $region32
      $region31: #{u_network_forward.21} parent=27 // pred_region
        %s201 = smul.u32 2, %s19
        %p202 = scmp.lt.s32.totalorder %s18, 1
        %s203 = scalar_select %p202, %s18, 1
        %p204 = scmp.lt.s32.totalorder %s201, 1
        %s205 = scalar_select %p204, %s201, 1
        %s206 = smul.addr %s203, 18
        %s207 = sadd.s32 %s205, %s206
        %s208 = smul.addr %s207, 4
        %s209 = scalar_lea.vmem %s0, %s208
        %s210 = smul.u32 2, %s19
      $region32: #{u_network_forward.21} parent=27 // pred_fallthru
        _
      // Predicated region
      $region33: #{u_network_forward.21} parent=27 // pred_check
        %p211 = pneg %p73
      $region34: #{u_network_forward.21} parent=27 // pred_check_branch
        %213 = sbr.rel (%p211) target = $region36
      $region35: #{u_network_forward.21} parent=27 // pred_region
        %s214 = smul.u32 2, %s19
        %p215 = scmp.lt.s32.totalorder %s18, 1
        %s216 = scalar_select %p215, %s18, 1
        %p217 = scmp.lt.s32.totalorder %s214, 1
        %s218 = scalar_select %p217, %s214, 1
        %s219 = smul.addr %s216, 6
        %s220 = sadd.s32 %s218, %s219
        %s221 = smul.addr %s220, 4
        %s222 = scalar_lea.vmem %s1, %s221
        %s223 = smul.u32 2, %s19
      $region36: #{u_network_forward.21} parent=27 // pred_fallthru
        _
    $region28: #{u_network_forward.21} parent=5 // pred_fallthru
      _
    %p224 = scmp.le.s32.totalorder 1, %s11
    %p225 = scmp.lt.s32.totalorder %s11, 3
    %p226 = pnand %p224, %p225
    %p227 = pneg %p226
    // Predicated region
    $region37: #{u_network_forward.21} parent=5 // pred_check
      _
    $region38: #{u_network_forward.21} parent=5 // pred_check_branch
      %229 = sbr.rel (%p226) target = $region40
    $region39: #{u_network_forward.21} parent=5 // pred_region
      %s230 = ssub.s32 %s11, 1
      %s231 = smul.u32 2, %s21
      %p232 = scmp.lt.s32.totalorder %s20, 1
      %s233 = scalar_select %p232, %s20, 1
      %p234 = scmp.lt.s32.totalorder %s231, 1
      %s235 = scalar_select %p234, %s231, 1
      %s236 = smul.addr %s233, 18
      %s237 = sadd.s32 %s235, %s236
      %s238 = smul.addr %s237, 4
      %s239 = scalar_lea.vmem %s0, %s238
      %p240 = pneg %p51
      %p241 = pneg %p48
      %s242 = smul.u32 2, %s21
      %p243 = scmp.lt.s32.totalorder %s20, 1
      %s244 = scalar_select %p243, %s20, 1
      %p245 = scmp.lt.s32.totalorder %s242, 1
      %s246 = scalar_select %p245, %s242, 1
      %s247 = smul.addr %s244, 6
      %s248 = sadd.s32 %s246, %s247
      %s249 = smul.addr %s248, 4
      %s250 = scalar_lea.vmem %s1, %s249
      %p251 = pneg %p79
      %p252 = pneg %p76
      %p253 = pneg %p100
      %p254 = pneg %p97
      %p255 = pneg %p121
      %p256 = pneg %p118
      %p257 = pneg %p142
      %p258 = pneg %p139
      %p259 = pneg %p170
      %p260 = pneg %p167
      %s261 = smul.u32 2, %s21
      %p262 = scmp.lt.s32.totalorder %s20, 1
      %s263 = scalar_select %p262, %s20, 1
      %p264 = scmp.lt.s32.totalorder %s261, 1
      %s265 = scalar_select %p264, %s261, 1
      %s266 = smul.addr %s263, 2
      %s267 = sadd.s32 %s265, %s266
      %s268 = smul.addr %s267, 4
      %s269 = scalar_lea.vmem %s5, %s268
      %s270 = smul.u32 2, %s21
      %p271 = scmp.lt.s32.totalorder %s20, 1
      %s272 = scalar_select %p271, %s20, 1
      %p273 = scmp.lt.s32.totalorder %s270, 1
      %s274 = scalar_select %p273, %s270, 1
      %s275 = smul.addr %s272, 18
      %s276 = sadd.s32 %s274, %s275
      %s277 = smul.addr %s276, 4
      %s278 = scalar_lea.vmem %s0, %s277
      %s279 = smul.u32 2, %s21
      %s280 = smul.u32 2, %s21
      %p281 = scmp.lt.s32.totalorder %s20, 1
      %s282 = scalar_select %p281, %s20, 1
      %p283 = scmp.lt.s32.totalorder %s280, 1
      %s284 = scalar_select %p283, %s280, 1
      %s285 = smul.addr %s282, 6
      %s286 = sadd.s32 %s284, %s285
      %s287 = smul.addr %s286, 4
      %s288 = scalar_lea.vmem %s1, %s287
      %s289 = smul.u32 2, %s21
      %s290 = smul.u32 2, %s21
      %p291 = scmp.lt.s32.totalorder %s20, 1
      %s292 = scalar_select %p291, %s20, 1
      %p293 = scmp.lt.s32.totalorder %s290, 1
      %s294 = scalar_select %p293, %s290, 1
      %s295 = smul.addr %s292, 2
      %s296 = sadd.s32 %s294, %s295
      %s297 = smul.addr %s296, 4
      %s298 = scalar_lea.vmem %s5, %s297
      %s299 = smul.u32 2, %s21
      %v301 = vld [vmem:[%s2] sm:$0xf]
      %v302 = vld [vmem:[%s278] sm:$0xff]
      %v303 = vld [vmem:[%s278 + $0x8] sm:$0xff]
      %v304 = vld [vmem:[%s278 + $0x10] sm:$0xff]
      %v305 = vld [vmem:[%s278 + $0x18] sm:$0xff]
      %v306 = vld [vmem:[%s278 + $0x20] sm:$0xff]
      %v307 = vld [vmem:[%s278 + $0x28] sm:$0xff]
      %v308 = vld [vmem:[%s278 + $0x30] sm:$0xff]
      %v309 = vld [vmem:[%s278 + $0x38] sm:$0xff]
      %v310 = vld [vmem:[%s278 + $0x40] sm:$0xff]
      %v311 = vld [vmem:[%s3] sm:$0xf]
      %v312 = vld [vmem:[%s288] sm:$0xff]
      %v313 = vld [vmem:[%s288 + $0x8] sm:$0xff]
      %v314 = vld [vmem:[%s288 + $0x10] sm:$0x11]
      %v318 = vunpack.c.l.b16 %v312
      %v319 = vunpack.c.h.b16 %v312
      %v320 = vunpack.c.l.b16 %v313
      %v321 = vunpack.c.h.b16 %v313
      %v322 = vunpack.c.l.b16 %v314
      %v323 = vunpack.c.h.b16 %v314
      %v324 = vpack.c.b16 %v320, %v318
      %v325 = vpack.c.b16 %v321, %v319
      %v326 = vpack.c.b16 %v322, %v322
      %v327 = vpack.c.b16 %v323, %v323
      %vm330 = vcmask 146432
      %v332 = vsel %vm330, %v311, 0
      %vm334 = vcmask 1040384
      %v336 = vsel %vm334, %v326, 0
      %v339 = vsel %vm334, %v327, 0
      %341 = vmatprep.subr.bf16.mxu0 %v325
      %342 = vmatpush1.bf16.msra.mxu0 %v324
      %343 = vmatprep.subr.bf16.mxu0 %v339
      %344 = vmatpush1.bf16.msra.mxu0 %v336
      %345 = vmatprep.subr.bf16.mxu0 0
      %346 = vmatpush1.bf16.msra.mxu0 0
      %347 = vmatprep.subr.bf16.mxu0 0
      %348 = vmatpush1.bf16.msra.mxu0 0
      %349 = vmatprep.subr.bf16.mxu0 0
      %350 = vmatpush1.bf16.msra.mxu0 0
      %351 = vmatprep.subr.bf16.mxu0 0
      %352 = vmatpush1.bf16.msra.mxu0 0
      %353 = vmatprep.subr.bf16.mxu0 0
      %354 = vmatpush1.bf16.msra.mxu0 0
      %355 = vmatprep.subr.bf16.mxu0 0
      %356 = vmatpush1.bf16.msra.mxu0 0
      %357 = vmatprep.subr.bf16.mxu0 0
      %358 = vmatpush1.bf16.msra.mxu0 0
      %359 = vmatprep.subr.bf16.mxu0 0
      %360 = vmatpush1.bf16.msra.mxu0 0
      %361 = vmatprep.subr.bf16.mxu0 0
      %362 = vmatpush1.bf16.msra.mxu0 0
      %363 = vmatprep.subr.bf16.mxu0 0
      %364 = vmatpush1.bf16.msra.mxu0 0
      %365 = vmatprep.subr.bf16.mxu0 0
      %366 = vmatpush1.bf16.msra.mxu0 0
      %367 = vmatprep.subr.bf16.mxu0 0
      %368 = vmatpush1.bf16.msra.mxu0 0
      %369 = vmatprep.subr.bf16.mxu0 0
      %370 = vmatpush1.bf16.msra.mxu0 0
      %371 = vmatprep.subr.bf16.mxu0 0
      %372 = vmatpush1.bf16.msra.mxu0 0
      %373 = vmatprep.mubr.bf16.mxu0 0
      %374 = vmatmul.mubr.bf16.gmra.mrb[0].mxu0 %v332
      %v375 = vpop.f32.mrb[0].mxu0
      %v376 = vadd.f32 0.0, %v375
      %v377 = vpop.f32.mrb[0].mxu0
      %v378 = vadd.f32 0.0, %v377
      %v379 = vpop.f32.mrb[0].mxu0
      %v380 = vpop.f32.mrb[0].mxu0
      %381 = vdwg.mxu0
      %v391 = vunpack.c.l.b16 %v302
      %v392 = vunpack.c.h.b16 %v302
      %v393 = vunpack.c.l.b16 %v303
      %v394 = vunpack.c.h.b16 %v303
      %v395 = vunpack.c.l.b16 %v304
      %v396 = vunpack.c.h.b16 %v304
      %v397 = vunpack.c.l.b16 %v305
      %v398 = vunpack.c.h.b16 %v305
      %v399 = vunpack.c.l.b16 %v306
      %v400 = vunpack.c.h.b16 %v306
      %v401 = vunpack.c.l.b16 %v307
      %v402 = vunpack.c.h.b16 %v307
      %v403 = vunpack.c.l.b16 %v308
      %v404 = vunpack.c.h.b16 %v308
      %v405 = vunpack.c.l.b16 %v309
      %v406 = vunpack.c.h.b16 %v309
      %v407 = vunpack.c.l.b16 %v310
      %v408 = vunpack.c.h.b16 %v310
      %v409 = vpack.c.b16 %v393, %v391
      %v410 = vpack.c.b16 %v394, %v392
      %v411 = vpack.c.b16 %v397, %v395
      %v412 = vpack.c.b16 %v398, %v396
      %v413 = vpack.c.b16 %v401, %v399
      %v414 = vpack.c.b16 %v402, %v400
      %v415 = vpack.c.b16 %v405, %v403
      %v416 = vpack.c.b16 %v406, %v404
      %v417 = vpack.c.b16 %v407, %v407
      %v418 = vpack.c.b16 %v408, %v408
      %vm427 = vcmask 588800
      %v429 = vsel %vm427, %v301, 0
      %vm431 = vcmask 1043456
      %v433 = vsel %vm431, %v417, 0
      %v436 = vsel %vm431, %v418, 0
      %438 = vmatprep.subr.bf16.mxu0 %v410
      %439 = vmatpush1.bf16.msra.mxu0 %v409
      %440 = vmatprep.subr.bf16.mxu0 %v412
      %441 = vmatpush1.bf16.msra.mxu0 %v411
      %442 = vmatprep.subr.bf16.mxu0 %v414
      %443 = vmatpush1.bf16.msra.mxu0 %v413
      %444 = vmatprep.subr.bf16.mxu0 %v416
      %445 = vmatpush1.bf16.msra.mxu0 %v415
      %446 = vmatprep.subr.bf16.mxu0 %v436
      %447 = vmatpush1.bf16.msra.mxu0 %v433
      %448 = vmatprep.subr.bf16.mxu0 0
      %449 = vmatpush1.bf16.msra.mxu0 0
      %450 = vmatprep.subr.bf16.mxu0 0
      %451 = vmatpush1.bf16.msra.mxu0 0
      %452 = vmatprep.subr.bf16.mxu0 0
      %453 = vmatpush1.bf16.msra.mxu0 0
      %454 = vmatprep.subr.bf16.mxu0 0
      %455 = vmatpush1.bf16.msra.mxu0 0
      %456 = vmatprep.subr.bf16.mxu0 0
      %457 = vmatpush1.bf16.msra.mxu0 0
      %458 = vmatprep.subr.bf16.mxu0 0
      %459 = vmatpush1.bf16.msra.mxu0 0
      %460 = vmatprep.subr.bf16.mxu0 0
      %461 = vmatpush1.bf16.msra.mxu0 0
      %462 = vmatprep.subr.bf16.mxu0 0
      %463 = vmatpush1.bf16.msra.mxu0 0
      %464 = vmatprep.subr.bf16.mxu0 0
      %465 = vmatpush1.bf16.msra.mxu0 0
      %466 = vmatprep.subr.bf16.mxu0 0
      %467 = vmatpush1.bf16.msra.mxu0 0
      %468 = vmatprep.subr.bf16.mxu0 0
      %469 = vmatpush1.bf16.msra.mxu0 0
      %470 = vmatprep.mubr.bf16.mxu0 0
      %471 = vmatmul.mubr.bf16.gmra.mrb[0].mxu0 %v429
      %v472 = vpop.f32.mrb[0].mxu0
      %v473 = vadd.f32 %v376, %v472
      %v474 = vpop.f32.mrb[0].mxu0
      %v475 = vadd.f32 %v378, %v474
      %v476 = vpop.f32.mrb[0].mxu0
      %v477 = vpop.f32.mrb[0].mxu0
      %478 = vdwg.mxu0
      %v479 = vld [vmem:[%s4] sm:$0xff]
      %481 = vset.pattern.permute.xlu0 0
      %482 = vperm.xlu0 %481, %v479
      %v483 = vpop.permute.xlu0 %482
      %v485 = vadd.f32 %v473, %v483
      %v486 = vadd.f32 %v475, %v483
      %vm487 = vcmp.ge.f32.partialorder %v485, 0.0
      %vm488 = vcmp.ge.f32.partialorder %v486, 0.0
      %v489 = vmul.f32 %v485, 0.2
      %v490 = vmul.f32 %v486, 0.2
      %v491 = vsel %vm487, %v485, %v489
      %v492 = vsel %vm488, %v486, %v490
      %v493 = vpack.c.bf16 %v491, %v491
      %v494 = vpack.c.bf16 %v492, %v492
      %v497 = vunpack.c.l.b16 %v493
      %v498 = vunpack.c.l.b16 %v494
      %v499 = vpack.c.b16 %v498, %v497
      %501 = vst [vmem:[%s298] sm:$0xff] %v499
      %s502 = smul.u32 2, %s21
      %p503 = scmp.lt.s32.totalorder %s20, 1
      %s504 = scalar_select %p503, %s20, 1
      %p505 = scmp.lt.s32.totalorder %s502, 1
      %s506 = scalar_select %p505, %s502, 1
      %s507 = smul.addr %s504, 2
      %s508 = sadd.s32 %s506, %s507
      %s509 = smul.addr %s508, 4
      %s510 = scalar_lea.vmem %s5, %s509
      // Predicated region
      $region41: #{u_network_forward.21} parent=39 // pred_check
        %p511 = pneg %p167
      $region42: #{u_network_forward.21} parent=39 // pred_check_branch
        %513 = sbr.rel (%p511) target = $region44
      $region43: #{u_network_forward.21} parent=39 // pred_region
        %s514 = smul.u32 2, %s21
      $region44: #{u_network_forward.21} parent=39 // pred_fallthru
        _
    $region40: #{u_network_forward.21} parent=5 // pred_fallthru
      _
    %p515 = scmp.le.s32.totalorder 2, %s11
    // Predicated region
    $region45: #{u_network_forward.21} parent=5 // pred_check
      %p516 = pneg %p515
    $region46: #{u_network_forward.21} parent=5 // pred_check_branch
      %518 = sbr.rel (%p516) target = $region48
    $region47: #{u_network_forward.21} parent=5 // pred_region
      %s519 = ssub.s32 %s11, 2
      // Predicated region
      $region49: #{u_network_forward.21} parent=47 // pred_check
        %p520 = pneg %p173
      $region50: #{u_network_forward.21} parent=47 // pred_check_branch
        %522 = sbr.rel (%p520) target = $region52
      $region51: #{u_network_forward.21} parent=47 // pred_region
        %s523 = smul.u32 2, %s23
        %p524 = scmp.lt.s32.totalorder %s22, 1
        %s525 = scalar_select %p524, %s22, 1
        %p526 = scmp.lt.s32.totalorder %s523, 1
        %s527 = scalar_select %p526, %s523, 1
        %s528 = smul.addr %s525, 2
        %s529 = sadd.s32 %s527, %s528
        %s530 = smul.addr %s529, 4
        %s531 = scalar_lea.vmem %s5, %s530
      $region52: #{u_network_forward.21} parent=47 // pred_fallthru
        _
    $region48: #{u_network_forward.21} parent=5 // pred_fallthru
      _
  $region6: #{u_network_forward.21} parent=0 // loop_footer
    %s15 = sadd.s32 1, %s11
  $region7: #{u_network_forward.21} parent=0 // loop_footer_branch
    %10 = sbr.rel target = $region3
  $region8: #{u_network_forward.21} parent=0 // loop_exit
    _

// kernel: u_network_forward.22
$region0: #{u_network_forward.22}
  #allocation0 [shape = 'u32[]', space=smem, size = 0x4, offset = 0x4, fixed_abs, tag = 'smem constant byte address 0x4 - core index']
  #allocation1 [shape = 'u32[144,128]{1,0:T(1,128)}', space=vmem, size = 0x12000, scoped, tag = 'internal scratch']
  %s0 = inlined_call_operand.vmem [shape: bf16[2,72,256], index: 0, kind: input, shape index: {}]
  %s1 = inlined_call_operand.vmem [shape: bf16[8,72], index: 1, kind: input, shape index: {}]
  %s2 = inlined_call_operand.vmem [shape: f32[8,1], index: 2, kind: input, shape index: {}]
  %s3 = inlined_call_operand.vmem [shape: bf16[2,8,256], index: 3, kind: output, shape index: {}]
  %s4 = sld [smem:[#allocation0]]
  $region45: #{u_network_forward.22} parent=0
    _
  %s6 = ssub.s32 1, %s4
  %s7 = scalar_select 0, %s6, %s4
  loop: start=0, step=1, limit=4
  $region2: #{u_network_forward.22} parent=0 // loop_pre_header
    _
  $region3: #{u_network_forward.22} parent=0 // loop_header
    %s9 = sphi 0, %s13
    %p10 = scmp.ge.s32.totalorder %s9, 4
    %s16 = sphi 0, %s28
    %s17 = sphi 0, %s24
    %s18 = sphi 0, %s16
    %s19 = sphi 0, %s17
    %s20 = sphi 0, %s18
    %s21 = sphi 0, %s19
    %s33 = sphi 0, %s35
    %s36 = sphi 0, %s33
    %s37 = sphi 0, %s36
    %s53 = sphi 0, %s37
    %s57 = sphi 0, %s57
    %s59 = sphi 0, %s57
    %s60 = sphi 0, %s59
    %s74 = sphi 0, %s60
    %s78 = sphi 0, %s78
    %s80 = sphi 0, %s78
    %s81 = sphi 0, %s80
    %s95 = sphi 0, %s81
    %s103 = sphi 0, %s105
    %s106 = sphi 0, %s103
    %s107 = sphi 0, %s106
    %s123 = sphi 0, %s107
  $region4: #{u_network_forward.22} parent=0 // loop_header_branch
    %12 = sbr.rel (%p10) target = $region8
  $region5: #{u_network_forward.22} parent=0 // loop_body
    %s14 = ssub.s32 %s9, 1
    %s15 = ssub.s32 %s9, 2
    %s22 = sadd.s32 1, %s17
    %p23 = scmp.ge.s32.totalorder %s22, 1
    %s24 = scalar_select %p23, 0, %s22
    %s25 = sadd.s32 1, %s16
    %s26 = scalar_select %p23, %s25, %s16
    %p27 = scmp.ge.s32.totalorder %s26, 2
    %s28 = scalar_select %p27, 0, %s26
    %s29 = ssub.s32 %s16, %s28
    %s30 = ssub.s32 %s17, %s24
    %s31 = sor.u32 %s29, %s30
    %p32 = scmp.eq.s32.totalorder %s31, 0
    %s34 = sadd.s32 %s33, 1
    %s35 = scalar_select %p32, %s33, %s34
    %p38 = pneg %p32
    %p39 = scmp.eq.s32.totalorder %s9, 1
    %p40 = por %p38, %p39
    %p41 = scmp.ne.s32.totalorder %s33, %s36
    %p42 = scmp.eq.s32.totalorder %s9, 0
    %p43 = por %p41, %p42
    %p44 = scmp.ne.s32.totalorder %s33, %s36
    %p45 = scmp.eq.s32.totalorder %s14, 1
    %p46 = por %p44, %p45
    %p47 = scmp.ne.s32.totalorder %s36, %s37
    %p48 = scmp.eq.s32.totalorder %s14, 0
    %p49 = por %p47, %p48
    %p50 = scmp.ne.s32.totalorder %s36, %s37
    %p51 = scmp.eq.s32.totalorder %s15, 1
    %p52 = por %p50, %p51
    %p54 = scmp.ne.s32.totalorder %s37, %s53
    %p55 = scmp.eq.s32.totalorder %s15, 0
    %p56 = por %p54, %p55
    %s58 = sadd.s32 %s57, 1
    %p61 = scmp.eq.s32.totalorder %s9, 1
    %p62 = scmp.ne.s32.totalorder %s57, %s59
    %p63 = scmp.eq.s32.totalorder %s9, 0
    %p64 = por %p62, %p63
    %p65 = scmp.ne.s32.totalorder %s57, %s59
    %p66 = scmp.eq.s32.totalorder %s14, 1
    %p67 = por %p65, %p66
    %p68 = scmp.ne.s32.totalorder %s59, %s60
    %p69 = scmp.eq.s32.totalorder %s14, 0
    %p70 = por %p68, %p69
    %p71 = scmp.ne.s32.totalorder %s59, %s60
    %p72 = scmp.eq.s32.totalorder %s15, 1
    %p73 = por %p71, %p72
    %p75 = scmp.ne.s32.totalorder %s60, %s74
    %p76 = scmp.eq.s32.totalorder %s15, 0
    %p77 = por %p75, %p76
    %s79 = sadd.s32 %s78, 1
    %p82 = scmp.eq.s32.totalorder %s9, 1
    %p83 = scmp.ne.s32.totalorder %s78, %s80
    %p84 = scmp.eq.s32.totalorder %s9, 0
    %p85 = por %p83, %p84
    %p86 = scmp.ne.s32.totalorder %s78, %s80
    %p87 = scmp.eq.s32.totalorder %s14, 1
    %p88 = por %p86, %p87
    %p89 = scmp.ne.s32.totalorder %s80, %s81
    %p90 = scmp.eq.s32.totalorder %s14, 0
    %p91 = por %p89, %p90
    %p92 = scmp.ne.s32.totalorder %s80, %s81
    %p93 = scmp.eq.s32.totalorder %s15, 1
    %p94 = por %p92, %p93
    %p96 = scmp.ne.s32.totalorder %s81, %s95
    %p97 = scmp.eq.s32.totalorder %s15, 0
    %p98 = por %p96, %p97
    %s99 = ssub.s32 %s16, %s28
    %s100 = ssub.s32 %s17, %s24
    %s101 = sor.u32 %s99, %s100
    %p102 = scmp.eq.s32.totalorder %s101, 0
    %s104 = sadd.s32 %s103, 1
    %s105 = scalar_select %p102, %s103, %s104
    %p108 = pneg %p102
    %p109 = scmp.eq.s32.totalorder %s9, 1
    %p110 = por %p108, %p109
    %p111 = scmp.ne.s32.totalorder %s103, %s106
    %p112 = scmp.eq.s32.totalorder %s9, 0
    %p113 = por %p111, %p112
    %p114 = scmp.ne.s32.totalorder %s103, %s106
    %p115 = scmp.eq.s32.totalorder %s14, 1
    %p116 = por %p114, %p115
    %p117 = scmp.ne.s32.totalorder %s106, %s107
    %p118 = scmp.eq.s32.totalorder %s14, 0
    %p119 = por %p117, %p118
    %p120 = scmp.ne.s32.totalorder %s106, %s107
    %p121 = scmp.eq.s32.totalorder %s15, 1
    %p122 = por %p120, %p121
    %p124 = scmp.ne.s32.totalorder %s107, %s123
    %p125 = scmp.eq.s32.totalorder %s15, 0
    %p126 = por %p124, %p125
    %p127 = scmp.le.s32.totalorder 1, %s9
    %p128 = scmp.lt.s32.totalorder %s9, 3
    %p129 = pnand %p127, %p128
    %p130 = pneg %p129
    // Predicated region
    $region9: #{u_network_forward.22} parent=5 // pred_check
      _
    $region10: #{u_network_forward.22} parent=5 // pred_check_branch
      %132 = sbr.rel (%p129) target = $region12
    $region11: #{u_network_forward.22} parent=5 // pred_region
      %s133 = ssub.s32 %s9, 1
      // Predicated region
      $region13: #{u_network_forward.22} parent=11 // pred_check
        %p134 = pneg %p70
      $region14: #{u_network_forward.22} parent=11 // pred_check_branch
        %136 = sbr.rel (%p134) target = $region16
      $region15: #{u_network_forward.22} parent=11 // pred_region
        _
      $region16: #{u_network_forward.22} parent=11 // pred_fallthru
        _
      // Predicated region
      $region17: #{u_network_forward.22} parent=11 // pred_check
        %p137 = pneg %p91
      $region18: #{u_network_forward.22} parent=11 // pred_check_branch
        %139 = sbr.rel (%p137) target = $region20
      $region19: #{u_network_forward.22} parent=11 // pred_region
        _
      $region20: #{u_network_forward.22} parent=11 // pred_fallthru
        _
    $region12: #{u_network_forward.22} parent=5 // pred_fallthru
      _
    %p140 = scmp.lt.s32.totalorder %s9, 2
    // Predicated region
    $region21: #{u_network_forward.22} parent=5 // pred_check
      %p141 = pneg %p140
    $region22: #{u_network_forward.22} parent=5 // pred_check_branch
      %143 = sbr.rel (%p141) target = $region24
    $region23: #{u_network_forward.22} parent=5 // pred_region
      // Predicated region
      $region25: #{u_network_forward.22} parent=23 // pred_check
        %p144 = pneg %p43
      $region26: #{u_network_forward.22} parent=23 // pred_check_branch
        %146 = sbr.rel (%p144) target = $region28
      $region27: #{u_network_forward.22} parent=23 // pred_region
        %s147 = smul.u32 2, %s17
        %p148 = scmp.lt.s32.totalorder %s16, 1
        %s149 = scalar_select %p148, %s16, 1
        %p150 = scmp.lt.s32.totalorder %s147, 1
        %s151 = scalar_select %p150, %s147, 1
        %s152 = smul.addr %s149, 18
        %s153 = sadd.s32 %s151, %s152
        %s154 = smul.addr %s153, 4
        %s155 = scalar_lea.vmem %s0, %s154
        %s156 = smul.u32 2, %s17
      $region28: #{u_network_forward.22} parent=23 // pred_fallthru
        _
    $region24: #{u_network_forward.22} parent=5 // pred_fallthru
      _
    %p157 = scmp.le.s32.totalorder 1, %s9
    %p158 = scmp.lt.s32.totalorder %s9, 3
    %p159 = pnand %p157, %p158
    %p160 = pneg %p159
    // Predicated region
    $region29: #{u_network_forward.22} parent=5 // pred_check
      _
    $region30: #{u_network_forward.22} parent=5 // pred_check_branch
      %162 = sbr.rel (%p159) target = $region32
    $region31: #{u_network_forward.22} parent=5 // pred_region
      %s163 = ssub.s32 %s9, 1
      %s164 = smul.u32 2, %s19
      %p165 = scmp.lt.s32.totalorder %s18, 1
      %s166 = scalar_select %p165, %s18, 1
      %p167 = scmp.lt.s32.totalorder %s164, 1
      %s168 = scalar_select %p167, %s164, 1
      %s169 = smul.addr %s166, 18
      %s170 = sadd.s32 %s168, %s169
      %s171 = smul.addr %s170, 4
      %s172 = scalar_lea.vmem %s0, %s171
      %p173 = pneg %p49
      %p174 = pneg %p46
      %p175 = pneg %p70
      %p176 = pneg %p67
      %p177 = pneg %p91
      %p178 = pneg %p88
      %p179 = pneg %p119
      %p180 = pneg %p116
      %s181 = smul.u32 2, %s19
      %p182 = scmp.lt.s32.totalorder %s18, 1
      %s183 = scalar_select %p182, %s18, 1
      %p184 = scmp.lt.s32.totalorder %s181, 1
      %s185 = scalar_select %p184, %s181, 1
      %s186 = smul.addr %s183, 2
      %s187 = sadd.s32 %s185, %s186
      %s188 = smul.addr %s187, 4
      %s189 = scalar_lea.vmem %s3, %s188
      %s190 = smul.u32 2, %s19
      %p191 = scmp.lt.s32.totalorder %s18, 1
      %s192 = scalar_select %p191, %s18, 1
      %p193 = scmp.lt.s32.totalorder %s190, 1
      %s194 = scalar_select %p193, %s190, 1
      %s195 = smul.addr %s192, 18
      %s196 = sadd.s32 %s194, %s195
      %s197 = smul.addr %s196, 4
      %s198 = scalar_lea.vmem %s0, %s197
      %s199 = smul.u32 2, %s19
      %s200 = smul.u32 2, %s19
      %p201 = scmp.lt.s32.totalorder %s18, 1
      %s202 = scalar_select %p201, %s18, 1
      %p203 = scmp.lt.s32.totalorder %s200, 1
      %s204 = scalar_select %p203, %s200, 1
      %s205 = smul.addr %s202, 2
      %s206 = sadd.s32 %s204, %s205
      %s207 = smul.addr %s206, 4
      %s208 = scalar_lea.vmem %s3, %s207
      %s209 = smul.u32 2, %s19
      %v211 = vld [vmem:[%s1] sm:$0xf]
      %v212 = vld [vmem:[%s198] sm:$0xff]
      %v213 = vld [vmem:[%s198 + $0x8] sm:$0xff]
      %v214 = vld [vmem:[%s198 + $0x10] sm:$0xff]
      %v215 = vld [vmem:[%s198 + $0x18] sm:$0xff]
      %v216 = vld [vmem:[%s198 + $0x20] sm:$0xff]
      %v217 = vld [vmem:[%s198 + $0x28] sm:$0xff]
      %v218 = vld [vmem:[%s198 + $0x30] sm:$0xff]
      %v219 = vld [vmem:[%s198 + $0x38] sm:$0xff]
      %v220 = vld [vmem:[%s198 + $0x40] sm:$0xff]
      %v221 = vld [vmem:[%s2] sm:$0xff]
      %223 = vset.pattern.permute.xlu0 0
      %224 = vperm.xlu0 %223, %v221
      %v225 = vpop.permute.xlu0 %224
      %v236 = vunpack.c.l.b16 %v212
      %v237 = vunpack.c.h.b16 %v212
      %v238 = vunpack.c.l.b16 %v213
      %v239 = vunpack.c.h.b16 %v213
      %v240 = vunpack.c.l.b16 %v214
      %v241 = vunpack.c.h.b16 %v214
      %v242 = vunpack.c.l.b16 %v215
      %v243 = vunpack.c.h.b16 %v215
      %v244 = vunpack.c.l.b16 %v216
      %v245 = vunpack.c.h.b16 %v216
      %v246 = vunpack.c.l.b16 %v217
      %v247 = vunpack.c.h.b16 %v217
      %v248 = vunpack.c.l.b16 %v218
      %v249 = vunpack.c.h.b16 %v218
      %v250 = vunpack.c.l.b16 %v219
      %v251 = vunpack.c.h.b16 %v219
      %v252 = vunpack.c.l.b16 %v220
      %v253 = vunpack.c.h.b16 %v220
      %v254 = vpack.c.b16 %v238, %v236
      %v255 = vpack.c.b16 %v239, %v237
      %v256 = vpack.c.b16 %v242, %v240
      %v257 = vpack.c.b16 %v243, %v241
      %v258 = vpack.c.b16 %v246, %v244
      %v259 = vpack.c.b16 %v247, %v245
      %v260 = vpack.c.b16 %v250, %v248
      %v261 = vpack.c.b16 %v251, %v249
      %v262 = vpack.c.b16 %v252, %v252
      %v263 = vpack.c.b16 %v253, %v253
      %vm272 = vcmask 588800
      %v274 = vsel %vm272, %v211, 0
      %vm276 = vcmask 1043456
      %v278 = vsel %vm276, %v262, 0
      %v281 = vsel %vm276, %v263, 0
      %283 = vmatprep.subr.bf16.mxu0 %v255
      %284 = vmatpush1.bf16.msra.mxu0 %v254
      %285 = vmatprep.subr.bf16.mxu0 %v257
      %286 = vmatpush1.bf16.msra.mxu0 %v256
      %287 = vmatprep.subr.bf16.mxu0 %v259
      %288 = vmatpush1.bf16.msra.mxu0 %v258
      %289 = vmatprep.subr.bf16.mxu0 %v261
      %290 = vmatpush1.bf16.msra.mxu0 %v260
      %291 = vmatprep.subr.bf16.mxu0 %v281
      %292 = vmatpush1.bf16.msra.mxu0 %v278
      %293 = vmatprep.subr.bf16.mxu0 0
      %294 = vmatpush1.bf16.msra.mxu0 0
      %295 = vmatprep.subr.bf16.mxu0 0
      %296 = vmatpush1.bf16.msra.mxu0 0
      %297 = vmatprep.subr.bf16.mxu0 0
      %298 = vmatpush1.bf16.msra.mxu0 0
      %299 = vmatprep.subr.bf16.mxu0 0
      %300 = vmatpush1.bf16.msra.mxu0 0
      %301 = vmatprep.subr.bf16.mxu0 0
      %302 = vmatpush1.bf16.msra.mxu0 0
      %303 = vmatprep.subr.bf16.mxu0 0
      %304 = vmatpush1.bf16.msra.mxu0 0
      %305 = vmatprep.subr.bf16.mxu0 0
      %306 = vmatpush1.bf16.msra.mxu0 0
      %307 = vmatprep.subr.bf16.mxu0 0
      %308 = vmatpush1.bf16.msra.mxu0 0
      %309 = vmatprep.subr.bf16.mxu0 0
      %310 = vmatpush1.bf16.msra.mxu0 0
      %311 = vmatprep.subr.bf16.mxu0 0
      %312 = vmatpush1.bf16.msra.mxu0 0
      %313 = vmatprep.subr.bf16.mxu0 0
      %314 = vmatpush1.bf16.msra.mxu0 0
      %315 = vmatprep.mubr.bf16.mxu0 0
      %316 = vmatmul.mubr.bf16.gmra.mrb[0].mxu0 %v274
      %v317 = vpop.f32.mrb[0].mxu0
      %v318 = vadd.f32 %v225, %v317
      %v319 = vpop.f32.mrb[0].mxu0
      %v320 = vadd.f32 %v225, %v319
      %v321 = vpop.f32.mrb[0].mxu0
      %v322 = vpop.f32.mrb[0].mxu0
      %323 = vdwg.mxu0
      %vm324 = vcmp.ge.f32.partialorder %v318, 0.0
      %vm325 = vcmp.ge.f32.partialorder %v320, 0.0
      %v326 = vmul.f32 %v318, 0.2
      %v327 = vmul.f32 %v320, 0.2
      %v328 = vsel %vm324, %v318, %v326
      %v329 = vsel %vm325, %v320, %v327
      %v330 = vpack.c.bf16 %v328, %v328
      %v331 = vpack.c.bf16 %v329, %v329
      %v334 = vunpack.c.l.b16 %v330
      %v335 = vunpack.c.l.b16 %v331
      %v336 = vpack.c.b16 %v335, %v334
      %338 = vst [vmem:[%s208] sm:$0xff] %v336
      %s339 = smul.u32 2, %s19
      %p340 = scmp.lt.s32.totalorder %s18, 1
      %s341 = scalar_select %p340, %s18, 1
      %p342 = scmp.lt.s32.totalorder %s339, 1
      %s343 = scalar_select %p342, %s339, 1
      %s344 = smul.addr %s341, 2
      %s345 = sadd.s32 %s343, %s344
      %s346 = smul.addr %s345, 4
      %s347 = scalar_lea.vmem %s3, %s346
      // Predicated region
      $region33: #{u_network_forward.22} parent=31 // pred_check
        %p348 = pneg %p116
      $region34: #{u_network_forward.22} parent=31 // pred_check_branch
        %350 = sbr.rel (%p348) target = $region36
      $region35: #{u_network_forward.22} parent=31 // pred_region
        %s351 = smul.u32 2, %s19
      $region36: #{u_network_forward.22} parent=31 // pred_fallthru
        _
    $region32: #{u_network_forward.22} parent=5 // pred_fallthru
      _
    %p352 = scmp.le.s32.totalorder 2, %s9
    // Predicated region
    $region37: #{u_network_forward.22} parent=5 // pred_check
      %p353 = pneg %p352
    $region38: #{u_network_forward.22} parent=5 // pred_check_branch
      %355 = sbr.rel (%p353) target = $region40
    $region39: #{u_network_forward.22} parent=5 // pred_region
      %s356 = ssub.s32 %s9, 2
      // Predicated region
      $region41: #{u_network_forward.22} parent=39 // pred_check
        %p357 = pneg %p122
      $region42: #{u_network_forward.22} parent=39 // pred_check_branch
        %359 = sbr.rel (%p357) target = $region44
      $region43: #{u_network_forward.22} parent=39 // pred_region
        %s360 = smul.u32 2, %s21
        %p361 = scmp.lt.s32.totalorder %s20, 1
        %s362 = scalar_select %p361, %s20, 1
        %p363 = scmp.lt.s32.totalorder %s360, 1
        %s364 = scalar_select %p363, %s360, 1
        %s365 = smul.addr %s362, 2
        %s366 = sadd.s32 %s364, %s365
        %s367 = smul.addr %s366, 4
        %s368 = scalar_lea.vmem %s3, %s367
      $region44: #{u_network_forward.22} parent=39 // pred_fallthru
        _
    $region40: #{u_network_forward.22} parent=5 // pred_fallthru
      _
  $region6: #{u_network_forward.22} parent=0 // loop_footer
    %s13 = sadd.s32 1, %s9
  $region7: #{u_network_forward.22} parent=0 // loop_footer_branch
    %8 = sbr.rel target = $region3
  $region8: #{u_network_forward.22} parent=0 // loop_exit
    _

// kernel: u_network_forward.23
$region0: #{u_network_forward.23}
  #allocation0 [shape = 'u32[]', space=smem, size = 0x4, offset = 0x4, fixed_abs, tag = 'smem constant byte address 0x4 - core index']
  #allocation1 [shape = 'u32[144,128]{1,0:T(1,128)}', space=vmem, size = 0x12000, scoped, tag = 'internal scratch']
  %s0 = inlined_call_operand.vmem [shape: bf16[2,72,256], index: 0, kind: input, shape index: {}]
  %s1 = inlined_call_operand.vmem [shape: bf16[2,72], index: 1, kind: input, shape index: {}]
  %s2 = inlined_call_operand.vmem [shape: f32[2,1], index: 2, kind: input, shape index: {}]
  %s3 = inlined_call_operand.vmem [shape: f32[2,2,256], index: 3, kind: output, shape index: {}]
  %s4 = sld [smem:[#allocation0]]
  $region45: #{u_network_forward.23} parent=0
    _
  %s6 = ssub.s32 1, %s4
  %s7 = scalar_select 0, %s6, %s4
  loop: start=0, step=1, limit=4
  $region2: #{u_network_forward.23} parent=0 // loop_pre_header
    _
  $region3: #{u_network_forward.23} parent=0 // loop_header
    %s9 = sphi 0, %s13
    %p10 = scmp.ge.s32.totalorder %s9, 4
    %s16 = sphi 0, %s28
    %s17 = sphi 0, %s24
    %s18 = sphi 0, %s16
    %s19 = sphi 0, %s17
    %s20 = sphi 0, %s18
    %s21 = sphi 0, %s19
    %s33 = sphi 0, %s35
    %s36 = sphi 0, %s33
    %s37 = sphi 0, %s36
    %s53 = sphi 0, %s37
    %s57 = sphi 0, %s57
    %s59 = sphi 0, %s57
    %s60 = sphi 0, %s59
    %s74 = sphi 0, %s60
    %s78 = sphi 0, %s78
    %s80 = sphi 0, %s78
    %s81 = sphi 0, %s80
    %s95 = sphi 0, %s81
    %s103 = sphi 0, %s105
    %s106 = sphi 0, %s103
    %s107 = sphi 0, %s106
    %s123 = sphi 0, %s107
  $region4: #{u_network_forward.23} parent=0 // loop_header_branch
    %12 = sbr.rel (%p10) target = $region8
  $region5: #{u_network_forward.23} parent=0 // loop_body
    %s14 = ssub.s32 %s9, 1
    %s15 = ssub.s32 %s9, 2
    %s22 = sadd.s32 1, %s17
    %p23 = scmp.ge.s32.totalorder %s22, 1
    %s24 = scalar_select %p23, 0, %s22
    %s25 = sadd.s32 1, %s16
    %s26 = scalar_select %p23, %s25, %s16
    %p27 = scmp.ge.s32.totalorder %s26, 2
    %s28 = scalar_select %p27, 0, %s26
    %s29 = ssub.s32 %s16, %s28
    %s30 = ssub.s32 %s17, %s24
    %s31 = sor.u32 %s29, %s30
    %p32 = scmp.eq.s32.totalorder %s31, 0
    %s34 = sadd.s32 %s33, 1
    %s35 = scalar_select %p32, %s33, %s34
    %p38 = pneg %p32
    %p39 = scmp.eq.s32.totalorder %s9, 1
    %p40 = por %p38, %p39
    %p41 = scmp.ne.s32.totalorder %s33, %s36
    %p42 = scmp.eq.s32.totalorder %s9, 0
    %p43 = por %p41, %p42
    %p44 = scmp.ne.s32.totalorder %s33, %s36
    %p45 = scmp.eq.s32.totalorder %s14, 1
    %p46 = por %p44, %p45
    %p47 = scmp.ne.s32.totalorder %s36, %s37
    %p48 = scmp.eq.s32.totalorder %s14, 0
    %p49 = por %p47, %p48
    %p50 = scmp.ne.s32.totalorder %s36, %s37
    %p51 = scmp.eq.s32.totalorder %s15, 1
    %p52 = por %p50, %p51
    %p54 = scmp.ne.s32.totalorder %s37, %s53
    %p55 = scmp.eq.s32.totalorder %s15, 0
    %p56 = por %p54, %p55
    %s58 = sadd.s32 %s57, 1
    %p61 = scmp.eq.s32.totalorder %s9, 1
    %p62 = scmp.ne.s32.totalorder %s57, %s59
    %p63 = scmp.eq.s32.totalorder %s9, 0
    %p64 = por %p62, %p63
    %p65 = scmp.ne.s32.totalorder %s57, %s59
    %p66 = scmp.eq.s32.totalorder %s14, 1
    %p67 = por %p65, %p66
    %p68 = scmp.ne.s32.totalorder %s59, %s60
    %p69 = scmp.eq.s32.totalorder %s14, 0
    %p70 = por %p68, %p69
    %p71 = scmp.ne.s32.totalorder %s59, %s60
    %p72 = scmp.eq.s32.totalorder %s15, 1
    %p73 = por %p71, %p72
    %p75 = scmp.ne.s32.totalorder %s60, %s74
    %p76 = scmp.eq.s32.totalorder %s15, 0
    %p77 = por %p75, %p76
    %s79 = sadd.s32 %s78, 1
    %p82 = scmp.eq.s32.totalorder %s9, 1
    %p83 = scmp.ne.s32.totalorder %s78, %s80
    %p84 = scmp.eq.s32.totalorder %s9, 0
    %p85 = por %p83, %p84
    %p86 = scmp.ne.s32.totalorder %s78, %s80
    %p87 = scmp.eq.s32.totalorder %s14, 1
    %p88 = por %p86, %p87
    %p89 = scmp.ne.s32.totalorder %s80, %s81
    %p90 = scmp.eq.s32.totalorder %s14, 0
    %p91 = por %p89, %p90
    %p92 = scmp.ne.s32.totalorder %s80, %s81
    %p93 = scmp.eq.s32.totalorder %s15, 1
    %p94 = por %p92, %p93
    %p96 = scmp.ne.s32.totalorder %s81, %s95
    %p97 = scmp.eq.s32.totalorder %s15, 0
    %p98 = por %p96, %p97
    %s99 = ssub.s32 %s16, %s28
    %s100 = ssub.s32 %s17, %s24
    %s101 = sor.u32 %s99, %s100
    %p102 = scmp.eq.s32.totalorder %s101, 0
    %s104 = sadd.s32 %s103, 1
    %s105 = scalar_select %p102, %s103, %s104
    %p108 = pneg %p102
    %p109 = scmp.eq.s32.totalorder %s9, 1
    %p110 = por %p108, %p109
    %p111 = scmp.ne.s32.totalorder %s103, %s106
    %p112 = scmp.eq.s32.totalorder %s9, 0
    %p113 = por %p111, %p112
    %p114 = scmp.ne.s32.totalorder %s103, %s106
    %p115 = scmp.eq.s32.totalorder %s14, 1
    %p116 = por %p114, %p115
    %p117 = scmp.ne.s32.totalorder %s106, %s107
    %p118 = scmp.eq.s32.totalorder %s14, 0
    %p119 = por %p117, %p118
    %p120 = scmp.ne.s32.totalorder %s106, %s107
    %p121 = scmp.eq.s32.totalorder %s15, 1
    %p122 = por %p120, %p121
    %p124 = scmp.ne.s32.totalorder %s107, %s123
    %p125 = scmp.eq.s32.totalorder %s15, 0
    %p126 = por %p124, %p125
    %p127 = scmp.le.s32.totalorder 1, %s9
    %p128 = scmp.lt.s32.totalorder %s9, 3
    %p129 = pnand %p127, %p128
    %p130 = pneg %p129
    // Predicated region
    $region9: #{u_network_forward.23} parent=5 // pred_check
      _
    $region10: #{u_network_forward.23} parent=5 // pred_check_branch
      %132 = sbr.rel (%p129) target = $region12
    $region11: #{u_network_forward.23} parent=5 // pred_region
      %s133 = ssub.s32 %s9, 1
      // Predicated region
      $region13: #{u_network_forward.23} parent=11 // pred_check
        %p134 = pneg %p70
      $region14: #{u_network_forward.23} parent=11 // pred_check_branch
        %136 = sbr.rel (%p134) target = $region16
      $region15: #{u_network_forward.23} parent=11 // pred_region
        _
      $region16: #{u_network_forward.23} parent=11 // pred_fallthru
        _
      // Predicated region
      $region17: #{u_network_forward.23} parent=11 // pred_check
        %p137 = pneg %p91
      $region18: #{u_network_forward.23} parent=11 // pred_check_branch
        %139 = sbr.rel (%p137) target = $region20
      $region19: #{u_network_forward.23} parent=11 // pred_region
        _
      $region20: #{u_network_forward.23} parent=11 // pred_fallthru
        _
    $region12: #{u_network_forward.23} parent=5 // pred_fallthru
      _
    %p140 = scmp.lt.s32.totalorder %s9, 2
    // Predicated region
    $region21: #{u_network_forward.23} parent=5 // pred_check
      %p141 = pneg %p140
    $region22: #{u_network_forward.23} parent=5 // pred_check_branch
      %143 = sbr.rel (%p141) target = $region24
    $region23: #{u_network_forward.23} parent=5 // pred_region
      // Predicated region
      $region25: #{u_network_forward.23} parent=23 // pred_check
        %p144 = pneg %p43
      $region26: #{u_network_forward.23} parent=23 // pred_check_branch
        %146 = sbr.rel (%p144) target = $region28
      $region27: #{u_network_forward.23} parent=23 // pred_region
        %s147 = smul.u32 2, %s17
        %p148 = scmp.lt.s32.totalorder %s16, 1
        %s149 = scalar_select %p148, %s16, 1
        %p150 = scmp.lt.s32.totalorder %s147, 1
        %s151 = scalar_select %p150, %s147, 1
        %s152 = smul.addr %s149, 18
        %s153 = sadd.s32 %s151, %s152
        %s154 = smul.addr %s153, 4
        %s155 = scalar_lea.vmem %s0, %s154
        %s156 = smul.u32 2, %s17
      $region28: #{u_network_forward.23} parent=23 // pred_fallthru
        _
    $region24: #{u_network_forward.23} parent=5 // pred_fallthru
      _
    %p157 = scmp.le.s32.totalorder 1, %s9
    %p158 = scmp.lt.s32.totalorder %s9, 3
    %p159 = pnand %p157, %p158
    %p160 = pneg %p159
    // Predicated region
    $region29: #{u_network_forward.23} parent=5 // pred_check
      _
    $region30: #{u_network_forward.23} parent=5 // pred_check_branch
      %162 = sbr.rel (%p159) target = $region32
    $region31: #{u_network_forward.23} parent=5 // pred_region
      %s163 = ssub.s32 %s9, 1
      %s164 = smul.u32 2, %s19
      %p165 = scmp.lt.s32.totalorder %s18, 1
      %s166 = scalar_select %p165, %s18, 1
      %p167 = scmp.lt.s32.totalorder %s164, 1
      %s168 = scalar_select %p167, %s164, 1
      %s169 = smul.addr %s166, 18
      %s170 = sadd.s32 %s168, %s169
      %s171 = smul.addr %s170, 4
      %s172 = scalar_lea.vmem %s0, %s171
      %p173 = pneg %p49
      %p174 = pneg %p46
      %p175 = pneg %p70
      %p176 = pneg %p67
      %p177 = pneg %p91
      %p178 = pneg %p88
      %p179 = pneg %p119
      %p180 = pneg %p116
      %s181 = smul.u32 2, %s19
      %p182 = scmp.lt.s32.totalorder %s18, 1
      %s183 = scalar_select %p182, %s18, 1
      %p184 = scmp.lt.s32.totalorder %s181, 1
      %s185 = scalar_select %p184, %s181, 1
      %s186 = smul.addr %s183, 2
      %s187 = sadd.s32 %s185, %s186
      %s188 = smul.addr %s187, 2
      %s189 = scalar_lea.vmem %s3, %s188
      %s190 = smul.u32 2, %s19
      %p191 = scmp.lt.s32.totalorder %s18, 1
      %s192 = scalar_select %p191, %s18, 1
      %p193 = scmp.lt.s32.totalorder %s190, 1
      %s194 = scalar_select %p193, %s190, 1
      %s195 = smul.addr %s192, 18
      %s196 = sadd.s32 %s194, %s195
      %s197 = smul.addr %s196, 4
      %s198 = scalar_lea.vmem %s0, %s197
      %s199 = smul.u32 2, %s19
      %s200 = smul.u32 2, %s19
      %p201 = scmp.lt.s32.totalorder %s18, 1
      %s202 = scalar_select %p201, %s18, 1
      %p203 = scmp.lt.s32.totalorder %s200, 1
      %s204 = scalar_select %p203, %s200, 1
      %s205 = smul.addr %s202, 2
      %s206 = sadd.s32 %s204, %s205
      %s207 = smul.addr %s206, 2
      %s208 = scalar_lea.vmem %s3, %s207
      %s209 = smul.u32 2, %s19
      %v211 = vld [vmem:[%s1] sm:$0x1]
      %v212 = vld [vmem:[%s198] sm:$0xff]
      %v213 = vld [vmem:[%s198 + $0x8] sm:$0xff]
      %v214 = vld [vmem:[%s198 + $0x10] sm:$0xff]
      %v215 = vld [vmem:[%s198 + $0x18] sm:$0xff]
      %v216 = vld [vmem:[%s198 + $0x20] sm:$0xff]
      %v217 = vld [vmem:[%s198 + $0x28] sm:$0xff]
      %v218 = vld [vmem:[%s198 + $0x30] sm:$0xff]
      %v219 = vld [vmem:[%s198 + $0x38] sm:$0xff]
      %v220 = vld [vmem:[%s198 + $0x40] sm:$0xff]
      %v221 = vld [vmem:[%s2] sm:$0x3]
      %223 = vset.pattern.permute.xlu0 0
      %224 = vperm.xlu0 %223, %v221
      %v225 = vpop.permute.xlu0 %224
      %v236 = vunpack.c.l.b16 %v212
      %v237 = vunpack.c.h.b16 %v212
      %v238 = vunpack.c.l.b16 %v213
      %v239 = vunpack.c.h.b16 %v213
      %v240 = vunpack.c.l.b16 %v214
      %v241 = vunpack.c.h.b16 %v214
      %v242 = vunpack.c.l.b16 %v215
      %v243 = vunpack.c.h.b16 %v215
      %v244 = vunpack.c.l.b16 %v216
      %v245 = vunpack.c.h.b16 %v216
      %v246 = vunpack.c.l.b16 %v217
      %v247 = vunpack.c.h.b16 %v217
      %v248 = vunpack.c.l.b16 %v218
      %v249 = vunpack.c.h.b16 %v218
      %v250 = vunpack.c.l.b16 %v219
      %v251 = vunpack.c.h.b16 %v219
      %v252 = vunpack.c.l.b16 %v220
      %v253 = vunpack.c.h.b16 %v220
      %v254 = vpack.c.b16 %v238, %v236
      %v255 = vpack.c.b16 %v239, %v237
      %v256 = vpack.c.b16 %v242, %v240
      %v257 = vpack.c.b16 %v243, %v241
      %v258 = vpack.c.b16 %v246, %v244
      %v259 = vpack.c.b16 %v247, %v245
      %v260 = vpack.c.b16 %v250, %v248
      %v261 = vpack.c.b16 %v251, %v249
      %v262 = vpack.c.b16 %v252, %v252
      %v263 = vpack.c.b16 %v253, %v253
      %vm272 = vcmask 588800
      %v274 = vsel %vm272, %v211, 0
      %vm276 = vcmask 1043456
      %v278 = vsel %vm276, %v262, 0
      %v281 = vsel %vm276, %v263, 0
      %283 = vmatprep.subr.bf16.mxu0 %v255
      %284 = vmatpush1.bf16.msra.mxu0 %v254
      %285 = vmatprep.subr.bf16.mxu0 %v257
      %286 = vmatpush1.bf16.msra.mxu0 %v256
      %287 = vmatprep.subr.bf16.mxu0 %v259
      %288 = vmatpush1.bf16.msra.mxu0 %v258
      %289 = vmatprep.subr.bf16.mxu0 %v261
      %290 = vmatpush1.bf16.msra.mxu0 %v260
      %291 = vmatprep.subr.bf16.mxu0 %v281
      %292 = vmatpush1.bf16.msra.mxu0 %v278
      %293 = vmatprep.subr.bf16.mxu0 0
      %294 = vmatpush1.bf16.msra.mxu0 0
      %295 = vmatprep.subr.bf16.mxu0 0
      %296 = vmatpush1.bf16.msra.mxu0 0
      %297 = vmatprep.subr.bf16.mxu0 0
      %298 = vmatpush1.bf16.msra.mxu0 0
      %299 = vmatprep.subr.bf16.mxu0 0
      %300 = vmatpush1.bf16.msra.mxu0 0
      %301 = vmatprep.subr.bf16.mxu0 0
      %302 = vmatpush1.bf16.msra.mxu0 0
      %303 = vmatprep.subr.bf16.mxu0 0
      %304 = vmatpush1.bf16.msra.mxu0 0
      %305 = vmatprep.subr.bf16.mxu0 0
      %306 = vmatpush1.bf16.msra.mxu0 0
      %307 = vmatprep.subr.bf16.mxu0 0
      %308 = vmatpush1.bf16.msra.mxu0 0
      %309 = vmatprep.subr.bf16.mxu0 0
      %310 = vmatpush1.bf16.msra.mxu0 0
      %311 = vmatprep.subr.bf16.mxu0 0
      %312 = vmatpush1.bf16.msra.mxu0 0
      %313 = vmatprep.subr.bf16.mxu0 0
      %314 = vmatpush1.bf16.msra.mxu0 0
      %315 = vmatprep.mubr.bf16.mxu0 0
      %316 = vmatmul.mubr.bf16.gmra.mrb[0].mxu0 %v274
      %v317 = vpop.f32.mrb[0].mxu0
      %v318 = vadd.f32 %v225, %v317
      %v319 = vpop.f32.mrb[0].mxu0
      %v320 = vadd.f32 %v225, %v319
      %v321 = vpop.f32.mrb[0].mxu0
      %v322 = vpop.f32.mrb[0].mxu0
      %323 = vdwg.mxu0
      %v326 = vcombine.low %v318, %v320
      %v328 = vunpack.c.l.s4 1983009808
      %v329 = vunpack.c.0.s8 %v328
      %v330 = vlaneseq
      %v331 = vshrl.u32 %v330, 7
      %v332 = vsub.s32 %v329, %v331
      %v333 = vrot.slane %v326, %v332
      %335 = vst [vmem:[%s208] sm:$0xf] %v333
      %s336 = smul.u32 2, %s19
      %p337 = scmp.lt.s32.totalorder %s18, 1
      %s338 = scalar_select %p337, %s18, 1
      %p339 = scmp.lt.s32.totalorder %s336, 1
      %s340 = scalar_select %p339, %s336, 1
      %s341 = smul.addr %s338, 2
      %s342 = sadd.s32 %s340, %s341
      %s343 = smul.addr %s342, 2
      %s344 = scalar_lea.vmem %s3, %s343
      // Predicated region
      $region33: #{u_network_forward.23} parent=31 // pred_check
        %p345 = pneg %p116
      $region34: #{u_network_forward.23} parent=31 // pred_check_branch
        %347 = sbr.rel (%p345) target = $region36
      $region35: #{u_network_forward.23} parent=31 // pred_region
        %s348 = smul.u32 2, %s19
      $region36: #{u_network_forward.23} parent=31 // pred_fallthru
        _
    $region32: #{u_network_forward.23} parent=5 // pred_fallthru
      _
    %p349 = scmp.le.s32.totalorder 2, %s9
    // Predicated region
    $region37: #{u_network_forward.23} parent=5 // pred_check
      %p350 = pneg %p349
    $region38: #{u_network_forward.23} parent=5 // pred_check_branch
      %352 = sbr.rel (%p350) target = $region40
    $region39: #{u_network_forward.23} parent=5 // pred_region
      %s353 = ssub.s32 %s9, 2
      // Predicated region
      $region41: #{u_network_forward.23} parent=39 // pred_check
        %p354 = pneg %p122
      $region42: #{u_network_forward.23} parent=39 // pred_check_branch
        %356 = sbr.rel (%p354) target = $region44
      $region43: #{u_network_forward.23} parent=39 // pred_region
        %s357 = smul.u32 2, %s21
        %p358 = scmp.lt.s32.totalorder %s20, 1
        %s359 = scalar_select %p358, %s20, 1
        %p360 = scmp.lt.s32.totalorder %s357, 1
        %s361 = scalar_select %p360, %s357, 1
        %s362 = smul.addr %s359, 2
        %s363 = sadd.s32 %s361, %s362
        %s364 = smul.addr %s363, 2
        %s365 = scalar_lea.vmem %s3, %s364
      $region44: #{u_network_forward.23} parent=39 // pred_fallthru
        _
    $region40: #{u_network_forward.23} parent=5 // pred_fallthru
      _
  $region6: #{u_network_forward.23} parent=0 // loop_footer
    %s13 = sadd.s32 1, %s9
  $region7: #{u_network_forward.23} parent=0 // loop_footer_branch
    %8 = sbr.rel target = $region3
  $region8: #{u_network_forward.23} parent=0 // loop_exit
    _

</llo_original>
